<compile_context>
chip_gen: v7x
topology: tpu7x:2x2x1
jax: 0.10.0
libtpu: 0.0.40
codegen_flags: <defaults>
</compile_context>

<pallas_src>
import functools

import jax
import jax.numpy as jnp
from jax.experimental import pallas as pl
from jax.experimental.pallas import tpu as pltpu


def _modified_block_kernel(
    x_ref, wqkv_ref, bqkv_ref, wproj_ref, bproj_ref,
    gamma_ref, beta_ref, w1_ref, b1_ref, w2_ref, b2_ref,
    o_ref, *, num_heads, head_dim, eps, approximate_gelu,
):
    Bt, N, C = x_ref.shape
    H, D = num_heads, head_dim
    R = Bt * N

    x = x_ref[...].astype(jnp.bfloat16).reshape(R, C)

    # ---------------- qkv projection (bf16 operands, f32 accumulation) -------
    qkv = jnp.dot(x, wqkv_ref[...], preferred_element_type=jnp.float32)
    qkv = qkv + bqkv_ref[...]
    scale = D ** -0.5
    # fold softmax scale into q; cast to bf16 right away (short f32 live range)
    q = (qkv[:, 0 * C:1 * C] * scale).astype(jnp.bfloat16)
    k = qkv[:, 1 * C:2 * C].astype(jnp.bfloat16)
    v = qkv[:, 2 * C:3 * C].astype(jnp.bfloat16)

    # ---------------- head-major repack: (R, C) -> (Bt*H, N, D) --------------
    # lane slice per head + major-axis stack (no lane<->sublane reshapes).
    def heads_major(t):
        return jnp.stack(
            [t[:, h * D:(h + 1) * D].reshape(Bt, N, D) for h in range(H)],
            axis=1,
        ).reshape(Bt * H, N, D)

    qh, kh, vh = heads_major(q), heads_major(k), heads_major(v)

    # ---------------- attention: all (batch, head) pairs in 2 batched einsums
    s = jnp.einsum('bnd,bmd->bnm', qh, kh, preferred_element_type=jnp.float32)
    s = s - jnp.max(s, axis=-1, keepdims=True)
    p = jnp.exp(s)
    p = p * pl.reciprocal(jnp.sum(p, axis=-1, keepdims=True), approx=True)
    oh = jnp.einsum('bnm,bmd->bnd', p.astype(jnp.bfloat16), vh,
                    preferred_element_type=jnp.float32)          # (Bt*H, N, D)

    # merge heads back to (R, C): lane-dense concat (no masked sub-128 stores)
    oh = oh.reshape(Bt, H, N, D).astype(jnp.bfloat16)
    attn_out = jnp.concatenate([oh[:, h] for h in range(H)], axis=-1).reshape(R, C)

    # ---------------- proj ----------------
    y = jnp.dot(attn_out, wproj_ref[...], preferred_element_type=jnp.float32)
    y = y + bproj_ref[...]                                       # (R, C) f32

    # ---------------- norm2: LayerNorm over C (f32) ----------------
    mu = jnp.mean(y, axis=-1, keepdims=True)
    var = jnp.mean((y - mu) ** 2, axis=-1, keepdims=True)
    yn = (y - mu) * jax.lax.rsqrt(var + eps) * gamma_ref[...] + beta_ref[...]

    # ---------------- mlp: fc1 -> GELU -> fc2 ----------------
    # TODO(synk): for ViT-L/H on v7x, tile the hidden dim M over an extra
    # 'arbitrary' grid axis (accumulating fc2 partials in an f32 scratch) instead
    # of keeping w1/w2 fully VMEM-resident.
    h1 = jnp.dot(yn.astype(jnp.bfloat16), w1_ref[...],
                 preferred_element_type=jnp.float32) + b1_ref[...]
    h1 = jax.nn.gelu(h1, approximate=approximate_gelu)
    out = jnp.dot(h1.astype(jnp.bfloat16), w2_ref[...],
                  preferred_element_type=jnp.float32) + b2_ref[...]

    # drop_path is identity in eval mode.
    o_ref[...] = out.reshape(Bt, N, C).astype(o_ref.dtype)


def _vmem_limit_bytes():
    """Per-generation scoped-VMEM budget (re-derived for 64 MiB v7x parts)."""
    try:
        cap = pltpu.get_tpu_info().vmem_capacity_bytes
    except Exception:
        cap = 64 * 1024 * 1024                      # conservative v7x-sized fallback
    limit = min(48 * 1024 * 1024, int(0.60 * cap))  # 48 MiB v5e/v6e, ~38 MiB v7x
    return max(limit, 16 * 1024 * 1024)


def _pick_block_b(B, N, C, M, H, vmem_limit):
    """Largest batch tile that (a) keeps >= 2 grid steps (v7x has 2 TensorCores
    sharing the 'parallel' axis), (b) caps the matmul row slab, and (c) fits a
    rough per-step VMEM estimate in the budget."""

    def vmem_est(bb):
        rows = bb * N
        weights = 2 * (C * 3 * C + C * C + 2 * C * M)            # bf16, single-buffered
        io = 2 * 2 * rows * C * 4                                # x/out blocks, 2x buffers
        scores = bb * H * N * N * 6                              # f32 scores + bf16 probs
        temps = rows * (3 * C * 6 + M * 6 + C * 12)              # qkv / h1 / proj slabs
        return weights + io + scores + temps

    best = 1
    for bb in range(1, B + 1):
        if B % bb:
            continue
        if B >= 2 and B // bb < 2:
            break            # keep >= 2 grid steps so both v7x TCs get work
        if bb * N > 2048:
            break            # MXU row fill saturates; bounds the f32 temporaries
        if vmem_est(bb) > 0.8 * vmem_limit:
            break
        best = bb
    return best


def _build_call(shape, dtype, M, num_heads, head_dim, eps, approximate_gelu,
                block_b, vmem_limit, single_buffer_weights):
    B, N, C = shape
    kernel = functools.partial(
        _modified_block_kernel, num_heads=num_heads, head_dim=head_dim,
        eps=eps, approximate_gelu=approximate_gelu)

    full = lambda *_: (0, 0)     # grid-invariant whole-array spec (fetched once)
    if single_buffer_weights:
        wspec = lambda s: pl.BlockSpec(s, full, pipeline_mode=pl.Buffered(1))
    else:
        wspec = lambda s: pl.BlockSpec(s, full)

    return pl.pallas_call(
        kernel,
        out_shape=jax.ShapeDtypeStruct((B, N, C), dtype),
        grid_spec=pltpu.PrefetchScalarGridSpec(
            num_scalar_prefetch=0,
            grid=(B // block_b,),
            in_specs=[
                pl.BlockSpec((block_b, N, C), lambda b: (b, 0, 0)),   # x
                wspec((C, 3 * C)), wspec((1, 3 * C)),                 # qkv w, b
                wspec((C, C)), wspec((1, C)),                         # proj w, b
                wspec((1, C)), wspec((1, C)),                         # norm2 gamma, beta
                wspec((C, M)), wspec((1, M)),                         # fc1 w, b
                wspec((M, C)), wspec((1, C)),                         # fc2 w, b
            ],
            out_specs=pl.BlockSpec((block_b, N, C), lambda b: (b, 0, 0)),
        ),
        compiler_params=pltpu.CompilerParams(
            dimension_semantics=("parallel",),     # batch grid -> megacore sharding
            vmem_limit_bytes=vmem_limit,
        ),
    )


def modified_block(x, params, *, num_heads, eps=1e-6, block_b=None,
                   approximate_gelu=True):
    """Pallas forward of ModifiedBlock.

    approximate_gelu=True (default) uses the tanh GELU (EUP-friendly, within
    ~1e-3 of exact erf for these scales); pass False for strict timm nn.GELU
    (exact-erf) parity.
    """
    B, N, C = x.shape
    head_dim = C // num_heads
    M = params["w1"].shape[1]

    vmem_limit = _vmem_limit_bytes()
    if block_b is None:
        block_b = _pick_block_b(B, N, C, M, num_heads, vmem_limit)
    assert B % block_b == 0, "batch must be divisible by block_b"

    args = (x,
            params["wqkv"], params["bqkv"], params["wproj"], params["bproj"],
            params["gamma"], params["beta"], params["w1"], params["b1"],
            params["w2"], params["b2"])

    try:
        call = _build_call((B, N, C), x.dtype, M, num_heads, head_dim, eps,
                           approximate_gelu, block_b, vmem_limit,
                           single_buffer_weights=True)
        return jax.block_until_ready(call(*args))
    except Exception:
        # pl.Buffered(1) (single-buffered grid-invariant weights) not accepted by
        # this jax/libtpu build -> fall back to default double-buffered specs
        # (identical results, just more VMEM).
        call = _build_call((B, N, C), x.dtype, M, num_heads, head_dim, eps,
                           approximate_gelu, block_b, vmem_limit,
                           single_buffer_weights=False)
        return jax.block_until_ready(call(*args))


def reference_block(x, params, *, num_heads, eps=1e-6):
    """Pure-JAX f32 reference mirroring timm's Block (without residuals/norm1),
    exact-erf GELU as in torch nn.GELU."""
    p = {kk: vv.astype(jnp.float32) for kk, vv in params.items()}
    B, N, C = x.shape
    D = C // num_heads
    qkv = x @ p["wqkv"] + p["bqkv"][0]                                 # (B, N, 3C)
    qkv = qkv.reshape(B, N, 3, num_heads, D).transpose(2, 0, 3, 1, 4)  # (3,B,H,N,D)
    q, k, v = qkv[0], qkv[1], qkv[2]
    attn = jax.nn.softmax((q @ jnp.swapaxes(k, -1, -2)) * (D ** -0.5), axis=-1)
    y = (attn @ v).transpose(0, 2, 1, 3).reshape(B, N, C)
    y = y @ p["wproj"] + p["bproj"][0]
    mu = y.mean(-1, keepdims=True)
    var = ((y - mu) ** 2).mean(-1, keepdims=True)
    yn = (y - mu) * jax.lax.rsqrt(var + eps) * p["gamma"][0] + p["beta"][0]
    h = jax.nn.gelu(yn @ p["w1"] + p["b1"][0], approximate=False)
    return h @ p["w2"] + p["b2"][0]


if __name__ == "__main__":
    B, N, C = 4, 16, 128         # batch, sequence, hidden (lane-dense: C % 128 == 0)
    num_heads = 4
    mlp_hidden = 4 * C           # timm default mlp_ratio = 4

    key = jax.random.PRNGKey(0)
    keys = jax.random.split(key, 12)
    std = 0.02
    bf16 = jnp.bfloat16
    params = {
        # weight matrices stored bf16 (MXU-native); biases / LN affine stay f32
        "wqkv":  (std * jax.random.normal(keys[0], (C, 3 * C), jnp.float32)).astype(bf16),
        "bqkv":  std * jax.random.normal(keys[1], (1, 3 * C), jnp.float32),
        "wproj": (std * jax.random.normal(keys[2], (C, C), jnp.float32)).astype(bf16),
        "bproj": std * jax.random.normal(keys[3], (1, C), jnp.float32),
        "gamma": jnp.ones((1, C), jnp.float32)
                 + 0.1 * jax.random.normal(keys[4], (1, C), jnp.float32),
        "beta":  0.1 * jax.random.normal(keys[5], (1, C), jnp.float32),
        "w1":    (std * jax.random.normal(keys[6], (C, mlp_hidden), jnp.float32)).astype(bf16),
        "b1":    std * jax.random.normal(keys[7], (1, mlp_hidden), jnp.float32),
        "w2":    (std * jax.random.normal(keys[8], (mlp_hidden, C), jnp.float32)).astype(bf16),
        "b2":    std * jax.random.normal(keys[9], (1, C), jnp.float32),
    }

    x = jax.random.normal(keys[10], (B, N, C), jnp.float32)

    out = modified_block(x, params, num_heads=num_heads)
    out = jax.block_until_ready(out)

    ref = reference_block(x, params, num_heads=num_heads)
    assert out.shape == (B, N, C)
    err = jnp.max(jnp.abs(out - ref))
    # bf16 matmul operands + approx softmax reciprocal + tanh-vs-erf GELU
    # -> relaxed tolerance vs the f32 exact-erf reference
    assert jnp.allclose(out, ref, atol=3e-2, rtol=3e-2), f"max abs err = {err}"

    print("KERNEL_OK")
</pallas_src>

<mosaic_0001>
module attributes {stable_mosaic.version = 11 : i64} {
  func.func @_modified_block_kernel(%arg0: i32, %arg1: memref<2x16x128xf32, #tpu.memory_space<vmem>>, %arg2: memref<128x384xbf16, #tpu.memory_space<vmem>>, %arg3: memref<1x384xf32, #tpu.memory_space<vmem>>, %arg4: memref<128x128xbf16, #tpu.memory_space<vmem>>, %arg5: memref<1x128xf32, #tpu.memory_space<vmem>>, %arg6: memref<1x128xf32, #tpu.memory_space<vmem>>, %arg7: memref<1x128xf32, #tpu.memory_space<vmem>>, %arg8: memref<128x512xbf16, #tpu.memory_space<vmem>>, %arg9: memref<1x512xf32, #tpu.memory_space<vmem>>, %arg10: memref<512x128xbf16, #tpu.memory_space<vmem>>, %arg11: memref<1x128xf32, #tpu.memory_space<vmem>>, %arg12: memref<2x16x128xf32, #tpu.memory_space<vmem>>) attributes {dimension_semantics = [#tpu.dimension_semantics<parallel>], iteration_bounds = array<i64: 2>, scalar_prefetch = 0 : i64, scratch_operands = 0 : i64, tpu.core_type = #tpu.core_type<tc>, window_params = [{transform_indices = @transform_0, window_bounds = array<i64: 2, 16, 128>}, {pipeline_mode = #tpu.pipeline_mode<synchronous>, transform_indices = @transform_1, window_bounds = array<i64: 128, 384>}, {pipeline_mode = #tpu.pipeline_mode<synchronous>, transform_indices = @transform_2, window_bounds = array<i64: 1, 384>}, {pipeline_mode = #tpu.pipeline_mode<synchronous>, transform_indices = @transform_3, window_bounds = array<i64: 128, 128>}, {pipeline_mode = #tpu.pipeline_mode<synchronous>, transform_indices = @transform_4, window_bounds = array<i64: 1, 128>}, {pipeline_mode = #tpu.pipeline_mode<synchronous>, transform_indices = @transform_5, window_bounds = array<i64: 1, 128>}, {pipeline_mode = #tpu.pipeline_mode<synchronous>, transform_indices = @transform_6, window_bounds = array<i64: 1, 128>}, {pipeline_mode = #tpu.pipeline_mode<synchronous>, transform_indices = @transform_7, window_bounds = array<i64: 128, 512>}, {pipeline_mode = #tpu.pipeline_mode<synchronous>, transform_indices = @transform_8, window_bounds = array<i64: 1, 512>}, {pipeline_mode = #tpu.pipeline_mode<synchronous>, transform_indices = @transform_9, window_bounds = array<i64: 512, 128>}, {pipeline_mode = #tpu.pipeline_mode<synchronous>, transform_indices = @transform_10, window_bounds = array<i64: 1, 128>}, {transform_indices = @transform_11, window_bounds = array<i64: 2, 16, 128>}]} {
    %c0 = arith.constant 0 : index
    %c0_0 = arith.constant 0 : index
    %c0_1 = arith.constant 0 : index
    %0 = vector.load %arg1[%c0, %c0_0, %c0_1] : memref<2x16x128xf32, #tpu.memory_space<vmem>>, vector<2x16x128xf32>
    %1 = arith.truncf %0 : vector<2x16x128xf32> to vector<2x16x128xbf16>
    %2 = vector.shape_cast %1 : vector<2x16x128xbf16> to vector<32x128xbf16>
    %c0_2 = arith.constant 0 : index
    %c0_3 = arith.constant 0 : index
    %3 = vector.load %arg2[%c0_2, %c0_3] : memref<128x384xbf16, #tpu.memory_space<vmem>>, vector<128x384xbf16>
    %cst = arith.constant dense<0.000000e+00> : vector<32x384xf32>
    %4 = tpu.matmul %2, %3, %cst {dimension_numbers = #tpu.dot_dimension_numbers<[1], [0], [0], [1], [0, 0, 1, 1], [], []>} : vector<32x128xbf16>, vector<128x384xbf16>, vector<32x384xf32> -> vector<32x384xf32>
    %c0_4 = arith.constant 0 : index
    %c0_5 = arith.constant 0 : index
    %5 = vector.load %arg3[%c0_4, %c0_5] : memref<1x384xf32, #tpu.memory_space<vmem>>, vector<1x384xf32>
    %6 = vector.broadcast %5 : vector<1x384xf32> to vector<32x384xf32>
    %7 = arith.addf %4, %6 : vector<32x384xf32>
    %8 = vector.extract_strided_slice %7 {offsets = [0, 0], sizes = [32, 128], strides = [1, 1]} : vector<32x384xf32> to vector<32x128xf32>
    %cst_6 = arith.constant 0.176776692 : f32
    %9 = vector.broadcast %cst_6 : f32 to vector<32x128xf32>
    %10 = arith.mulf %8, %9 : vector<32x128xf32>
    %11 = arith.truncf %10 : vector<32x128xf32> to vector<32x128xbf16>
    %12 = vector.extract_strided_slice %7 {offsets = [0, 128], sizes = [32, 128], strides = [1, 1]} : vector<32x384xf32> to vector<32x128xf32>
    %13 = arith.truncf %12 : vector<32x128xf32> to vector<32x128xbf16>
    %14 = vector.extract_strided_slice %7 {offsets = [0, 256], sizes = [32, 128], strides = [1, 1]} : vector<32x384xf32> to vector<32x128xf32>
    %15 = arith.truncf %14 : vector<32x128xf32> to vector<32x128xbf16>
    %16 = vector.extract_strided_slice %11 {offsets = [0, 0], sizes = [32, 32], strides = [1, 1]} : vector<32x128xbf16> to vector<32x32xbf16>
    %17 = vector.shape_cast %16 : vector<32x32xbf16> to vector<2x16x32xbf16>
    %18 = vector.extract_strided_slice %11 {offsets = [0, 32], sizes = [32, 32], strides = [1, 1]} : vector<32x128xbf16> to vector<32x32xbf16>
    %19 = vector.shape_cast %18 : vector<32x32xbf16> to vector<2x16x32xbf16>
    %20 = vector.extract_strided_slice %11 {offsets = [0, 64], sizes = [32, 32], strides = [1, 1]} : vector<32x128xbf16> to vector<32x32xbf16>
    %21 = vector.shape_cast %20 : vector<32x32xbf16> to vector<2x16x32xbf16>
    %22 = vector.extract_strided_slice %11 {offsets = [0, 96], sizes = [32, 32], strides = [1, 1]} : vector<32x128xbf16> to vector<32x32xbf16>
    %23 = vector.shape_cast %22 : vector<32x32xbf16> to vector<2x16x32xbf16>
    %24 = vector.shape_cast %17 : vector<2x16x32xbf16> to vector<2x1x16x32xbf16>
    %25 = vector.shape_cast %19 : vector<2x16x32xbf16> to vector<2x1x16x32xbf16>
    %26 = vector.shape_cast %21 : vector<2x16x32xbf16> to vector<2x1x16x32xbf16>
    %27 = vector.shape_cast %23 : vector<2x16x32xbf16> to vector<2x1x16x32xbf16>
    %28 = tpu.concatenate %24, %25, %26, %27 in 1 : vector<2x1x16x32xbf16>, vector<2x1x16x32xbf16>, vector<2x1x16x32xbf16>, vector<2x1x16x32xbf16> -> vector<2x4x16x32xbf16>
    %29 = vector.shape_cast %28 : vector<2x4x16x32xbf16> to vector<8x16x32xbf16>
    %30 = vector.extract_strided_slice %13 {offsets = [0, 0], sizes = [32, 32], strides = [1, 1]} : vector<32x128xbf16> to vector<32x32xbf16>
    %31 = vector.shape_cast %30 : vector<32x32xbf16> to vector<2x16x32xbf16>
    %32 = vector.extract_strided_slice %13 {offsets = [0, 32], sizes = [32, 32], strides = [1, 1]} : vector<32x128xbf16> to vector<32x32xbf16>
    %33 = vector.shape_cast %32 : vector<32x32xbf16> to vector<2x16x32xbf16>
    %34 = vector.extract_strided_slice %13 {offsets = [0, 64], sizes = [32, 32], strides = [1, 1]} : vector<32x128xbf16> to vector<32x32xbf16>
    %35 = vector.shape_cast %34 : vector<32x32xbf16> to vector<2x16x32xbf16>
    %36 = vector.extract_strided_slice %13 {offsets = [0, 96], sizes = [32, 32], strides = [1, 1]} : vector<32x128xbf16> to vector<32x32xbf16>
    %37 = vector.shape_cast %36 : vector<32x32xbf16> to vector<2x16x32xbf16>
    %38 = vector.shape_cast %31 : vector<2x16x32xbf16> to vector<2x1x16x32xbf16>
    %39 = vector.shape_cast %33 : vector<2x16x32xbf16> to vector<2x1x16x32xbf16>
    %40 = vector.shape_cast %35 : vector<2x16x32xbf16> to vector<2x1x16x32xbf16>
    %41 = vector.shape_cast %37 : vector<2x16x32xbf16> to vector<2x1x16x32xbf16>
    %42 = tpu.concatenate %38, %39, %40, %41 in 1 : vector<2x1x16x32xbf16>, vector<2x1x16x32xbf16>, vector<2x1x16x32xbf16>, vector<2x1x16x32xbf16> -> vector<2x4x16x32xbf16>
    %43 = vector.shape_cast %42 : vector<2x4x16x32xbf16> to vector<8x16x32xbf16>
    %44 = vector.extract_strided_slice %15 {offsets = [0, 0], sizes = [32, 32], strides = [1, 1]} : vector<32x128xbf16> to vector<32x32xbf16>
    %45 = vector.shape_cast %44 : vector<32x32xbf16> to vector<2x16x32xbf16>
    %46 = vector.extract_strided_slice %15 {offsets = [0, 32], sizes = [32, 32], strides = [1, 1]} : vector<32x128xbf16> to vector<32x32xbf16>
    %47 = vector.shape_cast %46 : vector<32x32xbf16> to vector<2x16x32xbf16>
    %48 = vector.extract_strided_slice %15 {offsets = [0, 64], sizes = [32, 32], strides = [1, 1]} : vector<32x128xbf16> to vector<32x32xbf16>
    %49 = vector.shape_cast %48 : vector<32x32xbf16> to vector<2x16x32xbf16>
    %50 = vector.extract_strided_slice %15 {offsets = [0, 96], sizes = [32, 32], strides = [1, 1]} : vector<32x128xbf16> to vector<32x32xbf16>
    %51 = vector.shape_cast %50 : vector<32x32xbf16> to vector<2x16x32xbf16>
    %52 = vector.shape_cast %45 : vector<2x16x32xbf16> to vector<2x1x16x32xbf16>
    %53 = vector.shape_cast %47 : vector<2x16x32xbf16> to vector<2x1x16x32xbf16>
    %54 = vector.shape_cast %49 : vector<2x16x32xbf16> to vector<2x1x16x32xbf16>
    %55 = vector.shape_cast %51 : vector<2x16x32xbf16> to vector<2x1x16x32xbf16>
    %56 = tpu.concatenate %52, %53, %54, %55 in 1 : vector<2x1x16x32xbf16>, vector<2x1x16x32xbf16>, vector<2x1x16x32xbf16>, vector<2x1x16x32xbf16> -> vector<2x4x16x32xbf16>
    %57 = vector.shape_cast %56 : vector<2x4x16x32xbf16> to vector<8x16x32xbf16>
    "tpu.trace_start"() <{level = 10 : i32, message = "bnd,bmd->bnm"}> : () -> ()
    %cst_7 = arith.constant dense<0.000000e+00> : vector<8x16x16xf32>
    %58 = tpu.matmul %29, %43, %cst_7 {dimension_numbers = #tpu.dot_dimension_numbers<[2], [2], [1], [1], [0, 0, 0, 1, 1, 1], [0], [0]>} : vector<8x16x32xbf16>, vector<8x16x32xbf16>, vector<8x16x16xf32> -> vector<8x16x16xf32>
    "tpu.trace_stop"() : () -> ()
    %cst_8 = arith.constant dense<0xFF800000> : vector<8x16xf32>
    %59 = vector.multi_reduction <maximumf>, %58, %cst_8 [2] : vector<8x16x16xf32> to vector<8x16xf32>
    %60 = vector.shape_cast %59 : vector<8x16xf32> to vector<8x16x1xf32>
    %61 = vector.broadcast %60 : vector<8x16x1xf32> to vector<8x16x16xf32>
    %62 = arith.subf %58, %61 : vector<8x16x16xf32>
    %63 = math.exp %62 : vector<8x16x16xf32>
    %cst_9 = arith.constant dense<0.000000e+00> : vector<8x16xf32>
    %64 = vector.multi_reduction <add>, %63, %cst_9 [2] : vector<8x16x16xf32> to vector<8x16xf32>
    %65 = vector.shape_cast %64 : vector<8x16xf32> to vector<8x16x1xf32>
    %66 = tpu.reciprocal %65 {approx = true} : vector<8x16x1xf32> -> vector<8x16x1xf32>
    %67 = vector.broadcast %66 : vector<8x16x1xf32> to vector<8x16x16xf32>
    %68 = arith.mulf %63, %67 : vector<8x16x16xf32>
    %69 = arith.truncf %68 : vector<8x16x16xf32> to vector<8x16x16xbf16>
    "tpu.trace_start"() <{level = 10 : i32, message = "bnm,bmd->bnd"}> : () -> ()
    %cst_10 = arith.constant dense<0.000000e+00> : vector<8x16x32xf32>
    %70 = tpu.matmul %69, %57, %cst_10 {dimension_numbers = #tpu.dot_dimension_numbers<[2], [1], [1], [2], [0, 0, 0, 1, 1, 2], [0], [0]>} : vector<8x16x16xbf16>, vector<8x16x32xbf16>, vector<8x16x32xf32> -> vector<8x16x32xf32>
    "tpu.trace_stop"() : () -> ()
    %71 = vector.shape_cast %70 : vector<8x16x32xf32> to vector<2x4x16x32xf32>
    %72 = arith.truncf %71 : vector<2x4x16x32xf32> to vector<2x4x16x32xbf16>
    %73 = vector.extract_strided_slice %72 {offsets = [0, 0, 0, 0], sizes = [2, 1, 16, 32], strides = [1, 1, 1, 1]} : vector<2x4x16x32xbf16> to vector<2x1x16x32xbf16>
    %74 = vector.shape_cast %73 : vector<2x1x16x32xbf16> to vector<2x16x32xbf16>
    %75 = vector.extract_strided_slice %72 {offsets = [0, 1, 0, 0], sizes = [2, 1, 16, 32], strides = [1, 1, 1, 1]} : vector<2x4x16x32xbf16> to vector<2x1x16x32xbf16>
    %76 = vector.shape_cast %75 : vector<2x1x16x32xbf16> to vector<2x16x32xbf16>
    %77 = vector.extract_strided_slice %72 {offsets = [0, 2, 0, 0], sizes = [2, 1, 16, 32], strides = [1, 1, 1, 1]} : vector<2x4x16x32xbf16> to vector<2x1x16x32xbf16>
    %78 = vector.shape_cast %77 : vector<2x1x16x32xbf16> to vector<2x16x32xbf16>
    %79 = vector.extract_strided_slice %72 {offsets = [0, 3, 0, 0], sizes = [2, 1, 16, 32], strides = [1, 1, 1, 1]} : vector<2x4x16x32xbf16> to vector<2x1x16x32xbf16>
    %80 = vector.shape_cast %79 : vector<2x1x16x32xbf16> to vector<2x16x32xbf16>
    %81 = tpu.concatenate %74, %76, %78, %80 in 2 : vector<2x16x32xbf16>, vector<2x16x32xbf16>, vector<2x16x32xbf16>, vector<2x16x32xbf16> -> vector<2x16x128xbf16>
    %82 = vector.shape_cast %81 : vector<2x16x128xbf16> to vector<32x128xbf16>
    %c0_11 = arith.constant 0 : index
    %c0_12 = arith.constant 0 : index
    %83 = vector.load %arg4[%c0_11, %c0_12] : memref<128x128xbf16, #tpu.memory_space<vmem>>, vector<128x128xbf16>
    %cst_13 = arith.constant dense<0.000000e+00> : vector<32x128xf32>
    %84 = tpu.matmul %82, %83, %cst_13 {dimension_numbers = #tpu.dot_dimension_numbers<[1], [0], [0], [1], [0, 0, 1, 1], [], []>} : vector<32x128xbf16>, vector<128x128xbf16>, vector<32x128xf32> -> vector<32x128xf32>
    %c0_14 = arith.constant 0 : index
    %c0_15 = arith.constant 0 : index
    %85 = vector.load %arg5[%c0_14, %c0_15] : memref<1x128xf32, #tpu.memory_space<vmem>>, vector<1x128xf32>
    %86 = vector.broadcast %85 : vector<1x128xf32> to vector<32x128xf32>
    %87 = arith.addf %84, %86 : vector<32x128xf32>
    %cst_16 = arith.constant dense<0.000000e+00> : vector<32xf32>
    %88 = vector.multi_reduction <add>, %87, %cst_16 [1] : vector<32x128xf32> to vector<32xf32>
    %89 = vector.shape_cast %88 : vector<32xf32> to vector<32x1xf32>
    %cst_17 = arith.constant 1.280000e+02 : f32
    %90 = vector.broadcast %cst_17 : f32 to vector<32x1xf32>
    %91 = arith.divf %89, %90 : vector<32x1xf32>
    %92 = vector.broadcast %91 : vector<32x1xf32> to vector<32x128xf32>
    %93 = arith.subf %87, %92 : vector<32x128xf32>
    %94 = arith.mulf %93, %93 : vector<32x128xf32>
    %cst_18 = arith.constant dense<0.000000e+00> : vector<32xf32>
    %95 = vector.multi_reduction <add>, %94, %cst_18 [1] : vector<32x128xf32> to vector<32xf32>
    %96 = vector.shape_cast %95 : vector<32xf32> to vector<32x1xf32>
    %cst_19 = arith.constant 1.280000e+02 : f32
    %97 = vector.broadcast %cst_19 : f32 to vector<32x1xf32>
    %98 = arith.divf %96, %97 : vector<32x1xf32>
    %99 = vector.broadcast %91 : vector<32x1xf32> to vector<32x128xf32>
    %100 = arith.subf %87, %99 : vector<32x128xf32>
    %cst_20 = arith.constant 9.99999997E-7 : f32
    %101 = vector.broadcast %cst_20 : f32 to vector<32x1xf32>
    %102 = arith.addf %98, %101 : vector<32x1xf32>
    %103 = math.rsqrt %102 : vector<32x1xf32>
    %104 = vector.broadcast %103 : vector<32x1xf32> to vector<32x128xf32>
    %105 = arith.mulf %100, %104 : vector<32x128xf32>
    %c0_21 = arith.constant 0 : index
    %c0_22 = arith.constant 0 : index
    %106 = vector.load %arg6[%c0_21, %c0_22] : memref<1x128xf32, #tpu.memory_space<vmem>>, vector<1x128xf32>
    %107 = vector.broadcast %106 : vector<1x128xf32> to vector<32x128xf32>
    %108 = arith.mulf %105, %107 : vector<32x128xf32>
    %c0_23 = arith.constant 0 : index
    %c0_24 = arith.constant 0 : index
    %109 = vector.load %arg7[%c0_23, %c0_24] : memref<1x128xf32, #tpu.memory_space<vmem>>, vector<1x128xf32>
    %110 = vector.broadcast %109 : vector<1x128xf32> to vector<32x128xf32>
    %111 = arith.addf %108, %110 : vector<32x128xf32>
    %112 = arith.truncf %111 : vector<32x128xf32> to vector<32x128xbf16>
    %c0_25 = arith.constant 0 : index
    %c0_26 = arith.constant 0 : index
    %113 = vector.load %arg8[%c0_25, %c0_26] : memref<128x512xbf16, #tpu.memory_space<vmem>>, vector<128x512xbf16>
    %cst_27 = arith.constant dense<0.000000e+00> : vector<32x512xf32>
    %114 = tpu.matmul %112, %113, %cst_27 {dimension_numbers = #tpu.dot_dimension_numbers<[1], [0], [0], [1], [0, 0, 1, 1], [], []>} : vector<32x128xbf16>, vector<128x512xbf16>, vector<32x512xf32> -> vector<32x512xf32>
    %c0_28 = arith.constant 0 : index
    %c0_29 = arith.constant 0 : index
    %115 = vector.load %arg9[%c0_28, %c0_29] : memref<1x512xf32, #tpu.memory_space<vmem>>, vector<1x512xf32>
    %116 = vector.broadcast %115 : vector<1x512xf32> to vector<32x512xf32>
    %117 = arith.addf %114, %116 : vector<32x512xf32>
    %118 = arith.mulf %117, %117 : vector<32x512xf32>
    %119 = arith.mulf %117, %118 : vector<32x512xf32>
    %cst_30 = arith.constant 4.471500e-02 : f32
    %120 = vector.broadcast %cst_30 : f32 to vector<32x512xf32>
    %121 = arith.mulf %120, %119 : vector<32x512xf32>
    %122 = arith.addf %117, %121 : vector<32x512xf32>
    %cst_31 = arith.constant 0.797884583 : f32
    %123 = vector.broadcast %cst_31 : f32 to vector<32x512xf32>
    %124 = arith.mulf %123, %122 : vector<32x512xf32>
    %125 = math.tanh %124 : vector<32x512xf32>
    %cst_32 = arith.constant 1.000000e+00 : f32
    %126 = vector.broadcast %cst_32 : f32 to vector<32x512xf32>
    %127 = arith.addf %126, %125 : vector<32x512xf32>
    %cst_33 = arith.constant 5.000000e-01 : f32
    %128 = vector.broadcast %cst_33 : f32 to vector<32x512xf32>
    %129 = arith.mulf %128, %127 : vector<32x512xf32>
    %130 = arith.mulf %117, %129 : vector<32x512xf32>
    %131 = arith.truncf %130 : vector<32x512xf32> to vector<32x512xbf16>
    %c0_34 = arith.constant 0 : index
    %c0_35 = arith.constant 0 : index
    %132 = vector.load %arg10[%c0_34, %c0_35] : memref<512x128xbf16, #tpu.memory_space<vmem>>, vector<512x128xbf16>
    %cst_36 = arith.constant dense<0.000000e+00> : vector<32x128xf32>
    %133 = tpu.matmul %131, %132, %cst_36 {dimension_numbers = #tpu.dot_dimension_numbers<[1], [0], [0], [1], [0, 0, 1, 1], [], []>} : vector<32x512xbf16>, vector<512x128xbf16>, vector<32x128xf32> -> vector<32x128xf32>
    %c0_37 = arith.constant 0 : index
    %c0_38 = arith.constant 0 : index
    %134 = vector.load %arg11[%c0_37, %c0_38] : memref<1x128xf32, #tpu.memory_space<vmem>>, vector<1x128xf32>
    %135 = vector.broadcast %134 : vector<1x128xf32> to vector<32x128xf32>
    %136 = arith.addf %133, %135 : vector<32x128xf32>
    %137 = vector.shape_cast %136 : vector<32x128xf32> to vector<2x16x128xf32>
    %c0_39 = arith.constant 0 : index
    %c0_40 = arith.constant 0 : index
    %c0_41 = arith.constant 0 : index
    %138 = vector.load %arg12[%c0_39, %c0_40, %c0_41] : memref<2x16x128xf32, #tpu.memory_space<vmem>>, vector<2x16x128xf32>
    tpu.vector_store %arg12[%c0_39, %c0_40, %c0_41], %137 {strides = array<i32>} : memref<2x16x128xf32, #tpu.memory_space<vmem>>, vector<2x16x128xf32>,
    return
  }
  func.func @transform_0(%arg0: i32) -> (i32, i32, i32) {
    %c0_i32 = arith.constant 0 : i32
    %c0_i32_0 = arith.constant 0 : i32
    %c0_i32_1 = arith.constant 0 : i32
    return %arg0, %c0_i32, %c0_i32_0 : i32, i32, i32
  }
  func.func @transform_1(%arg0: i32) -> (i32, i32) {
    %c0_i32 = arith.constant 0 : i32
    %c0_i32_0 = arith.constant 0 : i32
    %c0_i32_1 = arith.constant 0 : i32
    return %c0_i32, %c0_i32_0 : i32, i32
  }
  func.func @transform_2(%arg0: i32) -> (i32, i32) {
    %c0_i32 = arith.constant 0 : i32
    %c0_i32_0 = arith.constant 0 : i32
    %c0_i32_1 = arith.constant 0 : i32
    return %c0_i32, %c0_i32_0 : i32, i32
  }
  func.func @transform_3(%arg0: i32) -> (i32, i32) {
    %c0_i32 = arith.constant 0 : i32
    %c0_i32_0 = arith.constant 0 : i32
    %c0_i32_1 = arith.constant 0 : i32
    return %c0_i32, %c0_i32_0 : i32, i32
  }
  func.func @transform_4(%arg0: i32) -> (i32, i32) {
    %c0_i32 = arith.constant 0 : i32
    %c0_i32_0 = arith.constant 0 : i32
    %c0_i32_1 = arith.constant 0 : i32
    return %c0_i32, %c0_i32_0 : i32, i32
  }
  func.func @transform_5(%arg0: i32) -> (i32, i32) {
    %c0_i32 = arith.constant 0 : i32
    %c0_i32_0 = arith.constant 0 : i32
    %c0_i32_1 = arith.constant 0 : i32
    return %c0_i32, %c0_i32_0 : i32, i32
  }
  func.func @transform_6(%arg0: i32) -> (i32, i32) {
    %c0_i32 = arith.constant 0 : i32
    %c0_i32_0 = arith.constant 0 : i32
    %c0_i32_1 = arith.constant 0 : i32
    return %c0_i32, %c0_i32_0 : i32, i32
  }
  func.func @transform_7(%arg0: i32) -> (i32, i32) {
    %c0_i32 = arith.constant 0 : i32
    %c0_i32_0 = arith.constant 0 : i32
    %c0_i32_1 = arith.constant 0 : i32
    return %c0_i32, %c0_i32_0 : i32, i32
  }
  func.func @transform_8(%arg0: i32) -> (i32, i32) {
    %c0_i32 = arith.constant 0 : i32
    %c0_i32_0 = arith.constant 0 : i32
    %c0_i32_1 = arith.constant 0 : i32
    return %c0_i32, %c0_i32_0 : i32, i32
  }
  func.func @transform_9(%arg0: i32) -> (i32, i32) {
    %c0_i32 = arith.constant 0 : i32
    %c0_i32_0 = arith.constant 0 : i32
    %c0_i32_1 = arith.constant 0 : i32
    return %c0_i32, %c0_i32_0 : i32, i32
  }
  func.func @transform_10(%arg0: i32) -> (i32, i32) {
    %c0_i32 = arith.constant 0 : i32
    %c0_i32_0 = arith.constant 0 : i32
    %c0_i32_1 = arith.constant 0 : i32
    return %c0_i32, %c0_i32_0 : i32, i32
  }
  func.func @transform_11(%arg0: i32) -> (i32, i32, i32) {
    %c0_i32 = arith.constant 0 : i32
    %c0_i32_0 = arith.constant 0 : i32
    %c0_i32_1 = arith.constant 0 : i32
    return %arg0, %c0_i32, %c0_i32_0 : i32, i32, i32
  }
}

module attributes {stable_mosaic.version = 11 : i64} {
  func.func @_modified_block_kernel(%arg0: i32, %arg1: memref<2x16x128xf32, #tpu.memory_space<vmem>>, %arg2: memref<128x384xbf16, #tpu.memory_space<vmem>>, %arg3: memref<1x384xf32, #tpu.memory_space<vmem>>, %arg4: memref<128x128xbf16, #tpu.memory_space<vmem>>, %arg5: memref<1x128xf32, #tpu.memory_space<vmem>>, %arg6: memref<1x128xf32, #tpu.memory_space<vmem>>, %arg7: memref<1x128xf32, #tpu.memory_space<vmem>>, %arg8: memref<128x512xbf16, #tpu.memory_space<vmem>>, %arg9: memref<1x512xf32, #tpu.memory_space<vmem>>, %arg10: memref<512x128xbf16, #tpu.memory_space<vmem>>, %arg11: memref<1x128xf32, #tpu.memory_space<vmem>>, %arg12: memref<2x16x128xf32, #tpu.memory_space<vmem>>) attributes {dimension_semantics = [#tpu.dimension_semantics<parallel>], iteration_bounds = array<i64: 2>, scalar_prefetch = 0 : i64, scratch_operands = 0 : i64, tpu.core_type = #tpu.core_type<tc>, window_params = [{transform_indices = @transform_0, window_bounds = array<i64: 2, 16, 128>}, {pipeline_mode = #tpu.pipeline_mode<synchronous>, transform_indices = @transform_1, window_bounds = array<i64: 128, 384>}, {pipeline_mode = #tpu.pipeline_mode<synchronous>, transform_indices = @transform_2, window_bounds = array<i64: 1, 384>}, {pipeline_mode = #tpu.pipeline_mode<synchronous>, transform_indices = @transform_3, window_bounds = array<i64: 128, 128>}, {pipeline_mode = #tpu.pipeline_mode<synchronous>, transform_indices = @transform_4, window_bounds = array<i64: 1, 128>}, {pipeline_mode = #tpu.pipeline_mode<synchronous>, transform_indices = @transform_5, window_bounds = array<i64: 1, 128>}, {pipeline_mode = #tpu.pipeline_mode<synchronous>, transform_indices = @transform_6, window_bounds = array<i64: 1, 128>}, {pipeline_mode = #tpu.pipeline_mode<synchronous>, transform_indices = @transform_7, window_bounds = array<i64: 128, 512>}, {pipeline_mode = #tpu.pipeline_mode<synchronous>, transform_indices = @transform_8, window_bounds = array<i64: 1, 512>}, {pipeline_mode = #tpu.pipeline_mode<synchronous>, transform_indices = @transform_9, window_bounds = array<i64: 512, 128>}, {pipeline_mode = #tpu.pipeline_mode<synchronous>, transform_indices = @transform_10, window_bounds = array<i64: 1, 128>}, {transform_indices = @transform_11, window_bounds = array<i64: 2, 16, 128>}]} {
    %c0 = arith.constant 0 : index
    %c0_0 = arith.constant 0 : index
    %c0_1 = arith.constant 0 : index
    %0 = vector.load %arg1[%c0, %c0_0, %c0_1] : memref<2x16x128xf32, #tpu.memory_space<vmem>>, vector<2x16x128xf32>
    %1 = arith.truncf %0 : vector<2x16x128xf32> to vector<2x16x128xbf16>
    %2 = vector.shape_cast %1 : vector<2x16x128xbf16> to vector<32x128xbf16>
    %c0_2 = arith.constant 0 : index
    %c0_3 = arith.constant 0 : index
    %3 = vector.load %arg2[%c0_2, %c0_3] : memref<128x384xbf16, #tpu.memory_space<vmem>>, vector<128x384xbf16>
    %cst = arith.constant dense<0.000000e+00> : vector<32x384xf32>
    %4 = tpu.matmul %2, %3, %cst {dimension_numbers = #tpu.dot_dimension_numbers<[1], [0], [0], [1], [0, 0, 1, 1], [], []>} : vector<32x128xbf16>, vector<128x384xbf16>, vector<32x384xf32> -> vector<32x384xf32>
    %c0_4 = arith.constant 0 : index
    %c0_5 = arith.constant 0 : index
    %5 = vector.load %arg3[%c0_4, %c0_5] : memref<1x384xf32, #tpu.memory_space<vmem>>, vector<1x384xf32>
    %6 = vector.broadcast %5 : vector<1x384xf32> to vector<32x384xf32>
    %7 = arith.addf %4, %6 : vector<32x384xf32>
    %8 = vector.extract_strided_slice %7 {offsets = [0, 0], sizes = [32, 128], strides = [1, 1]} : vector<32x384xf32> to vector<32x128xf32>
    %cst_6 = arith.constant 0.176776692 : f32
    %9 = vector.broadcast %cst_6 : f32 to vector<32x128xf32>
    %10 = arith.mulf %8, %9 : vector<32x128xf32>
    %11 = arith.truncf %10 : vector<32x128xf32> to vector<32x128xbf16>
    %12 = vector.extract_strided_slice %7 {offsets = [0, 128], sizes = [32, 128], strides = [1, 1]} : vector<32x384xf32> to vector<32x128xf32>
    %13 = arith.truncf %12 : vector<32x128xf32> to vector<32x128xbf16>
    %14 = vector.extract_strided_slice %7 {offsets = [0, 256], sizes = [32, 128], strides = [1, 1]} : vector<32x384xf32> to vector<32x128xf32>
    %15 = arith.truncf %14 : vector<32x128xf32> to vector<32x128xbf16>
    %16 = vector.extract_strided_slice %11 {offsets = [0, 0], sizes = [32, 32], strides = [1, 1]} : vector<32x128xbf16> to vector<32x32xbf16>
    %17 = vector.shape_cast %16 : vector<32x32xbf16> to vector<2x16x32xbf16>
    %18 = vector.extract_strided_slice %11 {offsets = [0, 32], sizes = [32, 32], strides = [1, 1]} : vector<32x128xbf16> to vector<32x32xbf16>
    %19 = vector.shape_cast %18 : vector<32x32xbf16> to vector<2x16x32xbf16>
    %20 = vector.extract_strided_slice %11 {offsets = [0, 64], sizes = [32, 32], strides = [1, 1]} : vector<32x128xbf16> to vector<32x32xbf16>
    %21 = vector.shape_cast %20 : vector<32x32xbf16> to vector<2x16x32xbf16>
    %22 = vector.extract_strided_slice %11 {offsets = [0, 96], sizes = [32, 32], strides = [1, 1]} : vector<32x128xbf16> to vector<32x32xbf16>
    %23 = vector.shape_cast %22 : vector<32x32xbf16> to vector<2x16x32xbf16>
    %24 = vector.shape_cast %17 : vector<2x16x32xbf16> to vector<2x1x16x32xbf16>
    %25 = vector.shape_cast %19 : vector<2x16x32xbf16> to vector<2x1x16x32xbf16>
    %26 = vector.shape_cast %21 : vector<2x16x32xbf16> to vector<2x1x16x32xbf16>
    %27 = vector.shape_cast %23 : vector<2x16x32xbf16> to vector<2x1x16x32xbf16>
    %28 = tpu.concatenate %24, %25, %26, %27 in 1 : vector<2x1x16x32xbf16>, vector<2x1x16x32xbf16>, vector<2x1x16x32xbf16>, vector<2x1x16x32xbf16> -> vector<2x4x16x32xbf16>
    %29 = vector.shape_cast %28 : vector<2x4x16x32xbf16> to vector<8x16x32xbf16>
    %30 = vector.extract_strided_slice %13 {offsets = [0, 0], sizes = [32, 32], strides = [1, 1]} : vector<32x128xbf16> to vector<32x32xbf16>
    %31 = vector.shape_cast %30 : vector<32x32xbf16> to vector<2x16x32xbf16>
    %32 = vector.extract_strided_slice %13 {offsets = [0, 32], sizes = [32, 32], strides = [1, 1]} : vector<32x128xbf16> to vector<32x32xbf16>
    %33 = vector.shape_cast %32 : vector<32x32xbf16> to vector<2x16x32xbf16>
    %34 = vector.extract_strided_slice %13 {offsets = [0, 64], sizes = [32, 32], strides = [1, 1]} : vector<32x128xbf16> to vector<32x32xbf16>
    %35 = vector.shape_cast %34 : vector<32x32xbf16> to vector<2x16x32xbf16>
    %36 = vector.extract_strided_slice %13 {offsets = [0, 96], sizes = [32, 32], strides = [1, 1]} : vector<32x128xbf16> to vector<32x32xbf16>
    %37 = vector.shape_cast %36 : vector<32x32xbf16> to vector<2x16x32xbf16>
    %38 = vector.shape_cast %31 : vector<2x16x32xbf16> to vector<2x1x16x32xbf16>
    %39 = vector.shape_cast %33 : vector<2x16x32xbf16> to vector<2x1x16x32xbf16>
    %40 = vector.shape_cast %35 : vector<2x16x32xbf16> to vector<2x1x16x32xbf16>
    %41 = vector.shape_cast %37 : vector<2x16x32xbf16> to vector<2x1x16x32xbf16>
    %42 = tpu.concatenate %38, %39, %40, %41 in 1 : vector<2x1x16x32xbf16>, vector<2x1x16x32xbf16>, vector<2x1x16x32xbf16>, vector<2x1x16x32xbf16> -> vector<2x4x16x32xbf16>
    %43 = vector.shape_cast %42 : vector<2x4x16x32xbf16> to vector<8x16x32xbf16>
    %44 = vector.extract_strided_slice %15 {offsets = [0, 0], sizes = [32, 32], strides = [1, 1]} : vector<32x128xbf16> to vector<32x32xbf16>
    %45 = vector.shape_cast %44 : vector<32x32xbf16> to vector<2x16x32xbf16>
    %46 = vector.extract_strided_slice %15 {offsets = [0, 32], sizes = [32, 32], strides = [1, 1]} : vector<32x128xbf16> to vector<32x32xbf16>
    %47 = vector.shape_cast %46 : vector<32x32xbf16> to vector<2x16x32xbf16>
    %48 = vector.extract_strided_slice %15 {offsets = [0, 64], sizes = [32, 32], strides = [1, 1]} : vector<32x128xbf16> to vector<32x32xbf16>
    %49 = vector.shape_cast %48 : vector<32x32xbf16> to vector<2x16x32xbf16>
    %50 = vector.extract_strided_slice %15 {offsets = [0, 96], sizes = [32, 32], strides = [1, 1]} : vector<32x128xbf16> to vector<32x32xbf16>
    %51 = vector.shape_cast %50 : vector<32x32xbf16> to vector<2x16x32xbf16>
    %52 = vector.shape_cast %45 : vector<2x16x32xbf16> to vector<2x1x16x32xbf16>
    %53 = vector.shape_cast %47 : vector<2x16x32xbf16> to vector<2x1x16x32xbf16>
    %54 = vector.shape_cast %49 : vector<2x16x32xbf16> to vector<2x1x16x32xbf16>
    %55 = vector.shape_cast %51 : vector<2x16x32xbf16> to vector<2x1x16x32xbf16>
    %56 = tpu.concatenate %52, %53, %54, %55 in 1 : vector<2x1x16x32xbf16>, vector<2x1x16x32xbf16>, vector<2x1x16x32xbf16>, vector<2x1x16x32xbf16> -> vector<2x4x16x32xbf16>
    %57 = vector.shape_cast %56 : vector<2x4x16x32xbf16> to vector<8x16x32xbf16>
    "tpu.trace_start"() <{level = 10 : i32, message = "bnd,bmd->bnm"}> : () -> ()
    %cst_7 = arith.constant dense<0.000000e+00> : vector<8x16x16xf32>
    %58 = tpu.matmul %29, %43, %cst_7 {dimension_numbers = #tpu.dot_dimension_numbers<[2], [2], [1], [1], [0, 0, 0, 1, 1, 1], [0], [0]>} : vector<8x16x32xbf16>, vector<8x16x32xbf16>, vector<8x16x16xf32> -> vector<8x16x16xf32>
    "tpu.trace_stop"() : () -> ()
    %cst_8 = arith.constant dense<0xFF800000> : vector<8x16xf32>
    %59 = vector.multi_reduction <maximumf>, %58, %cst_8 [2] : vector<8x16x16xf32> to vector<8x16xf32>
    %60 = vector.shape_cast %59 : vector<8x16xf32> to vector<8x16x1xf32>
    %61 = vector.broadcast %60 : vector<8x16x1xf32> to vector<8x16x16xf32>
    %62 = arith.subf %58, %61 : vector<8x16x16xf32>
    %63 = math.exp %62 : vector<8x16x16xf32>
    %cst_9 = arith.constant dense<0.000000e+00> : vector<8x16xf32>
    %64 = vector.multi_reduction <add>, %63, %cst_9 [2] : vector<8x16x16xf32> to vector<8x16xf32>
    %65 = vector.shape_cast %64 : vector<8x16xf32> to vector<8x16x1xf32>
    %66 = tpu.reciprocal %65 {approx = true} : vector<8x16x1xf32> -> vector<8x16x1xf32>
    %67 = vector.broadcast %66 : vector<8x16x1xf32> to vector<8x16x16xf32>
    %68 = arith.mulf %63, %67 : vector<8x16x16xf32>
    %69 = arith.truncf %68 : vector<8x16x16xf32> to vector<8x16x16xbf16>
    "tpu.trace_start"() <{level = 10 : i32, message = "bnm,bmd->bnd"}> : () -> ()
    %cst_10 = arith.constant dense<0.000000e+00> : vector<8x16x32xf32>
    %70 = tpu.matmul %69, %57, %cst_10 {dimension_numbers = #tpu.dot_dimension_numbers<[2], [1], [1], [2], [0, 0, 0, 1, 1, 2], [0], [0]>} : vector<8x16x16xbf16>, vector<8x16x32xbf16>, vector<8x16x32xf32> -> vector<8x16x32xf32>
    "tpu.trace_stop"() : () -> ()
    %71 = vector.shape_cast %70 : vector<8x16x32xf32> to vector<2x4x16x32xf32>
    %72 = arith.truncf %71 : vector<2x4x16x32xf32> to vector<2x4x16x32xbf16>
    %73 = vector.extract_strided_slice %72 {offsets = [0, 0, 0, 0], sizes = [2, 1, 16, 32], strides = [1, 1, 1, 1]} : vector<2x4x16x32xbf16> to vector<2x1x16x32xbf16>
    %74 = vector.shape_cast %73 : vector<2x1x16x32xbf16> to vector<2x16x32xbf16>
    %75 = vector.extract_strided_slice %72 {offsets = [0, 1, 0, 0], sizes = [2, 1, 16, 32], strides = [1, 1, 1, 1]} : vector<2x4x16x32xbf16> to vector<2x1x16x32xbf16>
    %76 = vector.shape_cast %75 : vector<2x1x16x32xbf16> to vector<2x16x32xbf16>
    %77 = vector.extract_strided_slice %72 {offsets = [0, 2, 0, 0], sizes = [2, 1, 16, 32], strides = [1, 1, 1, 1]} : vector<2x4x16x32xbf16> to vector<2x1x16x32xbf16>
    %78 = vector.shape_cast %77 : vector<2x1x16x32xbf16> to vector<2x16x32xbf16>
    %79 = vector.extract_strided_slice %72 {offsets = [0, 3, 0, 0], sizes = [2, 1, 16, 32], strides = [1, 1, 1, 1]} : vector<2x4x16x32xbf16> to vector<2x1x16x32xbf16>
    %80 = vector.shape_cast %79 : vector<2x1x16x32xbf16> to vector<2x16x32xbf16>
    %81 = tpu.concatenate %74, %76, %78, %80 in 2 : vector<2x16x32xbf16>, vector<2x16x32xbf16>, vector<2x16x32xbf16>, vector<2x16x32xbf16> -> vector<2x16x128xbf16>
    %82 = vector.shape_cast %81 : vector<2x16x128xbf16> to vector<32x128xbf16>
    %c0_11 = arith.constant 0 : index
    %c0_12 = arith.constant 0 : index
    %83 = vector.load %arg4[%c0_11, %c0_12] : memref<128x128xbf16, #tpu.memory_space<vmem>>, vector<128x128xbf16>
    %cst_13 = arith.constant dense<0.000000e+00> : vector<32x128xf32>
    %84 = tpu.matmul %82, %83, %cst_13 {dimension_numbers = #tpu.dot_dimension_numbers<[1], [0], [0], [1], [0, 0, 1, 1], [], []>} : vector<32x128xbf16>, vector<128x128xbf16>, vector<32x128xf32> -> vector<32x128xf32>
    %c0_14 = arith.constant 0 : index
    %c0_15 = arith.constant 0 : index
    %85 = vector.load %arg5[%c0_14, %c0_15] : memref<1x128xf32, #tpu.memory_space<vmem>>, vector<1x128xf32>
    %86 = vector.broadcast %85 : vector<1x128xf32> to vector<32x128xf32>
    %87 = arith.addf %84, %86 : vector<32x128xf32>
    %cst_16 = arith.constant dense<0.000000e+00> : vector<32xf32>
    %88 = vector.multi_reduction <add>, %87, %cst_16 [1] : vector<32x128xf32> to vector<32xf32>
    %89 = vector.shape_cast %88 : vector<32xf32> to vector<32x1xf32>
    %cst_17 = arith.constant 1.280000e+02 : f32
    %90 = vector.broadcast %cst_17 : f32 to vector<32x1xf32>
    %91 = arith.divf %89, %90 : vector<32x1xf32>
    %92 = vector.broadcast %91 : vector<32x1xf32> to vector<32x128xf32>
    %93 = arith.subf %87, %92 : vector<32x128xf32>
    %94 = arith.mulf %93, %93 : vector<32x128xf32>
    %cst_18 = arith.constant dense<0.000000e+00> : vector<32xf32>
    %95 = vector.multi_reduction <add>, %94, %cst_18 [1] : vector<32x128xf32> to vector<32xf32>
    %96 = vector.shape_cast %95 : vector<32xf32> to vector<32x1xf32>
    %cst_19 = arith.constant 1.280000e+02 : f32
    %97 = vector.broadcast %cst_19 : f32 to vector<32x1xf32>
    %98 = arith.divf %96, %97 : vector<32x1xf32>
    %99 = vector.broadcast %91 : vector<32x1xf32> to vector<32x128xf32>
    %100 = arith.subf %87, %99 : vector<32x128xf32>
    %cst_20 = arith.constant 9.99999997E-7 : f32
    %101 = vector.broadcast %cst_20 : f32 to vector<32x1xf32>
    %102 = arith.addf %98, %101 : vector<32x1xf32>
    %103 = math.rsqrt %102 : vector<32x1xf32>
    %104 = vector.broadcast %103 : vector<32x1xf32> to vector<32x128xf32>
    %105 = arith.mulf %100, %104 : vector<32x128xf32>
    %c0_21 = arith.constant 0 : index
    %c0_22 = arith.constant 0 : index
    %106 = vector.load %arg6[%c0_21, %c0_22] : memref<1x128xf32, #tpu.memory_space<vmem>>, vector<1x128xf32>
    %107 = vector.broadcast %106 : vector<1x128xf32> to vector<32x128xf32>
    %108 = arith.mulf %105, %107 : vector<32x128xf32>
    %c0_23 = arith.constant 0 : index
    %c0_24 = arith.constant 0 : index
    %109 = vector.load %arg7[%c0_23, %c0_24] : memref<1x128xf32, #tpu.memory_space<vmem>>, vector<1x128xf32>
    %110 = vector.broadcast %109 : vector<1x128xf32> to vector<32x128xf32>
    %111 = arith.addf %108, %110 : vector<32x128xf32>
    %112 = arith.truncf %111 : vector<32x128xf32> to vector<32x128xbf16>
    %c0_25 = arith.constant 0 : index
    %c0_26 = arith.constant 0 : index
    %113 = vector.load %arg8[%c0_25, %c0_26] : memref<128x512xbf16, #tpu.memory_space<vmem>>, vector<128x512xbf16>
    %cst_27 = arith.constant dense<0.000000e+00> : vector<32x512xf32>
    %114 = tpu.matmul %112, %113, %cst_27 {dimension_numbers = #tpu.dot_dimension_numbers<[1], [0], [0], [1], [0, 0, 1, 1], [], []>} : vector<32x128xbf16>, vector<128x512xbf16>, vector<32x512xf32> -> vector<32x512xf32>
    %c0_28 = arith.constant 0 : index
    %c0_29 = arith.constant 0 : index
    %115 = vector.load %arg9[%c0_28, %c0_29] : memref<1x512xf32, #tpu.memory_space<vmem>>, vector<1x512xf32>
    %116 = vector.broadcast %115 : vector<1x512xf32> to vector<32x512xf32>
    %117 = arith.addf %114, %116 : vector<32x512xf32>
    %118 = arith.mulf %117, %117 : vector<32x512xf32>
    %119 = arith.mulf %117, %118 : vector<32x512xf32>
    %cst_30 = arith.constant 4.471500e-02 : f32
    %120 = vector.broadcast %cst_30 : f32 to vector<32x512xf32>
    %121 = arith.mulf %120, %119 : vector<32x512xf32>
    %122 = arith.addf %117, %121 : vector<32x512xf32>
    %cst_31 = arith.constant 0.797884583 : f32
    %123 = vector.broadcast %cst_31 : f32 to vector<32x512xf32>
    %124 = arith.mulf %123, %122 : vector<32x512xf32>
    %125 = math.tanh %124 : vector<32x512xf32>
    %cst_32 = arith.constant 1.000000e+00 : f32
    %126 = vector.broadcast %cst_32 : f32 to vector<32x512xf32>
    %127 = arith.addf %126, %125 : vector<32x512xf32>
    %cst_33 = arith.constant 5.000000e-01 : f32
    %128 = vector.broadcast %cst_33 : f32 to vector<32x512xf32>
    %129 = arith.mulf %128, %127 : vector<32x512xf32>
    %130 = arith.mulf %117, %129 : vector<32x512xf32>
    %131 = arith.truncf %130 : vector<32x512xf32> to vector<32x512xbf16>
    %c0_34 = arith.constant 0 : index
    %c0_35 = arith.constant 0 : index
    %132 = vector.load %arg10[%c0_34, %c0_35] : memref<512x128xbf16, #tpu.memory_space<vmem>>, vector<512x128xbf16>
    %cst_36 = arith.constant dense<0.000000e+00> : vector<32x128xf32>
    %133 = tpu.matmul %131, %132, %cst_36 {dimension_numbers = #tpu.dot_dimension_numbers<[1], [0], [0], [1], [0, 0, 1, 1], [], []>} : vector<32x512xbf16>, vector<512x128xbf16>, vector<32x128xf32> -> vector<32x128xf32>
    %c0_37 = arith.constant 0 : index
    %c0_38 = arith.constant 0 : index
    %134 = vector.load %arg11[%c0_37, %c0_38] : memref<1x128xf32, #tpu.memory_space<vmem>>, vector<1x128xf32>
    %135 = vector.broadcast %134 : vector<1x128xf32> to vector<32x128xf32>
    %136 = arith.addf %133, %135 : vector<32x128xf32>
    %137 = vector.shape_cast %136 : vector<32x128xf32> to vector<2x16x128xf32>
    %c0_39 = arith.constant 0 : index
    %c0_40 = arith.constant 0 : index
    %c0_41 = arith.constant 0 : index
    %138 = vector.load %arg12[%c0_39, %c0_40, %c0_41] : memref<2x16x128xf32, #tpu.memory_space<vmem>>, vector<2x16x128xf32>
    tpu.vector_store %arg12[%c0_39, %c0_40, %c0_41], %137 {strides = array<i32>} : memref<2x16x128xf32, #tpu.memory_space<vmem>>, vector<2x16x128xf32>,
    return
  }
  func.func @transform_0(%arg0: i32) -> (i32, i32, i32) {
    %c0_i32 = arith.constant 0 : i32
    %c0_i32_0 = arith.constant 0 : i32
    %c0_i32_1 = arith.constant 0 : i32
    return %arg0, %c0_i32, %c0_i32_0 : i32, i32, i32
  }
  func.func @transform_1(%arg0: i32) -> (i32, i32) {
    %c0_i32 = arith.constant 0 : i32
    %c0_i32_0 = arith.constant 0 : i32
    %c0_i32_1 = arith.constant 0 : i32
    return %c0_i32, %c0_i32_0 : i32, i32
  }
  func.func @transform_2(%arg0: i32) -> (i32, i32) {
    %c0_i32 = arith.constant 0 : i32
    %c0_i32_0 = arith.constant 0 : i32
    %c0_i32_1 = arith.constant 0 : i32
    return %c0_i32, %c0_i32_0 : i32, i32
  }
  func.func @transform_3(%arg0: i32) -> (i32, i32) {
    %c0_i32 = arith.constant 0 : i32
    %c0_i32_0 = arith.constant 0 : i32
    %c0_i32_1 = arith.constant 0 : i32
    return %c0_i32, %c0_i32_0 : i32, i32
  }
  func.func @transform_4(%arg0: i32) -> (i32, i32) {
    %c0_i32 = arith.constant 0 : i32
    %c0_i32_0 = arith.constant 0 : i32
    %c0_i32_1 = arith.constant 0 : i32
    return %c0_i32, %c0_i32_0 : i32, i32
  }
  func.func @transform_5(%arg0: i32) -> (i32, i32) {
    %c0_i32 = arith.constant 0 : i32
    %c0_i32_0 = arith.constant 0 : i32
    %c0_i32_1 = arith.constant 0 : i32
    return %c0_i32, %c0_i32_0 : i32, i32
  }
  func.func @transform_6(%arg0: i32) -> (i32, i32) {
    %c0_i32 = arith.constant 0 : i32
    %c0_i32_0 = arith.constant 0 : i32
    %c0_i32_1 = arith.constant 0 : i32
    return %c0_i32, %c0_i32_0 : i32, i32
  }
  func.func @transform_7(%arg0: i32) -> (i32, i32) {
    %c0_i32 = arith.constant 0 : i32
    %c0_i32_0 = arith.constant 0 : i32
    %c0_i32_1 = arith.constant 0 : i32
    return %c0_i32, %c0_i32_0 : i32, i32
  }
  func.func @transform_8(%arg0: i32) -> (i32, i32) {
    %c0_i32 = arith.constant 0 : i32
    %c0_i32_0 = arith.constant 0 : i32
    %c0_i32_1 = arith.constant 0 : i32
    return %c0_i32, %c0_i32_0 : i32, i32
  }
  func.func @transform_9(%arg0: i32) -> (i32, i32) {
    %c0_i32 = arith.constant 0 : i32
    %c0_i32_0 = arith.constant 0 : i32
    %c0_i32_1 = arith.constant 0 : i32
    return %c0_i32, %c0_i32_0 : i32, i32
  }
  func.func @transform_10(%arg0: i32) -> (i32, i32) {
    %c0_i32 = arith.constant 0 : i32
    %c0_i32_0 = arith.constant 0 : i32
    %c0_i32_1 = arith.constant 0 : i32
    return %c0_i32, %c0_i32_0 : i32, i32
  }
  func.func @transform_11(%arg0: i32) -> (i32, i32, i32) {
    %c0_i32 = arith.constant 0 : i32
    %c0_i32_0 = arith.constant 0 : i32
    %c0_i32_1 = arith.constant 0 : i32
    return %arg0, %c0_i32, %c0_i32_0 : i32, i32, i32
  }
}

</mosaic_0001>

<llo_original>
// kernel: tpu_custom_call.1
$region0: #{tpu_custom_call.1}
  #allocation0 [shape = 'u32[]', space=smem, size = 0x4, offset = 0x4, fixed_abs, tag = 'smem constant byte address 0x4 - core index']
  #allocation1 [shape = 'u32[144,128]{1,0:T(1,128)}', space=vmem, size = 0x12000, scoped, tag = 'internal scratch']
  %s0 = inlined_call_operand.hbm [shape: f32[4,16,128], index: 0, kind: input, shape index: {}]
  %s1 = inlined_call_operand.hbm [shape: bf16[128,384], index: 1, kind: input, shape index: {}]
  %s2 = inlined_call_operand.vmem [shape: f32[1,384], index: 2, kind: input, shape index: {}]
  %s3 = inlined_call_operand.hbm [shape: bf16[128,128], index: 3, kind: input, shape index: {}]
  %s4 = inlined_call_operand.vmem [shape: f32[1,128], index: 4, kind: input, shape index: {}]
  %s5 = inlined_call_operand.vmem [shape: f32[1,128], index: 5, kind: input, shape index: {}]
  %s6 = inlined_call_operand.vmem [shape: f32[1,128], index: 6, kind: input, shape index: {}]
  %s7 = inlined_call_operand.hbm [shape: bf16[128,512], index: 7, kind: input, shape index: {}]
  %s8 = inlined_call_operand.vmem [shape: f32[1,512], index: 8, kind: input, shape index: {}]
  %s9 = inlined_call_operand.hbm [shape: bf16[512,128], index: 9, kind: input, shape index: {}]
  %s10 = inlined_call_operand.vmem [shape: f32[1,128], index: 10, kind: input, shape index: {}]
  %s11 = inlined_call_operand.hbm [shape: f32[4,16,128], index: 11, kind: output, shape index: {}]
  %s12 = sld [smem:[#allocation0]]
  $region97: #{tpu_custom_call.1} parent=0
    _
  %s14 = ssub.s32 1, %s12
  %s15 = scalar_select 0, %s14, %s12
  $region1: #{tpu_custom_call.1} parent=0
    #allocation2 [shape = 'u8[32768]{0}', space=vmem, size = 0x8000, scoped, tag = 'input window, operand 0']
    #allocation3 [shape = 's32[2]{0}', space=sflag, size = 0x8, scoped, tag = 'scoped memory for tpu_custom_call.1']
    #allocation4 [shape = 's32[2]{0}', space=sflag, size = 0x8, scoped, tag = 'scoped memory for tpu_custom_call.1']
    #allocation5 [shape = 'u8[98304]{0}', space=vmem, size = 0x18000, scoped, tag = 'input window, operand 1, single buffered']
    #allocation6 [shape = 's32[1]{0}', space=sflag, size = 0x4, scoped, tag = 'scoped memory for tpu_custom_call.1']
    #allocation7 [shape = 'u8[32768]{0}', space=vmem, size = 0x8000, scoped, tag = 'input window, operand 3, single buffered']
    #allocation8 [shape = 'u8[131072]{0}', space=vmem, size = 0x20000, scoped, tag = 'input window, operand 7, single buffered']
    #allocation9 [shape = 's32[1]{0}', space=sflag, size = 0x4, scoped, tag = 'scoped memory for tpu_custom_call.1']
    #allocation10 [shape = 'u8[131072]{0}', space=vmem, size = 0x20000, scoped, tag = 'input window, operand 9, single buffered']
    #allocation11 [shape = 'u8[32768]{0}', space=vmem, size = 0x8000, scoped, tag = 'output window, operand 0']
    %16 = vsyncpa [#allocation3], 0
    %s17 = scalar_lea.sflag [#allocation3], 1
    %18 = vsyncpa %s17, 0
    %19 = vsyncpa [#allocation6], 0
    %20 = vsyncpa [#allocation9], 0
    %21 = vsyncpa [#allocation4], 0
    %s22 = scalar_lea.sflag [#allocation4], 1
    %23 = vsyncpa %s22, 0
    loop: start=0, step=1, limit=4
    $region2: #{tpu_custom_call.1} parent=1 // loop_pre_header
      _
    $region3: #{tpu_custom_call.1} parent=1 // loop_header
      %s25 = sphi 0, %s29
      %p26 = scmp.ge.s32.totalorder %s25, 4
      %s35 = sphi 0, %s37
      %s38 = sphi 0, %s35
      %s39 = sphi 0, %s38
      %s55 = sphi 0, %s39
      %s59 = sphi 0, %s59
      %s61 = sphi 0, %s59
      %s62 = sphi 0, %s61
      %s76 = sphi 0, %s62
      %s80 = sphi 0, %s80
      %s82 = sphi 0, %s80
      %s83 = sphi 0, %s82
      %s97 = sphi 0, %s83
      %s101 = sphi 0, %s101
      %s103 = sphi 0, %s101
      %s104 = sphi 0, %s103
      %s118 = sphi 0, %s104
      %s122 = sphi 0, %s122
      %s124 = sphi 0, %s122
      %s125 = sphi 0, %s124
      %s139 = sphi 0, %s125
      %s143 = sphi 0, %s143
      %s145 = sphi 0, %s143
      %s146 = sphi 0, %s145
      %s160 = sphi 0, %s146
      %s164 = sphi 0, %s164
      %s166 = sphi 0, %s164
      %s167 = sphi 0, %s166
      %s181 = sphi 0, %s167
      %s185 = sphi 0, %s185
      %s187 = sphi 0, %s185
      %s188 = sphi 0, %s187
      %s202 = sphi 0, %s188
      %s206 = sphi 0, %s206
      %s208 = sphi 0, %s206
      %s209 = sphi 0, %s208
      %s223 = sphi 0, %s209
      %s227 = sphi 0, %s227
      %s229 = sphi 0, %s227
      %s230 = sphi 0, %s229
      %s244 = sphi 0, %s230
      %s248 = sphi 0, %s248
      %s250 = sphi 0, %s248
      %s251 = sphi 0, %s250
      %s265 = sphi 0, %s251
      %s271 = sphi 0, %s273
      %s274 = sphi 0, %s271
      %s275 = sphi 0, %s274
      %s291 = sphi 0, %s275
    $region4: #{tpu_custom_call.1} parent=1 // loop_header_branch
      %28 = sbr.rel (%p26) target = $region8
    $region5: #{tpu_custom_call.1} parent=1 // loop_body
      %s30 = ssub.s32 %s25, 1
      %s31 = ssub.s32 %s25, 2
      %s32 = sadd.s32 %s25, 1
      %s33 = ssub.s32 %s25, %s32
      %p34 = scmp.eq.s32.totalorder %s33, 0
      %s36 = sadd.s32 %s35, 1
      %s37 = scalar_select %p34, %s35, %s36
      %p40 = pneg %p34
      %p41 = scmp.eq.s32.totalorder %s25, 1
      %p42 = por %p40, %p41
      %p43 = scmp.ne.s32.totalorder %s35, %s38
      %p44 = scmp.eq.s32.totalorder %s25, 0
      %p45 = por %p43, %p44
      %p46 = scmp.ne.s32.totalorder %s35, %s38
      %p47 = scmp.eq.s32.totalorder %s30, 1
      %p48 = por %p46, %p47
      %p49 = scmp.ne.s32.totalorder %s38, %s39
      %p50 = scmp.eq.s32.totalorder %s30, 0
      %p51 = por %p49, %p50
      %p52 = scmp.ne.s32.totalorder %s38, %s39
      %p53 = scmp.eq.s32.totalorder %s31, 1
      %p54 = por %p52, %p53
      %p56 = scmp.ne.s32.totalorder %s39, %s55
      %p57 = scmp.eq.s32.totalorder %s31, 0
      %p58 = por %p56, %p57
      %s60 = sadd.s32 %s59, 1
      %p63 = scmp.eq.s32.totalorder %s25, 1
      %p64 = scmp.ne.s32.totalorder %s59, %s61
      %p65 = scmp.eq.s32.totalorder %s25, 0
      %p66 = por %p64, %p65
      %p67 = scmp.ne.s32.totalorder %s59, %s61
      %p68 = scmp.eq.s32.totalorder %s30, 1
      %p69 = por %p67, %p68
      %p70 = scmp.ne.s32.totalorder %s61, %s62
      %p71 = scmp.eq.s32.totalorder %s30, 0
      %p72 = por %p70, %p71
      %p73 = scmp.ne.s32.totalorder %s61, %s62
      %p74 = scmp.eq.s32.totalorder %s31, 1
      %p75 = por %p73, %p74
      %p77 = scmp.ne.s32.totalorder %s62, %s76
      %p78 = scmp.eq.s32.totalorder %s31, 0
      %p79 = por %p77, %p78
      %s81 = sadd.s32 %s80, 1
      %p84 = scmp.eq.s32.totalorder %s25, 1
      %p85 = scmp.ne.s32.totalorder %s80, %s82
      %p86 = scmp.eq.s32.totalorder %s25, 0
      %p87 = por %p85, %p86
      %p88 = scmp.ne.s32.totalorder %s80, %s82
      %p89 = scmp.eq.s32.totalorder %s30, 1
      %p90 = por %p88, %p89
      %p91 = scmp.ne.s32.totalorder %s82, %s83
      %p92 = scmp.eq.s32.totalorder %s30, 0
      %p93 = por %p91, %p92
      %p94 = scmp.ne.s32.totalorder %s82, %s83
      %p95 = scmp.eq.s32.totalorder %s31, 1
      %p96 = por %p94, %p95
      %p98 = scmp.ne.s32.totalorder %s83, %s97
      %p99 = scmp.eq.s32.totalorder %s31, 0
      %p100 = por %p98, %p99
      %s102 = sadd.s32 %s101, 1
      %p105 = scmp.eq.s32.totalorder %s25, 1
      %p106 = scmp.ne.s32.totalorder %s101, %s103
      %p107 = scmp.eq.s32.totalorder %s25, 0
      %p108 = por %p106, %p107
      %p109 = scmp.ne.s32.totalorder %s101, %s103
      %p110 = scmp.eq.s32.totalorder %s30, 1
      %p111 = por %p109, %p110
      %p112 = scmp.ne.s32.totalorder %s103, %s104
      %p113 = scmp.eq.s32.totalorder %s30, 0
      %p114 = por %p112, %p113
      %p115 = scmp.ne.s32.totalorder %s103, %s104
      %p116 = scmp.eq.s32.totalorder %s31, 1
      %p117 = por %p115, %p116
      %p119 = scmp.ne.s32.totalorder %s104, %s118
      %p120 = scmp.eq.s32.totalorder %s31, 0
      %p121 = por %p119, %p120
      %s123 = sadd.s32 %s122, 1
      %p126 = scmp.eq.s32.totalorder %s25, 1
      %p127 = scmp.ne.s32.totalorder %s122, %s124
      %p128 = scmp.eq.s32.totalorder %s25, 0
      %p129 = por %p127, %p128
      %p130 = scmp.ne.s32.totalorder %s122, %s124
      %p131 = scmp.eq.s32.totalorder %s30, 1
      %p132 = por %p130, %p131
      %p133 = scmp.ne.s32.totalorder %s124, %s125
      %p134 = scmp.eq.s32.totalorder %s30, 0
      %p135 = por %p133, %p134
      %p136 = scmp.ne.s32.totalorder %s124, %s125
      %p137 = scmp.eq.s32.totalorder %s31, 1
      %p138 = por %p136, %p137
      %p140 = scmp.ne.s32.totalorder %s125, %s139
      %p141 = scmp.eq.s32.totalorder %s31, 0
      %p142 = por %p140, %p141
      %s144 = sadd.s32 %s143, 1
      %p147 = scmp.eq.s32.totalorder %s25, 1
      %p148 = scmp.ne.s32.totalorder %s143, %s145
      %p149 = scmp.eq.s32.totalorder %s25, 0
      %p150 = por %p148, %p149
      %p151 = scmp.ne.s32.totalorder %s143, %s145
      %p152 = scmp.eq.s32.totalorder %s30, 1
      %p153 = por %p151, %p152
      %p154 = scmp.ne.s32.totalorder %s145, %s146
      %p155 = scmp.eq.s32.totalorder %s30, 0
      %p156 = por %p154, %p155
      %p157 = scmp.ne.s32.totalorder %s145, %s146
      %p158 = scmp.eq.s32.totalorder %s31, 1
      %p159 = por %p157, %p158
      %p161 = scmp.ne.s32.totalorder %s146, %s160
      %p162 = scmp.eq.s32.totalorder %s31, 0
      %p163 = por %p161, %p162
      %s165 = sadd.s32 %s164, 1
      %p168 = scmp.eq.s32.totalorder %s25, 1
      %p169 = scmp.ne.s32.totalorder %s164, %s166
      %p170 = scmp.eq.s32.totalorder %s25, 0
      %p171 = por %p169, %p170
      %p172 = scmp.ne.s32.totalorder %s164, %s166
      %p173 = scmp.eq.s32.totalorder %s30, 1
      %p174 = por %p172, %p173
      %p175 = scmp.ne.s32.totalorder %s166, %s167
      %p176 = scmp.eq.s32.totalorder %s30, 0
      %p177 = por %p175, %p176
      %p178 = scmp.ne.s32.totalorder %s166, %s167
      %p179 = scmp.eq.s32.totalorder %s31, 1
      %p180 = por %p178, %p179
      %p182 = scmp.ne.s32.totalorder %s167, %s181
      %p183 = scmp.eq.s32.totalorder %s31, 0
      %p184 = por %p182, %p183
      %s186 = sadd.s32 %s185, 1
      %p189 = scmp.eq.s32.totalorder %s25, 1
      %p190 = scmp.ne.s32.totalorder %s185, %s187
      %p191 = scmp.eq.s32.totalorder %s25, 0
      %p192 = por %p190, %p191
      %p193 = scmp.ne.s32.totalorder %s185, %s187
      %p194 = scmp.eq.s32.totalorder %s30, 1
      %p195 = por %p193, %p194
      %p196 = scmp.ne.s32.totalorder %s187, %s188
      %p197 = scmp.eq.s32.totalorder %s30, 0
      %p198 = por %p196, %p197
      %p199 = scmp.ne.s32.totalorder %s187, %s188
      %p200 = scmp.eq.s32.totalorder %s31, 1
      %p201 = por %p199, %p200
      %p203 = scmp.ne.s32.totalorder %s188, %s202
      %p204 = scmp.eq.s32.totalorder %s31, 0
      %p205 = por %p203, %p204
      %s207 = sadd.s32 %s206, 1
      %p210 = scmp.eq.s32.totalorder %s25, 1
      %p211 = scmp.ne.s32.totalorder %s206, %s208
      %p212 = scmp.eq.s32.totalorder %s25, 0
      %p213 = por %p211, %p212
      %p214 = scmp.ne.s32.totalorder %s206, %s208
      %p215 = scmp.eq.s32.totalorder %s30, 1
      %p216 = por %p214, %p215
      %p217 = scmp.ne.s32.totalorder %s208, %s209
      %p218 = scmp.eq.s32.totalorder %s30, 0
      %p219 = por %p217, %p218
      %p220 = scmp.ne.s32.totalorder %s208, %s209
      %p221 = scmp.eq.s32.totalorder %s31, 1
      %p222 = por %p220, %p221
      %p224 = scmp.ne.s32.totalorder %s209, %s223
      %p225 = scmp.eq.s32.totalorder %s31, 0
      %p226 = por %p224, %p225
      %s228 = sadd.s32 %s227, 1
      %p231 = scmp.eq.s32.totalorder %s25, 1
      %p232 = scmp.ne.s32.totalorder %s227, %s229
      %p233 = scmp.eq.s32.totalorder %s25, 0
      %p234 = por %p232, %p233
      %p235 = scmp.ne.s32.totalorder %s227, %s229
      %p236 = scmp.eq.s32.totalorder %s30, 1
      %p237 = por %p235, %p236
      %p238 = scmp.ne.s32.totalorder %s229, %s230
      %p239 = scmp.eq.s32.totalorder %s30, 0
      %p240 = por %p238, %p239
      %p241 = scmp.ne.s32.totalorder %s229, %s230
      %p242 = scmp.eq.s32.totalorder %s31, 1
      %p243 = por %p241, %p242
      %p245 = scmp.ne.s32.totalorder %s230, %s244
      %p246 = scmp.eq.s32.totalorder %s31, 0
      %p247 = por %p245, %p246
      %s249 = sadd.s32 %s248, 1
      %p252 = scmp.eq.s32.totalorder %s25, 1
      %p253 = scmp.ne.s32.totalorder %s248, %s250
      %p254 = scmp.eq.s32.totalorder %s25, 0
      %p255 = por %p253, %p254
      %p256 = scmp.ne.s32.totalorder %s248, %s250
      %p257 = scmp.eq.s32.totalorder %s30, 1
      %p258 = por %p256, %p257
      %p259 = scmp.ne.s32.totalorder %s250, %s251
      %p260 = scmp.eq.s32.totalorder %s30, 0
      %p261 = por %p259, %p260
      %p262 = scmp.ne.s32.totalorder %s250, %s251
      %p263 = scmp.eq.s32.totalorder %s31, 1
      %p264 = por %p262, %p263
      %p266 = scmp.ne.s32.totalorder %s251, %s265
      %p267 = scmp.eq.s32.totalorder %s31, 0
      %p268 = por %p266, %p267
      %s269 = ssub.s32 %s25, %s32
      %p270 = scmp.eq.s32.totalorder %s269, 0
      %s272 = sadd.s32 %s271, 1
      %s273 = scalar_select %p270, %s271, %s272
      %p276 = pneg %p270
      %p277 = scmp.eq.s32.totalorder %s25, 1
      %p278 = por %p276, %p277
      %p279 = scmp.ne.s32.totalorder %s271, %s274
      %p280 = scmp.eq.s32.totalorder %s25, 0
      %p281 = por %p279, %p280
      %p282 = scmp.ne.s32.totalorder %s271, %s274
      %p283 = scmp.eq.s32.totalorder %s30, 1
      %p284 = por %p282, %p283
      %p285 = scmp.ne.s32.totalorder %s274, %s275
      %p286 = scmp.eq.s32.totalorder %s30, 0
      %p287 = por %p285, %p286
      %p288 = scmp.ne.s32.totalorder %s274, %s275
      %p289 = scmp.eq.s32.totalorder %s31, 1
      %p290 = por %p288, %p289
      %p292 = scmp.ne.s32.totalorder %s275, %s291
      %p293 = scmp.eq.s32.totalorder %s31, 0
      %p294 = por %p292, %p293
      %p295 = scmp.le.s32.totalorder 1, %s25
      %p296 = scmp.lt.s32.totalorder %s25, 3
      %p297 = pnand %p295, %p296
      %p298 = pneg %p297
      // Predicated region
      $region9: #{tpu_custom_call.1} parent=5 // pred_check
        _
      $region10: #{tpu_custom_call.1} parent=5 // pred_check_branch
        %300 = sbr.rel (%p297) target = $region12
      $region11: #{tpu_custom_call.1} parent=5 // pred_region
        %s301 = ssub.s32 %s25, 1
        // Predicated region
        $region13: #{tpu_custom_call.1} parent=11 // pred_check
          %p302 = pneg %p72
        $region14: #{tpu_custom_call.1} parent=11 // pred_check_branch
          %304 = sbr.rel (%p302) target = $region16
        $region15: #{tpu_custom_call.1} parent=11 // pred_region
          %s306 = ssub.s32 3072, 3072
          %307 = vsyncadd [#allocation6], %s306
          %s308 = sshll.u32 [#allocation5], 4
          %s309 = int_to_ptr.vmem [resolvable:$true] %s308
          %314 = dma.hbm_to_vmem [thread:$0]  %s1, 3072, %s309, [#allocation6], 192, 192, 12
        $region16: #{tpu_custom_call.1} parent=11 // pred_fallthru
          _
        // Predicated region
        $region17: #{tpu_custom_call.1} parent=11 // pred_check
          %p315 = pneg %p93
        $region18: #{tpu_custom_call.1} parent=11 // pred_check_branch
          %317 = sbr.rel (%p315) target = $region20
        $region19: #{tpu_custom_call.1} parent=11 // pred_region
          _
        $region20: #{tpu_custom_call.1} parent=11 // pred_fallthru
          _
        // Predicated region
        $region21: #{tpu_custom_call.1} parent=11 // pred_check
          %p318 = pneg %p114
        $region22: #{tpu_custom_call.1} parent=11 // pred_check_branch
          %320 = sbr.rel (%p318) target = $region24
        $region23: #{tpu_custom_call.1} parent=11 // pred_region
          %s322 = ssub.s32 1024, 1024
          %323 = vsyncadd [#allocation6], %s322
          %s324 = sshll.u32 [#allocation7], 4
          %s325 = int_to_ptr.vmem [resolvable:$true] %s324
          %330 = dma.hbm_to_vmem [thread:$0]  %s3, 1024, %s325, [#allocation6], 64, 64, 4
        $region24: #{tpu_custom_call.1} parent=11 // pred_fallthru
          _
        // Predicated region
        $region25: #{tpu_custom_call.1} parent=11 // pred_check
          %p331 = pneg %p135
        $region26: #{tpu_custom_call.1} parent=11 // pred_check_branch
          %333 = sbr.rel (%p331) target = $region28
        $region27: #{tpu_custom_call.1} parent=11 // pred_region
          _
        $region28: #{tpu_custom_call.1} parent=11 // pred_fallthru
          _
        // Predicated region
        $region29: #{tpu_custom_call.1} parent=11 // pred_check
          %p334 = pneg %p156
        $region30: #{tpu_custom_call.1} parent=11 // pred_check_branch
          %336 = sbr.rel (%p334) target = $region32
        $region31: #{tpu_custom_call.1} parent=11 // pred_region
          _
        $region32: #{tpu_custom_call.1} parent=11 // pred_fallthru
          _
        // Predicated region
        $region33: #{tpu_custom_call.1} parent=11 // pred_check
          %p337 = pneg %p177
        $region34: #{tpu_custom_call.1} parent=11 // pred_check_branch
          %339 = sbr.rel (%p337) target = $region36
        $region35: #{tpu_custom_call.1} parent=11 // pred_region
          _
        $region36: #{tpu_custom_call.1} parent=11 // pred_fallthru
          _
        // Predicated region
        $region37: #{tpu_custom_call.1} parent=11 // pred_check
          %p340 = pneg %p198
        $region38: #{tpu_custom_call.1} parent=11 // pred_check_branch
          %342 = sbr.rel (%p340) target = $region40
        $region39: #{tpu_custom_call.1} parent=11 // pred_region
          %s344 = ssub.s32 4096, 4096
          %345 = vsyncadd [#allocation9], %s344
          %s346 = sshll.u32 [#allocation8], 4
          %s347 = int_to_ptr.vmem [resolvable:$true] %s346
          %352 = dma.hbm_to_vmem [thread:$0]  %s7, 4096, %s347, [#allocation9], 256, 256, 16
        $region40: #{tpu_custom_call.1} parent=11 // pred_fallthru
          _
        // Predicated region
        $region41: #{tpu_custom_call.1} parent=11 // pred_check
          %p353 = pneg %p219
        $region42: #{tpu_custom_call.1} parent=11 // pred_check_branch
          %355 = sbr.rel (%p353) target = $region44
        $region43: #{tpu_custom_call.1} parent=11 // pred_region
          _
        $region44: #{tpu_custom_call.1} parent=11 // pred_fallthru
          _
        // Predicated region
        $region45: #{tpu_custom_call.1} parent=11 // pred_check
          %p356 = pneg %p240
        $region46: #{tpu_custom_call.1} parent=11 // pred_check_branch
          %358 = sbr.rel (%p356) target = $region48
        $region47: #{tpu_custom_call.1} parent=11 // pred_region
          %s360 = ssub.s32 4096, 4096
          %361 = vsyncadd [#allocation9], %s360
          %s362 = sshll.u32 [#allocation10], 4
          %s363 = int_to_ptr.vmem [resolvable:$true] %s362
          %368 = dma.hbm_to_vmem [thread:$0]  %s9, 4096, %s363, [#allocation9], 64, 64, 4
        $region48: #{tpu_custom_call.1} parent=11 // pred_fallthru
          _
        // Predicated region
        $region49: #{tpu_custom_call.1} parent=11 // pred_check
          %p369 = pneg %p261
        $region50: #{tpu_custom_call.1} parent=11 // pred_check_branch
          %371 = sbr.rel (%p369) target = $region52
        $region51: #{tpu_custom_call.1} parent=11 // pred_region
          _
        $region52: #{tpu_custom_call.1} parent=11 // pred_fallthru
          _
      $region12: #{tpu_custom_call.1} parent=5 // pred_fallthru
        _
      %p372 = scmp.lt.s32.totalorder %s25, 2
      // Predicated region
      $region53: #{tpu_custom_call.1} parent=5 // pred_check
        %p373 = pneg %p372
      $region54: #{tpu_custom_call.1} parent=5 // pred_check_branch
        %375 = sbr.rel (%p373) target = $region56
      $region55: #{tpu_custom_call.1} parent=5 // pred_region
        // Predicated region
        $region57: #{tpu_custom_call.1} parent=55 // pred_check
          %p376 = pneg %p45
        $region58: #{tpu_custom_call.1} parent=55 // pred_check_branch
          %378 = sbr.rel (%p376) target = $region60
        $region59: #{tpu_custom_call.1} parent=55 // pred_region
          %s379 = sand.u32 %s35, 1
          %s380 = scalar_lea.sflag [#allocation3], %s379
          %s381 = sand.u32 %s35, 1
          %s382 = smul.addr %s381, 32
          %s383 = scalar_lea.vmem [#allocation2], %s382
          %s384 = smul.u32 2, %s25
          %s386 = ssub.s32 512, 512
          %387 = vsyncadd %s380, %s386
          %s388 = smul.addr %s384, 2
          %s389 = smul.addr %s388, 128
          %s390 = scalar_lea.hbm %s0, %s389
          %s391 = sshll.u32 %s383, 4
          %s392 = int_to_ptr.vmem [resolvable:$true] %s391
          %397 = dma.hbm_to_vmem [thread:$0]  %s390, 512, %s392, %s380, 128, 128, 8
        $region60: #{tpu_custom_call.1} parent=55 // pred_fallthru
          _
      $region56: #{tpu_custom_call.1} parent=5 // pred_fallthru
        _
      %p398 = scmp.le.s32.totalorder 1, %s25
      %p399 = scmp.lt.s32.totalorder %s25, 3
      %p400 = pnand %p398, %p399
      %p401 = pneg %p400
      // Predicated region
      $region61: #{tpu_custom_call.1} parent=5 // pred_check
        _
      $region62: #{tpu_custom_call.1} parent=5 // pred_check_branch
        %403 = sbr.rel (%p400) target = $region64
      $region63: #{tpu_custom_call.1} parent=5 // pred_region
        %s404 = ssub.s32 %s25, 1
        %s405 = sand.u32 %s38, 1
        %s406 = scalar_lea.sflag [#allocation3], %s405
        %s407 = sand.u32 %s38, 1
        %s408 = smul.addr %s407, 32
        %s409 = scalar_lea.vmem [#allocation2], %s408
        // Predicated region
        $region65: #{tpu_custom_call.1} parent=63 // pred_check
          %p410 = pneg %p51
        $region66: #{tpu_custom_call.1} parent=63 // pred_check_branch
          %412 = sbr.rel (%p410) target = $region68
        $region67: #{tpu_custom_call.1} parent=63 // pred_region
          %413 = dma.done %s406, 512
        $region68: #{tpu_custom_call.1} parent=63 // pred_fallthru
          _
        // Predicated region
        $region69: #{tpu_custom_call.1} parent=63 // pred_check
          %p414 = pneg %p72
        $region70: #{tpu_custom_call.1} parent=63 // pred_check_branch
          %416 = sbr.rel (%p414) target = $region72
        $region71: #{tpu_custom_call.1} parent=63 // pred_region
          %417 = dma.done [#allocation6], 3072
        $region72: #{tpu_custom_call.1} parent=63 // pred_fallthru
          _
        // Predicated region
        $region73: #{tpu_custom_call.1} parent=63 // pred_check
          %p418 = pneg %p114
        $region74: #{tpu_custom_call.1} parent=63 // pred_check_branch
          %420 = sbr.rel (%p418) target = $region76
        $region75: #{tpu_custom_call.1} parent=63 // pred_region
          %421 = dma.done [#allocation6], 1024
        $region76: #{tpu_custom_call.1} parent=63 // pred_fallthru
          _
        // Predicated region
        $region77: #{tpu_custom_call.1} parent=63 // pred_check
          %p422 = pneg %p198
        $region78: #{tpu_custom_call.1} parent=63 // pred_check_branch
          %424 = sbr.rel (%p422) target = $region80
        $region79: #{tpu_custom_call.1} parent=63 // pred_region
          %425 = dma.done [#allocation9], 4096
        $region80: #{tpu_custom_call.1} parent=63 // pred_fallthru
          _
        // Predicated region
        $region81: #{tpu_custom_call.1} parent=63 // pred_check
          %p426 = pneg %p240
        $region82: #{tpu_custom_call.1} parent=63 // pred_check_branch
          %428 = sbr.rel (%p426) target = $region84
        $region83: #{tpu_custom_call.1} parent=63 // pred_region
          %429 = dma.done [#allocation9], 4096
        $region84: #{tpu_custom_call.1} parent=63 // pred_fallthru
          _
        %s430 = sand.u32 %s38, 1
        %s431 = scalar_lea.sflag [#allocation3], %s430
        %s432 = sand.u32 %s38, 1
        %s433 = smul.addr %s432, 32
        %s434 = scalar_lea.vmem [#allocation2], %s433
        %p435 = pneg %p51
        %p436 = pneg %p48
        %p437 = pneg %p72
        %p438 = pneg %p69
        %p439 = pneg %p93
        %p440 = pneg %p90
        %p441 = pneg %p114
        %p442 = pneg %p111
        %p443 = pneg %p135
        %p444 = pneg %p132
        %p445 = pneg %p156
        %p446 = pneg %p153
        %p447 = pneg %p177
        %p448 = pneg %p174
        %p449 = pneg %p198
        %p450 = pneg %p195
        %p451 = pneg %p219
        %p452 = pneg %p216
        %p453 = pneg %p240
        %p454 = pneg %p237
        %p455 = pneg %p261
        %p456 = pneg %p258
        %p457 = pneg %p287
        %p458 = pneg %p284
        %s459 = sand.u32 %s274, 1
        %s460 = scalar_lea.sflag [#allocation4], %s459
        %s461 = sand.u32 %s274, 1
        %s462 = smul.addr %s461, 32
        %s463 = scalar_lea.vmem [#allocation11], %s462
        %s464 = smul.u32 2, %s30
        %s465 = smul.u32 2, %s30
        %v467 = vld [vmem:[%s409] sm:$0xff]
        %v468 = vld [vmem:[%s409 + $0x8] sm:$0xff]
        %v469 = vld [vmem:[%s409 + $0x10] sm:$0xff]
        %v470 = vld [vmem:[%s409 + $0x18] sm:$0xff]
        %v471 = vpack.c.bf16 %v468, %v467
        %v472 = vpack.c.bf16 %v470, %v469
        %v473 = vld [vmem:[#allocation5] sm:$0xff]
        %v474 = vld [vmem:[#allocation5 + $0x8] sm:$0xf]
        %v475 = vld [vmem:[#allocation5 + $0xc] sm:$0xff]
        %v476 = vld [vmem:[#allocation5 + $0x14] sm:$0xf]
        %v477 = vld [vmem:[#allocation5 + $0x18] sm:$0xff]
        %v478 = vld [vmem:[#allocation5 + $0x20] sm:$0xf]
        %v479 = vld [vmem:[#allocation5 + $0x24] sm:$0xff]
        %v480 = vld [vmem:[#allocation5 + $0x2c] sm:$0xf]
        %v481 = vld [vmem:[#allocation5 + $0x30] sm:$0xff]
        %v482 = vld [vmem:[#allocation5 + $0x38] sm:$0xf]
        %v483 = vld [vmem:[#allocation5 + $0x3c] sm:$0xff]
        %v484 = vld [vmem:[#allocation5 + $0x44] sm:$0xf]
        %v485 = vld [vmem:[#allocation5 + $0x48] sm:$0xff]
        %v486 = vld [vmem:[#allocation5 + $0x50] sm:$0xf]
        %v487 = vld [vmem:[#allocation5 + $0x54] sm:$0xff]
        %v488 = vld [vmem:[#allocation5 + $0x5c] sm:$0xf]
        %v489 = vld [vmem:[#allocation5 + $0x60] sm:$0xff]
        %v490 = vld [vmem:[#allocation5 + $0x68] sm:$0xf]
        %v491 = vld [vmem:[#allocation5 + $0x6c] sm:$0xff]
        %v492 = vld [vmem:[#allocation5 + $0x74] sm:$0xf]
        %v493 = vld [vmem:[#allocation5 + $0x78] sm:$0xff]
        %v494 = vld [vmem:[#allocation5 + $0x80] sm:$0xf]
        %v495 = vld [vmem:[#allocation5 + $0x84] sm:$0xff]
        %v496 = vld [vmem:[#allocation5 + $0x8c] sm:$0xf]
        %v497 = vld [vmem:[#allocation5 + $0x90] sm:$0xff]
        %v498 = vld [vmem:[#allocation5 + $0x98] sm:$0xf]
        %v499 = vld [vmem:[#allocation5 + $0x9c] sm:$0xff]
        %v500 = vld [vmem:[#allocation5 + $0xa4] sm:$0xf]
        %v501 = vld [vmem:[#allocation5 + $0xa8] sm:$0xff]
        %v502 = vld [vmem:[#allocation5 + $0xb0] sm:$0xf]
        %v503 = vld [vmem:[#allocation5 + $0xb4] sm:$0xff]
        %v504 = vld [vmem:[#allocation5 + $0xbc] sm:$0xf]
        %v505 = vld [vmem:[%s2] sm:$0x7]
        %v507 = vlaneseq
        %v508 = vshrl.u32 %v507, 7
        %v509 = vsub.s32 0, %v508
        %v510 = vrot.slane %v505, %v509
        %v511 = vlaneseq
        %v512 = vshrl.u32 %v511, 7
        %v513 = vsub.s32 1, %v512
        %v514 = vrot.slane %v505, %v513
        %v515 = vlaneseq
        %v516 = vshrl.u32 %v515, 7
        %v517 = vsub.s32 2, %v516
        %v518 = vrot.slane %v505, %v517
        %v554 = vunpack.c.l.b16 %v473
        %v555 = vunpack.c.h.b16 %v473
        %v556 = vunpack.c.l.b16 %v474
        %v557 = vunpack.c.l.b16 %v475
        %v558 = vunpack.c.h.b16 %v475
        %v559 = vunpack.c.l.b16 %v476
        %v560 = vunpack.c.l.b16 %v477
        %v561 = vunpack.c.h.b16 %v477
        %v562 = vunpack.c.l.b16 %v478
        %v563 = vunpack.c.l.b16 %v479
        %v564 = vunpack.c.h.b16 %v479
        %v565 = vunpack.c.l.b16 %v480
        %v566 = vunpack.c.l.b16 %v481
        %v567 = vunpack.c.h.b16 %v481
        %v568 = vunpack.c.l.b16 %v482
        %v569 = vunpack.c.l.b16 %v483
        %v570 = vunpack.c.h.b16 %v483
        %v571 = vunpack.c.l.b16 %v484
        %v572 = vunpack.c.l.b16 %v485
        %v573 = vunpack.c.h.b16 %v485
        %v574 = vunpack.c.l.b16 %v486
        %v575 = vunpack.c.l.b16 %v487
        %v576 = vunpack.c.h.b16 %v487
        %v577 = vunpack.c.l.b16 %v488
        %v578 = vunpack.c.l.b16 %v489
        %v579 = vunpack.c.h.b16 %v489
        %v580 = vunpack.c.l.b16 %v490
        %v581 = vunpack.c.l.b16 %v491
        %v582 = vunpack.c.h.b16 %v491
        %v583 = vunpack.c.l.b16 %v492
        %v584 = vunpack.c.l.b16 %v493
        %v585 = vunpack.c.h.b16 %v493
        %v586 = vunpack.c.l.b16 %v494
        %v587 = vunpack.c.l.b16 %v495
        %v588 = vunpack.c.h.b16 %v495
        %v589 = vunpack.c.l.b16 %v496
        %v590 = vunpack.c.l.b16 %v497
        %v591 = vunpack.c.h.b16 %v497
        %v592 = vunpack.c.l.b16 %v498
        %v593 = vunpack.c.l.b16 %v499
        %v594 = vunpack.c.h.b16 %v499
        %v595 = vunpack.c.l.b16 %v500
        %v596 = vunpack.c.l.b16 %v501
        %v597 = vunpack.c.h.b16 %v501
        %v598 = vunpack.c.l.b16 %v502
        %v599 = vunpack.c.l.b16 %v503
        %v600 = vunpack.c.h.b16 %v503
        %v601 = vunpack.c.l.b16 %v504
        %v602 = vpack.c.b16 %v557, %v554
        %v603 = vpack.c.b16 %v558, %v555
        %v604 = vpack.c.b16 %v559, %v556
        %v605 = vpack.c.b16 %v563, %v560
        %v606 = vpack.c.b16 %v564, %v561
        %v607 = vpack.c.b16 %v565, %v562
        %v608 = vpack.c.b16 %v569, %v566
        %v609 = vpack.c.b16 %v570, %v567
        %v610 = vpack.c.b16 %v571, %v568
        %v611 = vpack.c.b16 %v575, %v572
        %v612 = vpack.c.b16 %v576, %v573
        %v613 = vpack.c.b16 %v577, %v574
        %v614 = vpack.c.b16 %v581, %v578
        %v615 = vpack.c.b16 %v582, %v579
        %v616 = vpack.c.b16 %v583, %v580
        %v617 = vpack.c.b16 %v587, %v584
        %v618 = vpack.c.b16 %v588, %v585
        %v619 = vpack.c.b16 %v589, %v586
        %v620 = vpack.c.b16 %v593, %v590
        %v621 = vpack.c.b16 %v594, %v591
        %v622 = vpack.c.b16 %v595, %v592
        %v623 = vpack.c.b16 %v599, %v596
        %v624 = vpack.c.b16 %v600, %v597
        %v625 = vpack.c.b16 %v601, %v598
        %650 = vmatprep.subr.bf16.mxu0 %v603
        %651 = vmatpush1.bf16.msra.mxu0 %v602
        %652 = vmatprep.subr.bf16.mxu0 %v606
        %653 = vmatpush1.bf16.msra.mxu0 %v605
        %654 = vmatprep.subr.bf16.mxu0 %v609
        %655 = vmatpush1.bf16.msra.mxu0 %v608
        %656 = vmatprep.subr.bf16.mxu0 %v612
        %657 = vmatpush1.bf16.msra.mxu0 %v611
        %658 = vmatprep.subr.bf16.mxu0 %v615
        %659 = vmatpush1.bf16.msra.mxu0 %v614
        %660 = vmatprep.subr.bf16.mxu0 %v618
        %661 = vmatpush1.bf16.msra.mxu0 %v617
        %662 = vmatprep.subr.bf16.mxu0 %v621
        %663 = vmatpush1.bf16.msra.mxu0 %v620
        %664 = vmatprep.subr.bf16.mxu0 %v624
        %665 = vmatpush1.bf16.msra.mxu0 %v623
        %666 = vmatprep.subr.bf16.mxu0 0
        %667 = vmatpush1.bf16.msra.mxu0 0
        %668 = vmatprep.subr.bf16.mxu0 0
        %669 = vmatpush1.bf16.msra.mxu0 0
        %670 = vmatprep.subr.bf16.mxu0 0
        %671 = vmatpush1.bf16.msra.mxu0 0
        %672 = vmatprep.subr.bf16.mxu0 0
        %673 = vmatpush1.bf16.msra.mxu0 0
        %674 = vmatprep.subr.bf16.mxu0 0
        %675 = vmatpush1.bf16.msra.mxu0 0
        %676 = vmatprep.subr.bf16.mxu0 0
        %677 = vmatpush1.bf16.msra.mxu0 0
        %678 = vmatprep.subr.bf16.mxu0 0
        %679 = vmatpush1.bf16.msra.mxu0 0
        %680 = vmatprep.subr.bf16.mxu0 0
        %681 = vmatpush1.bf16.msra.mxu0 0
        %682 = vmatprep.mubr.bf16.mxu0 0
        %683 = vmatmul.mubr.bf16.gmra.mrb[0].mxu0 %v471
        %v684 = vpop.f32.mrb[0].mxu0
        %v685 = vadd.f32 %v510, %v684
        %v686 = vpop.f32.mrb[0].mxu0
        %v687 = vadd.f32 %v514, %v686
        %v688 = vpop.f32.mrb[0].mxu0
        %v689 = vadd.f32 %v510, %v688
        %v690 = vpop.f32.mrb[0].mxu0
        %v691 = vadd.f32 %v514, %v690
        %692 = vmatprep.mubr.bf16.mxu0 0
        %693 = vmatmul.mubr.bf16.gmra.mrb[0].mxu0 %v472
        %v694 = vpop.f32.mrb[0].mxu0
        %v695 = vadd.f32 %v510, %v694
        %v696 = vpop.f32.mrb[0].mxu0
        %v697 = vadd.f32 %v514, %v696
        %v698 = vpop.f32.mrb[0].mxu0
        %v699 = vadd.f32 %v510, %v698
        %v700 = vpop.f32.mrb[0].mxu0
        %v701 = vadd.f32 %v514, %v700
        %702 = vdwg.mxu0
        %703 = vmatprep.subr.bf16.mxu0 0
        %704 = vmatpush1.bf16.msra.mxu0 %v604
        %705 = vmatprep.subr.bf16.mxu0 0
        %706 = vmatpush1.bf16.msra.mxu0 %v607
        %707 = vmatprep.subr.bf16.mxu0 0
        %708 = vmatpush1.bf16.msra.mxu0 %v610
        %709 = vmatprep.subr.bf16.mxu0 0
        %710 = vmatpush1.bf16.msra.mxu0 %v613
        %711 = vmatprep.subr.bf16.mxu0 0
        %712 = vmatpush1.bf16.msra.mxu0 %v616
        %713 = vmatprep.subr.bf16.mxu0 0
        %714 = vmatpush1.bf16.msra.mxu0 %v619
        %715 = vmatprep.subr.bf16.mxu0 0
        %716 = vmatpush1.bf16.msra.mxu0 %v622
        %717 = vmatprep.subr.bf16.mxu0 0
        %718 = vmatpush1.bf16.msra.mxu0 %v625
        %719 = vmatprep.subr.bf16.mxu0 0
        %720 = vmatpush1.bf16.msra.mxu0 0
        %721 = vmatprep.subr.bf16.mxu0 0
        %722 = vmatpush1.bf16.msra.mxu0 0
        %723 = vmatprep.subr.bf16.mxu0 0
        %724 = vmatpush1.bf16.msra.mxu0 0
        %725 = vmatprep.subr.bf16.mxu0 0
        %726 = vmatpush1.bf16.msra.mxu0 0
        %727 = vmatprep.subr.bf16.mxu0 0
        %728 = vmatpush1.bf16.msra.mxu0 0
        %729 = vmatprep.subr.bf16.mxu0 0
        %730 = vmatpush1.bf16.msra.mxu0 0
        %731 = vmatprep.subr.bf16.mxu0 0
        %732 = vmatpush1.bf16.msra.mxu0 0
        %733 = vmatprep.subr.bf16.mxu0 0
        %734 = vmatpush1.bf16.msra.mxu0 0
        %735 = vmatprep.mubr.bf16.mxu0 0
        %736 = vmatmul.mubr.bf16.gmra.mrb[0].mxu0 %v471
        %v737 = vpop.f32.mrb[0].mxu0
        %v738 = vadd.f32 %v518, %v737
        %v739 = vpop.f32.mrb[0].mxu0
        %v740 = vpop.f32.mrb[0].mxu0
        %v741 = vadd.f32 %v518, %v740
        %v742 = vpop.f32.mrb[0].mxu0
        %743 = vmatprep.mubr.bf16.mxu0 0
        %744 = vmatmul.mubr.bf16.gmra.mrb[0].mxu0 %v472
        %v745 = vpop.f32.mrb[0].mxu0
        %v746 = vadd.f32 %v518, %v745
        %v747 = vpop.f32.mrb[0].mxu0
        %v748 = vpop.f32.mrb[0].mxu0
        %v749 = vadd.f32 %v518, %v748
        %v750 = vpop.f32.mrb[0].mxu0
        %751 = vdwg.mxu0
        %v752 = vmul.f32 %v685, 0.17677669
        %v753 = vmul.f32 %v689, 0.17677669
        %v754 = vmul.f32 %v695, 0.17677669
        %v755 = vmul.f32 %v699, 0.17677669
        %v756 = vpack.c.bf16 %v753, %v752
        %v757 = vpack.c.bf16 %v755, %v754
        %v758 = vpack.c.bf16 %v691, %v687
        %v759 = vpack.c.bf16 %v701, %v697
        %v760 = vpack.c.bf16 %v741, %v738
        %v761 = vpack.c.bf16 %v749, %v746
        %764 = vrot.lane.b32.xlu0 %v756, 96
        %v765 = vpop.permute.xlu0 %764
        %766 = vrot.lane.b32.xlu0 %v757, 96
        %v767 = vpop.permute.xlu0 %766
        %768 = vrot.lane.b32.xlu0 %v756, 64
        %v769 = vpop.permute.xlu0 %768
        %770 = vrot.lane.b32.xlu0 %v757, 64
        %v771 = vpop.permute.xlu0 %770
        %772 = vrot.lane.b32.xlu0 %v756, 32
        %v773 = vpop.permute.xlu0 %772
        %774 = vrot.lane.b32.xlu0 %v757, 32
        %v775 = vpop.permute.xlu0 %774
        %778 = vrot.lane.b32.xlu0 %v758, 96
        %v779 = vpop.permute.xlu0 %778
        %780 = vrot.lane.b32.xlu0 %v759, 96
        %v781 = vpop.permute.xlu0 %780
        %782 = vrot.lane.b32.xlu0 %v758, 64
        %v783 = vpop.permute.xlu0 %782
        %784 = vrot.lane.b32.xlu0 %v759, 64
        %v785 = vpop.permute.xlu0 %784
        %786 = vrot.lane.b32.xlu0 %v758, 32
        %v787 = vpop.permute.xlu0 %786
        %788 = vrot.lane.b32.xlu0 %v759, 32
        %v789 = vpop.permute.xlu0 %788
        %792 = vrot.lane.b32.xlu0 %v760, 96
        %v793 = vpop.permute.xlu0 %792
        %794 = vrot.lane.b32.xlu0 %v761, 96
        %v795 = vpop.permute.xlu0 %794
        %798 = vrot.lane.b32.xlu0 %v760, 64
        %v799 = vpop.permute.xlu0 %798
        %800 = vrot.lane.b32.xlu0 %v761, 64
        %v801 = vpop.permute.xlu0 %800
        %804 = vrot.lane.b32.xlu0 %v760, 32
        %v805 = vpop.permute.xlu0 %804
        %806 = vrot.lane.b32.xlu0 %v761, 32
        %v807 = vpop.permute.xlu0 %806
        %vm810 = vcmask 261120
        %v812 = vsel %vm810, %v756, 0
        %v815 = vsel %vm810, %v758, 0
        %817 = vmatprep.subr.bf16.mxu0 0
        %818 = vmatpush1.bf16.xpose.msra.mxu0 %v815
        %819 = vmatprep.subr.bf16.mxu0 0
        %820 = vmatpush1.bf16.xpose.msra.mxu0 0
        %821 = vmatprep.subr.bf16.mxu0 0
        %822 = vmatpush1.bf16.xpose.msra.mxu0 0
        %823 = vmatprep.subr.bf16.mxu0 0
        %824 = vmatpush1.bf16.xpose.msra.mxu0 0
        %825 = vmatprep.subr.bf16.mxu0 0
        %826 = vmatpush1.bf16.xpose.msra.mxu0 0
        %827 = vmatprep.subr.bf16.mxu0 0
        %828 = vmatpush1.bf16.xpose.msra.mxu0 0
        %829 = vmatprep.subr.bf16.mxu0 0
        %830 = vmatpush1.bf16.xpose.msra.mxu0 0
        %831 = vmatprep.subr.bf16.mxu0 0
        %832 = vmatpush1.bf16.xpose.msra.mxu0 0
        %833 = vmatprep.subr.bf16.mxu0 0
        %834 = vmatpush1.bf16.xpose.msra.mxu0 0
        %835 = vmatprep.subr.bf16.mxu0 0
        %836 = vmatpush1.bf16.xpose.msra.mxu0 0
        %837 = vmatprep.subr.bf16.mxu0 0
        %838 = vmatpush1.bf16.xpose.msra.mxu0 0
        %839 = vmatprep.subr.bf16.mxu0 0
        %840 = vmatpush1.bf16.xpose.msra.mxu0 0
        %841 = vmatprep.subr.bf16.mxu0 0
        %842 = vmatpush1.bf16.xpose.msra.mxu0 0
        %843 = vmatprep.subr.bf16.mxu0 0
        %844 = vmatpush1.bf16.xpose.msra.mxu0 0
        %845 = vmatprep.subr.bf16.mxu0 0
        %846 = vmatpush1.bf16.xpose.msra.mxu0 0
        %847 = vmatprep.subr.bf16.mxu0 0
        %848 = vmatpush1.bf16.xpose.msra.mxu0 0
        %849 = vmatprep.mubr.bf16.mxu0 0
        %850 = vmatmul.mubr.bf16.gmra.mrb[0].mxu0 %v812
        %v851 = vpop.f32.mrb[0].mxu0
        %v852 = vadd.f32 0.0, %v851
        %v853 = vpop.f32.mrb[0].mxu0
        %v854 = vpop.f32.mrb[0].mxu0
        %v855 = vadd.f32 0.0, %v854
        %v856 = vpop.f32.mrb[0].mxu0
        %857 = vdwg.mxu0
        %v859 = vsel %vm810, %v765, 0
        %v862 = vsel %vm810, %v779, 0
        %864 = vmatprep.subr.bf16.mxu0 0
        %865 = vmatpush1.bf16.xpose.msra.mxu0 %v862
        %866 = vmatprep.subr.bf16.mxu0 0
        %867 = vmatpush1.bf16.xpose.msra.mxu0 0
        %868 = vmatprep.subr.bf16.mxu0 0
        %869 = vmatpush1.bf16.xpose.msra.mxu0 0
        %870 = vmatprep.subr.bf16.mxu0 0
        %871 = vmatpush1.bf16.xpose.msra.mxu0 0
        %872 = vmatprep.subr.bf16.mxu0 0
        %873 = vmatpush1.bf16.xpose.msra.mxu0 0
        %874 = vmatprep.subr.bf16.mxu0 0
        %875 = vmatpush1.bf16.xpose.msra.mxu0 0
        %876 = vmatprep.subr.bf16.mxu0 0
        %877 = vmatpush1.bf16.xpose.msra.mxu0 0
        %878 = vmatprep.subr.bf16.mxu0 0
        %879 = vmatpush1.bf16.xpose.msra.mxu0 0
        %880 = vmatprep.subr.bf16.mxu0 0
        %881 = vmatpush1.bf16.xpose.msra.mxu0 0
        %882 = vmatprep.subr.bf16.mxu0 0
        %883 = vmatpush1.bf16.xpose.msra.mxu0 0
        %884 = vmatprep.subr.bf16.mxu0 0
        %885 = vmatpush1.bf16.xpose.msra.mxu0 0
        %886 = vmatprep.subr.bf16.mxu0 0
        %887 = vmatpush1.bf16.xpose.msra.mxu0 0
        %888 = vmatprep.subr.bf16.mxu0 0
        %889 = vmatpush1.bf16.xpose.msra.mxu0 0
        %890 = vmatprep.subr.bf16.mxu0 0
        %891 = vmatpush1.bf16.xpose.msra.mxu0 0
        %892 = vmatprep.subr.bf16.mxu0 0
        %893 = vmatpush1.bf16.xpose.msra.mxu0 0
        %894 = vmatprep.subr.bf16.mxu0 0
        %895 = vmatpush1.bf16.xpose.msra.mxu0 0
        %896 = vmatprep.mubr.bf16.mxu0 0
        %897 = vmatmul.mubr.bf16.gmra.mrb[0].mxu0 %v859
        %v898 = vpop.f32.mrb[0].mxu0
        %v899 = vadd.f32 0.0, %v898
        %v900 = vpop.f32.mrb[0].mxu0
        %v901 = vpop.f32.mrb[0].mxu0
        %v902 = vadd.f32 0.0, %v901
        %v903 = vpop.f32.mrb[0].mxu0
        %904 = vdwg.mxu0
        %v906 = vsel %vm810, %v769, 0
        %v909 = vsel %vm810, %v783, 0
        %911 = vmatprep.subr.bf16.mxu0 0
        %912 = vmatpush1.bf16.xpose.msra.mxu0 %v909
        %913 = vmatprep.subr.bf16.mxu0 0
        %914 = vmatpush1.bf16.xpose.msra.mxu0 0
        %915 = vmatprep.subr.bf16.mxu0 0
        %916 = vmatpush1.bf16.xpose.msra.mxu0 0
        %917 = vmatprep.subr.bf16.mxu0 0
        %918 = vmatpush1.bf16.xpose.msra.mxu0 0
        %919 = vmatprep.subr.bf16.mxu0 0
        %920 = vmatpush1.bf16.xpose.msra.mxu0 0
        %921 = vmatprep.subr.bf16.mxu0 0
        %922 = vmatpush1.bf16.xpose.msra.mxu0 0
        %923 = vmatprep.subr.bf16.mxu0 0
        %924 = vmatpush1.bf16.xpose.msra.mxu0 0
        %925 = vmatprep.subr.bf16.mxu0 0
        %926 = vmatpush1.bf16.xpose.msra.mxu0 0
        %927 = vmatprep.subr.bf16.mxu0 0
        %928 = vmatpush1.bf16.xpose.msra.mxu0 0
        %929 = vmatprep.subr.bf16.mxu0 0
        %930 = vmatpush1.bf16.xpose.msra.mxu0 0
        %931 = vmatprep.subr.bf16.mxu0 0
        %932 = vmatpush1.bf16.xpose.msra.mxu0 0
        %933 = vmatprep.subr.bf16.mxu0 0
        %934 = vmatpush1.bf16.xpose.msra.mxu0 0
        %935 = vmatprep.subr.bf16.mxu0 0
        %936 = vmatpush1.bf16.xpose.msra.mxu0 0
        %937 = vmatprep.subr.bf16.mxu0 0
        %938 = vmatpush1.bf16.xpose.msra.mxu0 0
        %939 = vmatprep.subr.bf16.mxu0 0
        %940 = vmatpush1.bf16.xpose.msra.mxu0 0
        %941 = vmatprep.subr.bf16.mxu0 0
        %942 = vmatpush1.bf16.xpose.msra.mxu0 0
        %943 = vmatprep.mubr.bf16.mxu0 0
        %944 = vmatmul.mubr.bf16.gmra.mrb[0].mxu0 %v906
        %v945 = vpop.f32.mrb[0].mxu0
        %v946 = vadd.f32 0.0, %v945
        %v947 = vpop.f32.mrb[0].mxu0
        %v948 = vpop.f32.mrb[0].mxu0
        %v949 = vadd.f32 0.0, %v948
        %v950 = vpop.f32.mrb[0].mxu0
        %951 = vdwg.mxu0
        %v953 = vsel %vm810, %v773, 0
        %v956 = vsel %vm810, %v787, 0
        %958 = vmatprep.subr.bf16.mxu0 0
        %959 = vmatpush1.bf16.xpose.msra.mxu0 %v956
        %960 = vmatprep.subr.bf16.mxu0 0
        %961 = vmatpush1.bf16.xpose.msra.mxu0 0
        %962 = vmatprep.subr.bf16.mxu0 0
        %963 = vmatpush1.bf16.xpose.msra.mxu0 0
        %964 = vmatprep.subr.bf16.mxu0 0
        %965 = vmatpush1.bf16.xpose.msra.mxu0 0
        %966 = vmatprep.subr.bf16.mxu0 0
        %967 = vmatpush1.bf16.xpose.msra.mxu0 0
        %968 = vmatprep.subr.bf16.mxu0 0
        %969 = vmatpush1.bf16.xpose.msra.mxu0 0
        %970 = vmatprep.subr.bf16.mxu0 0
        %971 = vmatpush1.bf16.xpose.msra.mxu0 0
        %972 = vmatprep.subr.bf16.mxu0 0
        %973 = vmatpush1.bf16.xpose.msra.mxu0 0
        %974 = vmatprep.subr.bf16.mxu0 0
        %975 = vmatpush1.bf16.xpose.msra.mxu0 0
        %976 = vmatprep.subr.bf16.mxu0 0
        %977 = vmatpush1.bf16.xpose.msra.mxu0 0
        %978 = vmatprep.subr.bf16.mxu0 0
        %979 = vmatpush1.bf16.xpose.msra.mxu0 0
        %980 = vmatprep.subr.bf16.mxu0 0
        %981 = vmatpush1.bf16.xpose.msra.mxu0 0
        %982 = vmatprep.subr.bf16.mxu0 0
        %983 = vmatpush1.bf16.xpose.msra.mxu0 0
        %984 = vmatprep.subr.bf16.mxu0 0
        %985 = vmatpush1.bf16.xpose.msra.mxu0 0
        %986 = vmatprep.subr.bf16.mxu0 0
        %987 = vmatpush1.bf16.xpose.msra.mxu0 0
        %988 = vmatprep.subr.bf16.mxu0 0
        %989 = vmatpush1.bf16.xpose.msra.mxu0 0
        %990 = vmatprep.mubr.bf16.mxu0 0
        %991 = vmatmul.mubr.bf16.gmra.mrb[0].mxu0 %v953
        %v992 = vpop.f32.mrb[0].mxu0
        %v993 = vadd.f32 0.0, %v992
        %v994 = vpop.f32.mrb[0].mxu0
        %v995 = vpop.f32.mrb[0].mxu0
        %v996 = vadd.f32 0.0, %v995
        %v997 = vpop.f32.mrb[0].mxu0
        %998 = vdwg.mxu0
        %v1000 = vsel %vm810, %v757, 0
        %v1003 = vsel %vm810, %v759, 0
        %1005 = vmatprep.subr.bf16.mxu0 0
        %1006 = vmatpush1.bf16.xpose.msra.mxu0 %v1003
        %1007 = vmatprep.subr.bf16.mxu0 0
        %1008 = vmatpush1.bf16.xpose.msra.mxu0 0
        %1009 = vmatprep.subr.bf16.mxu0 0
        %1010 = vmatpush1.bf16.xpose.msra.mxu0 0
        %1011 = vmatprep.subr.bf16.mxu0 0
        %1012 = vmatpush1.bf16.xpose.msra.mxu0 0
        %1013 = vmatprep.subr.bf16.mxu0 0
        %1014 = vmatpush1.bf16.xpose.msra.mxu0 0
        %1015 = vmatprep.subr.bf16.mxu0 0
        %1016 = vmatpush1.bf16.xpose.msra.mxu0 0
        %1017 = vmatprep.subr.bf16.mxu0 0
        %1018 = vmatpush1.bf16.xpose.msra.mxu0 0
        %1019 = vmatprep.subr.bf16.mxu0 0
        %1020 = vmatpush1.bf16.xpose.msra.mxu0 0
        %1021 = vmatprep.subr.bf16.mxu0 0
        %1022 = vmatpush1.bf16.xpose.msra.mxu0 0
        %1023 = vmatprep.subr.bf16.mxu0 0
        %1024 = vmatpush1.bf16.xpose.msra.mxu0 0
        %1025 = vmatprep.subr.bf16.mxu0 0
        %1026 = vmatpush1.bf16.xpose.msra.mxu0 0
        %1027 = vmatprep.subr.bf16.mxu0 0
        %1028 = vmatpush1.bf16.xpose.msra.mxu0 0
        %1029 = vmatprep.subr.bf16.mxu0 0
        %1030 = vmatpush1.bf16.xpose.msra.mxu0 0
        %1031 = vmatprep.subr.bf16.mxu0 0
        %1032 = vmatpush1.bf16.xpose.msra.mxu0 0
        %1033 = vmatprep.subr.bf16.mxu0 0
        %1034 = vmatpush1.bf16.xpose.msra.mxu0 0
        %1035 = vmatprep.subr.bf16.mxu0 0
        %1036 = vmatpush1.bf16.xpose.msra.mxu0 0
        %1037 = vmatprep.mubr.bf16.mxu0 0
        %1038 = vmatmul.mubr.bf16.gmra.mrb[0].mxu0 %v1000
        %v1039 = vpop.f32.mrb[0].mxu0
        %v1040 = vadd.f32 0.0, %v1039
        %v1041 = vpop.f32.mrb[0].mxu0
        %v1042 = vpop.f32.mrb[0].mxu0
        %v1043 = vadd.f32 0.0, %v1042
        %v1044 = vpop.f32.mrb[0].mxu0
        %1045 = vdwg.mxu0
        %v1047 = vsel %vm810, %v767, 0
        %v1050 = vsel %vm810, %v781, 0
        %1052 = vmatprep.subr.bf16.mxu0 0
        %1053 = vmatpush1.bf16.xpose.msra.mxu0 %v1050
        %1054 = vmatprep.subr.bf16.mxu0 0
        %1055 = vmatpush1.bf16.xpose.msra.mxu0 0
        %1056 = vmatprep.subr.bf16.mxu0 0
        %1057 = vmatpush1.bf16.xpose.msra.mxu0 0
        %1058 = vmatprep.subr.bf16.mxu0 0
        %1059 = vmatpush1.bf16.xpose.msra.mxu0 0
        %1060 = vmatprep.subr.bf16.mxu0 0
        %1061 = vmatpush1.bf16.xpose.msra.mxu0 0
        %1062 = vmatprep.subr.bf16.mxu0 0
        %1063 = vmatpush1.bf16.xpose.msra.mxu0 0
        %1064 = vmatprep.subr.bf16.mxu0 0
        %1065 = vmatpush1.bf16.xpose.msra.mxu0 0
        %1066 = vmatprep.subr.bf16.mxu0 0
        %1067 = vmatpush1.bf16.xpose.msra.mxu0 0
        %1068 = vmatprep.subr.bf16.mxu0 0
        %1069 = vmatpush1.bf16.xpose.msra.mxu0 0
        %1070 = vmatprep.subr.bf16.mxu0 0
        %1071 = vmatpush1.bf16.xpose.msra.mxu0 0
        %1072 = vmatprep.subr.bf16.mxu0 0
        %1073 = vmatpush1.bf16.xpose.msra.mxu0 0
        %1074 = vmatprep.subr.bf16.mxu0 0
        %1075 = vmatpush1.bf16.xpose.msra.mxu0 0
        %1076 = vmatprep.subr.bf16.mxu0 0
        %1077 = vmatpush1.bf16.xpose.msra.mxu0 0
        %1078 = vmatprep.subr.bf16.mxu0 0
        %1079 = vmatpush1.bf16.xpose.msra.mxu0 0
        %1080 = vmatprep.subr.bf16.mxu0 0
        %1081 = vmatpush1.bf16.xpose.msra.mxu0 0
        %1082 = vmatprep.subr.bf16.mxu0 0
        %1083 = vmatpush1.bf16.xpose.msra.mxu0 0
        %1084 = vmatprep.mubr.bf16.mxu0 0
        %1085 = vmatmul.mubr.bf16.gmra.mrb[0].mxu0 %v1047
        %v1086 = vpop.f32.mrb[0].mxu0
        %v1087 = vadd.f32 0.0, %v1086
        %v1088 = vpop.f32.mrb[0].mxu0
        %v1089 = vpop.f32.mrb[0].mxu0
        %v1090 = vadd.f32 0.0, %v1089
        %v1091 = vpop.f32.mrb[0].mxu0
        %1092 = vdwg.mxu0
        %v1094 = vsel %vm810, %v771, 0
        %v1097 = vsel %vm810, %v785, 0
        %1099 = vmatprep.subr.bf16.mxu0 0
        %1100 = vmatpush1.bf16.xpose.msra.mxu0 %v1097
        %1101 = vmatprep.subr.bf16.mxu0 0
        %1102 = vmatpush1.bf16.xpose.msra.mxu0 0
        %1103 = vmatprep.subr.bf16.mxu0 0
        %1104 = vmatpush1.bf16.xpose.msra.mxu0 0
        %1105 = vmatprep.subr.bf16.mxu0 0
        %1106 = vmatpush1.bf16.xpose.msra.mxu0 0
        %1107 = vmatprep.subr.bf16.mxu0 0
        %1108 = vmatpush1.bf16.xpose.msra.mxu0 0
        %1109 = vmatprep.subr.bf16.mxu0 0
        %1110 = vmatpush1.bf16.xpose.msra.mxu0 0
        %1111 = vmatprep.subr.bf16.mxu0 0
        %1112 = vmatpush1.bf16.xpose.msra.mxu0 0
        %1113 = vmatprep.subr.bf16.mxu0 0
        %1114 = vmatpush1.bf16.xpose.msra.mxu0 0
        %1115 = vmatprep.subr.bf16.mxu0 0
        %1116 = vmatpush1.bf16.xpose.msra.mxu0 0
        %1117 = vmatprep.subr.bf16.mxu0 0
        %1118 = vmatpush1.bf16.xpose.msra.mxu0 0
        %1119 = vmatprep.subr.bf16.mxu0 0
        %1120 = vmatpush1.bf16.xpose.msra.mxu0 0
        %1121 = vmatprep.subr.bf16.mxu0 0
        %1122 = vmatpush1.bf16.xpose.msra.mxu0 0
        %1123 = vmatprep.subr.bf16.mxu0 0
        %1124 = vmatpush1.bf16.xpose.msra.mxu0 0
        %1125 = vmatprep.subr.bf16.mxu0 0
        %1126 = vmatpush1.bf16.xpose.msra.mxu0 0
        %1127 = vmatprep.subr.bf16.mxu0 0
        %1128 = vmatpush1.bf16.xpose.msra.mxu0 0
        %1129 = vmatprep.subr.bf16.mxu0 0
        %1130 = vmatpush1.bf16.xpose.msra.mxu0 0
        %1131 = vmatprep.mubr.bf16.mxu0 0
        %1132 = vmatmul.mubr.bf16.gmra.mrb[0].mxu0 %v1094
        %v1133 = vpop.f32.mrb[0].mxu0
        %v1134 = vadd.f32 0.0, %v1133
        %v1135 = vpop.f32.mrb[0].mxu0
        %v1136 = vpop.f32.mrb[0].mxu0
        %v1137 = vadd.f32 0.0, %v1136
        %v1138 = vpop.f32.mrb[0].mxu0
        %1139 = vdwg.mxu0
        %v1141 = vsel %vm810, %v775, 0
        %v1144 = vsel %vm810, %v789, 0
        %1146 = vmatprep.subr.bf16.mxu0 0
        %1147 = vmatpush1.bf16.xpose.msra.mxu0 %v1144
        %1148 = vmatprep.subr.bf16.mxu0 0
        %1149 = vmatpush1.bf16.xpose.msra.mxu0 0
        %1150 = vmatprep.subr.bf16.mxu0 0
        %1151 = vmatpush1.bf16.xpose.msra.mxu0 0
        %1152 = vmatprep.subr.bf16.mxu0 0
        %1153 = vmatpush1.bf16.xpose.msra.mxu0 0
        %1154 = vmatprep.subr.bf16.mxu0 0
        %1155 = vmatpush1.bf16.xpose.msra.mxu0 0
        %1156 = vmatprep.subr.bf16.mxu0 0
        %1157 = vmatpush1.bf16.xpose.msra.mxu0 0
        %1158 = vmatprep.subr.bf16.mxu0 0
        %1159 = vmatpush1.bf16.xpose.msra.mxu0 0
        %1160 = vmatprep.subr.bf16.mxu0 0
        %1161 = vmatpush1.bf16.xpose.msra.mxu0 0
        %1162 = vmatprep.subr.bf16.mxu0 0
        %1163 = vmatpush1.bf16.xpose.msra.mxu0 0
        %1164 = vmatprep.subr.bf16.mxu0 0
        %1165 = vmatpush1.bf16.xpose.msra.mxu0 0
        %1166 = vmatprep.subr.bf16.mxu0 0
        %1167 = vmatpush1.bf16.xpose.msra.mxu0 0
        %1168 = vmatprep.subr.bf16.mxu0 0
        %1169 = vmatpush1.bf16.xpose.msra.mxu0 0
        %1170 = vmatprep.subr.bf16.mxu0 0
        %1171 = vmatpush1.bf16.xpose.msra.mxu0 0
        %1172 = vmatprep.subr.bf16.mxu0 0
        %1173 = vmatpush1.bf16.xpose.msra.mxu0 0
        %1174 = vmatprep.subr.bf16.mxu0 0
        %1175 = vmatpush1.bf16.xpose.msra.mxu0 0
        %1176 = vmatprep.subr.bf16.mxu0 0
        %1177 = vmatpush1.bf16.xpose.msra.mxu0 0
        %1178 = vmatprep.mubr.bf16.mxu0 0
        %1179 = vmatmul.mubr.bf16.gmra.mrb[0].mxu0 %v1141
        %v1180 = vpop.f32.mrb[0].mxu0
        %v1181 = vadd.f32 0.0, %v1180
        %v1182 = vpop.f32.mrb[0].mxu0
        %v1183 = vpop.f32.mrb[0].mxu0
        %v1184 = vadd.f32 0.0, %v1183
        %v1185 = vpop.f32.mrb[0].mxu0
        %1186 = vdwg.mxu0
        %vm1187 = vcmask 130048
        %v1188 = vsel %vm1187, %v852, -inf
        %1189 = vmax.xlane.f32.xlu0 %v1188
        %v1190 = vpop.xlane.xlu0 %1189
        %v1191 = vsel %vm1187, %v855, -inf
        %1192 = vmax.xlane.f32.xlu0 %v1191
        %v1193 = vpop.xlane.xlu0 %1192
        %v1194 = vsel %vm1187, %v899, -inf
        %1195 = vmax.xlane.f32.xlu0 %v1194
        %v1196 = vpop.xlane.xlu0 %1195
        %v1197 = vsel %vm1187, %v902, -inf
        %1198 = vmax.xlane.f32.xlu0 %v1197
        %v1199 = vpop.xlane.xlu0 %1198
        %v1200 = vsel %vm1187, %v946, -inf
        %1201 = vmax.xlane.f32.xlu0 %v1200
        %v1202 = vpop.xlane.xlu0 %1201
        %v1203 = vsel %vm1187, %v949, -inf
        %1204 = vmax.xlane.f32.xlu0 %v1203
        %v1205 = vpop.xlane.xlu0 %1204
        %v1206 = vsel %vm1187, %v993, -inf
        %1207 = vmax.xlane.f32.xlu0 %v1206
        %v1208 = vpop.xlane.xlu0 %1207
        %v1209 = vsel %vm1187, %v996, -inf
        %1210 = vmax.xlane.f32.xlu0 %v1209
        %v1211 = vpop.xlane.xlu0 %1210
        %v1212 = vsel %vm1187, %v1040, -inf
        %1213 = vmax.xlane.f32.xlu0 %v1212
        %v1214 = vpop.xlane.xlu0 %1213
        %v1215 = vsel %vm1187, %v1043, -inf
        %1216 = vmax.xlane.f32.xlu0 %v1215
        %v1217 = vpop.xlane.xlu0 %1216
        %v1218 = vsel %vm1187, %v1087, -inf
        %1219 = vmax.xlane.f32.xlu0 %v1218
        %v1220 = vpop.xlane.xlu0 %1219
        %v1221 = vsel %vm1187, %v1090, -inf
        %1222 = vmax.xlane.f32.xlu0 %v1221
        %v1223 = vpop.xlane.xlu0 %1222
        %v1224 = vsel %vm1187, %v1134, -inf
        %1225 = vmax.xlane.f32.xlu0 %v1224
        %v1226 = vpop.xlane.xlu0 %1225
        %v1227 = vsel %vm1187, %v1137, -inf
        %1228 = vmax.xlane.f32.xlu0 %v1227
        %v1229 = vpop.xlane.xlu0 %1228
        %v1230 = vsel %vm1187, %v1181, -inf
        %1231 = vmax.xlane.f32.xlu0 %v1230
        %v1232 = vpop.xlane.xlu0 %1231
        %v1233 = vsel %vm1187, %v1184, -inf
        %1234 = vmax.xlane.f32.xlu0 %v1233
        %v1235 = vpop.xlane.xlu0 %1234
        %v1236 = vsub.f32 %v852, %v1190
        %v1237 = vsub.f32 %v855, %v1193
        %v1238 = vsub.f32 %v899, %v1196
        %v1239 = vsub.f32 %v902, %v1199
        %v1240 = vsub.f32 %v946, %v1202
        %v1241 = vsub.f32 %v949, %v1205
        %v1242 = vsub.f32 %v993, %v1208
        %v1243 = vsub.f32 %v996, %v1211
        %v1244 = vsub.f32 %v1040, %v1214
        %v1245 = vsub.f32 %v1043, %v1217
        %v1246 = vsub.f32 %v1087, %v1220
        %v1247 = vsub.f32 %v1090, %v1223
        %v1248 = vsub.f32 %v1134, %v1226
        %v1249 = vsub.f32 %v1137, %v1229
        %v1250 = vsub.f32 %v1181, %v1232
        %v1251 = vsub.f32 %v1184, %v1235
        %v1252 = vmul.f32 %v1236, 1.442695
        %v1253 = vpow.pop %v1252
        %v1254 = vmul.f32 %v1237, 1.442695
        %v1255 = vpow.pop %v1254
        %v1256 = vmul.f32 %v1238, 1.442695
        %v1257 = vpow.pop %v1256
        %v1258 = vmul.f32 %v1239, 1.442695
        %v1259 = vpow.pop %v1258
        %v1260 = vmul.f32 %v1240, 1.442695
        %v1261 = vpow.pop %v1260
        %v1262 = vmul.f32 %v1241, 1.442695
        %v1263 = vpow.pop %v1262
        %v1264 = vmul.f32 %v1242, 1.442695
        %v1265 = vpow.pop %v1264
        %v1266 = vmul.f32 %v1243, 1.442695
        %v1267 = vpow.pop %v1266
        %v1268 = vmul.f32 %v1244, 1.442695
        %v1269 = vpow.pop %v1268
        %v1270 = vmul.f32 %v1245, 1.442695
        %v1271 = vpow.pop %v1270
        %v1272 = vmul.f32 %v1246, 1.442695
        %v1273 = vpow.pop %v1272
        %v1274 = vmul.f32 %v1247, 1.442695
        %v1275 = vpow.pop %v1274
        %v1276 = vmul.f32 %v1248, 1.442695
        %v1277 = vpow.pop %v1276
        %v1278 = vmul.f32 %v1249, 1.442695
        %v1279 = vpow.pop %v1278
        %v1280 = vmul.f32 %v1250, 1.442695
        %v1281 = vpow.pop %v1280
        %v1282 = vmul.f32 %v1251, 1.442695
        %v1283 = vpow.pop %v1282
        %v1284 = vsel %vm1187, %v1253, 0.0
        %1285 = vadd.xlane.f32.xlu0 %v1284
        %v1286 = vpop.xlane.xlu0 %1285
        %v1287 = vsel %vm1187, %v1255, 0.0
        %1288 = vadd.xlane.f32.xlu0 %v1287
        %v1289 = vpop.xlane.xlu0 %1288
        %v1290 = vsel %vm1187, %v1257, 0.0
        %1291 = vadd.xlane.f32.xlu0 %v1290
        %v1292 = vpop.xlane.xlu0 %1291
        %v1293 = vsel %vm1187, %v1259, 0.0
        %1294 = vadd.xlane.f32.xlu0 %v1293
        %v1295 = vpop.xlane.xlu0 %1294
        %v1296 = vsel %vm1187, %v1261, 0.0
        %1297 = vadd.xlane.f32.xlu0 %v1296
        %v1298 = vpop.xlane.xlu0 %1297
        %v1299 = vsel %vm1187, %v1263, 0.0
        %1300 = vadd.xlane.f32.xlu0 %v1299
        %v1301 = vpop.xlane.xlu0 %1300
        %v1302 = vsel %vm1187, %v1265, 0.0
        %1303 = vadd.xlane.f32.xlu0 %v1302
        %v1304 = vpop.xlane.xlu0 %1303
        %v1305 = vsel %vm1187, %v1267, 0.0
        %1306 = vadd.xlane.f32.xlu0 %v1305
        %v1307 = vpop.xlane.xlu0 %1306
        %v1308 = vsel %vm1187, %v1269, 0.0
        %1309 = vadd.xlane.f32.xlu0 %v1308
        %v1310 = vpop.xlane.xlu0 %1309
        %v1311 = vsel %vm1187, %v1271, 0.0
        %1312 = vadd.xlane.f32.xlu0 %v1311
        %v1313 = vpop.xlane.xlu0 %1312
        %v1314 = vsel %vm1187, %v1273, 0.0
        %1315 = vadd.xlane.f32.xlu0 %v1314
        %v1316 = vpop.xlane.xlu0 %1315
        %v1317 = vsel %vm1187, %v1275, 0.0
        %1318 = vadd.xlane.f32.xlu0 %v1317
        %v1319 = vpop.xlane.xlu0 %1318
        %v1320 = vsel %vm1187, %v1277, 0.0
        %1321 = vadd.xlane.f32.xlu0 %v1320
        %v1322 = vpop.xlane.xlu0 %1321
        %v1323 = vsel %vm1187, %v1279, 0.0
        %1324 = vadd.xlane.f32.xlu0 %v1323
        %v1325 = vpop.xlane.xlu0 %1324
        %v1326 = vsel %vm1187, %v1281, 0.0
        %1327 = vadd.xlane.f32.xlu0 %v1326
        %v1328 = vpop.xlane.xlu0 %1327
        %v1329 = vsel %vm1187, %v1283, 0.0
        %1330 = vadd.xlane.f32.xlu0 %v1329
        %v1331 = vpop.xlane.xlu0 %1330
        %v1332 = vrcp.pop %v1286
        %v1333 = vrcp.pop %v1289
        %v1334 = vrcp.pop %v1292
        %v1335 = vrcp.pop %v1295
        %v1336 = vrcp.pop %v1298
        %v1337 = vrcp.pop %v1301
        %v1338 = vrcp.pop %v1304
        %v1339 = vrcp.pop %v1307
        %v1340 = vrcp.pop %v1310
        %v1341 = vrcp.pop %v1313
        %v1342 = vrcp.pop %v1316
        %v1343 = vrcp.pop %v1319
        %v1344 = vrcp.pop %v1322
        %v1345 = vrcp.pop %v1325
        %v1346 = vrcp.pop %v1328
        %v1347 = vrcp.pop %v1331
        %v1348 = vmul.f32 %v1253, %v1332
        %v1349 = vmul.f32 %v1255, %v1333
        %v1350 = vmul.f32 %v1257, %v1334
        %v1351 = vmul.f32 %v1259, %v1335
        %v1352 = vmul.f32 %v1261, %v1336
        %v1353 = vmul.f32 %v1263, %v1337
        %v1354 = vmul.f32 %v1265, %v1338
        %v1355 = vmul.f32 %v1267, %v1339
        %v1356 = vmul.f32 %v1269, %v1340
        %v1357 = vmul.f32 %v1271, %v1341
        %v1358 = vmul.f32 %v1273, %v1342
        %v1359 = vmul.f32 %v1275, %v1343
        %v1360 = vmul.f32 %v1277, %v1344
        %v1361 = vmul.f32 %v1279, %v1345
        %v1362 = vmul.f32 %v1281, %v1346
        %v1363 = vmul.f32 %v1283, %v1347
        %v1364 = vpack.c.bf16 %v1349, %v1348
        %v1365 = vpack.c.bf16 %v1351, %v1350
        %v1366 = vpack.c.bf16 %v1353, %v1352
        %v1367 = vpack.c.bf16 %v1355, %v1354
        %v1368 = vpack.c.bf16 %v1357, %v1356
        %v1369 = vpack.c.bf16 %v1359, %v1358
        %v1370 = vpack.c.bf16 %v1361, %v1360
        %v1371 = vpack.c.bf16 %v1363, %v1362
        %v1373 = vsel %vm1187, %v1364, 0
        %1375 = vmatprep.subr.bf16.mxu0 0
        %1376 = vmatpush1.bf16.msra.mxu0 %v760
        %1377 = vmatprep.subr.bf16.mxu0 0
        %1378 = vmatpush1.bf16.msra.mxu0 0
        %1379 = vmatprep.subr.bf16.mxu0 0
        %1380 = vmatpush1.bf16.msra.mxu0 0
        %1381 = vmatprep.subr.bf16.mxu0 0
        %1382 = vmatpush1.bf16.msra.mxu0 0
        %1383 = vmatprep.subr.bf16.mxu0 0
        %1384 = vmatpush1.bf16.msra.mxu0 0
        %1385 = vmatprep.subr.bf16.mxu0 0
        %1386 = vmatpush1.bf16.msra.mxu0 0
        %1387 = vmatprep.subr.bf16.mxu0 0
        %1388 = vmatpush1.bf16.msra.mxu0 0
        %1389 = vmatprep.subr.bf16.mxu0 0
        %1390 = vmatpush1.bf16.msra.mxu0 0
        %1391 = vmatprep.subr.bf16.mxu0 0
        %1392 = vmatpush1.bf16.msra.mxu0 0
        %1393 = vmatprep.subr.bf16.mxu0 0
        %1394 = vmatpush1.bf16.msra.mxu0 0
        %1395 = vmatprep.subr.bf16.mxu0 0
        %1396 = vmatpush1.bf16.msra.mxu0 0
        %1397 = vmatprep.subr.bf16.mxu0 0
        %1398 = vmatpush1.bf16.msra.mxu0 0
        %1399 = vmatprep.subr.bf16.mxu0 0
        %1400 = vmatpush1.bf16.msra.mxu0 0
        %1401 = vmatprep.subr.bf16.mxu0 0
        %1402 = vmatpush1.bf16.msra.mxu0 0
        %1403 = vmatprep.subr.bf16.mxu0 0
        %1404 = vmatpush1.bf16.msra.mxu0 0
        %1405 = vmatprep.subr.bf16.mxu0 0
        %1406 = vmatpush1.bf16.msra.mxu0 0
        %1407 = vmatprep.mubr.bf16.mxu0 0
        %1408 = vmatmul.mubr.bf16.gmra.mrb[0].mxu0 %v1373
        %v1409 = vpop.f32.mrb[0].mxu0
        %v1410 = vadd.f32 0.0, %v1409
        %v1411 = vpop.f32.mrb[0].mxu0
        %v1412 = vpop.f32.mrb[0].mxu0
        %v1413 = vadd.f32 0.0, %v1412
        %v1414 = vpop.f32.mrb[0].mxu0
        %1415 = vdwg.mxu0
        %v1417 = vsel %vm1187, %v1365, 0
        %1419 = vmatprep.subr.bf16.mxu0 0
        %1420 = vmatpush1.bf16.msra.mxu0 %v793
        %1421 = vmatprep.subr.bf16.mxu0 0
        %1422 = vmatpush1.bf16.msra.mxu0 0
        %1423 = vmatprep.subr.bf16.mxu0 0
        %1424 = vmatpush1.bf16.msra.mxu0 0
        %1425 = vmatprep.subr.bf16.mxu0 0
        %1426 = vmatpush1.bf16.msra.mxu0 0
        %1427 = vmatprep.subr.bf16.mxu0 0
        %1428 = vmatpush1.bf16.msra.mxu0 0
        %1429 = vmatprep.subr.bf16.mxu0 0
        %1430 = vmatpush1.bf16.msra.mxu0 0
        %1431 = vmatprep.subr.bf16.mxu0 0
        %1432 = vmatpush1.bf16.msra.mxu0 0
        %1433 = vmatprep.subr.bf16.mxu0 0
        %1434 = vmatpush1.bf16.msra.mxu0 0
        %1435 = vmatprep.subr.bf16.mxu0 0
        %1436 = vmatpush1.bf16.msra.mxu0 0
        %1437 = vmatprep.subr.bf16.mxu0 0
        %1438 = vmatpush1.bf16.msra.mxu0 0
        %1439 = vmatprep.subr.bf16.mxu0 0
        %1440 = vmatpush1.bf16.msra.mxu0 0
        %1441 = vmatprep.subr.bf16.mxu0 0
        %1442 = vmatpush1.bf16.msra.mxu0 0
        %1443 = vmatprep.subr.bf16.mxu0 0
        %1444 = vmatpush1.bf16.msra.mxu0 0
        %1445 = vmatprep.subr.bf16.mxu0 0
        %1446 = vmatpush1.bf16.msra.mxu0 0
        %1447 = vmatprep.subr.bf16.mxu0 0
        %1448 = vmatpush1.bf16.msra.mxu0 0
        %1449 = vmatprep.subr.bf16.mxu0 0
        %1450 = vmatpush1.bf16.msra.mxu0 0
        %1451 = vmatprep.mubr.bf16.mxu0 0
        %1452 = vmatmul.mubr.bf16.gmra.mrb[0].mxu0 %v1417
        %v1453 = vpop.f32.mrb[0].mxu0
        %v1454 = vadd.f32 0.0, %v1453
        %v1455 = vpop.f32.mrb[0].mxu0
        %v1456 = vpop.f32.mrb[0].mxu0
        %v1457 = vadd.f32 0.0, %v1456
        %v1458 = vpop.f32.mrb[0].mxu0
        %1459 = vdwg.mxu0
        %v1461 = vsel %vm1187, %v1366, 0
        %1463 = vmatprep.subr.bf16.mxu0 0
        %1464 = vmatpush1.bf16.msra.mxu0 %v799
        %1465 = vmatprep.subr.bf16.mxu0 0
        %1466 = vmatpush1.bf16.msra.mxu0 0
        %1467 = vmatprep.subr.bf16.mxu0 0
        %1468 = vmatpush1.bf16.msra.mxu0 0
        %1469 = vmatprep.subr.bf16.mxu0 0
        %1470 = vmatpush1.bf16.msra.mxu0 0
        %1471 = vmatprep.subr.bf16.mxu0 0
        %1472 = vmatpush1.bf16.msra.mxu0 0
        %1473 = vmatprep.subr.bf16.mxu0 0
        %1474 = vmatpush1.bf16.msra.mxu0 0
        %1475 = vmatprep.subr.bf16.mxu0 0
        %1476 = vmatpush1.bf16.msra.mxu0 0
        %1477 = vmatprep.subr.bf16.mxu0 0
        %1478 = vmatpush1.bf16.msra.mxu0 0
        %1479 = vmatprep.subr.bf16.mxu0 0
        %1480 = vmatpush1.bf16.msra.mxu0 0
        %1481 = vmatprep.subr.bf16.mxu0 0
        %1482 = vmatpush1.bf16.msra.mxu0 0
        %1483 = vmatprep.subr.bf16.mxu0 0
        %1484 = vmatpush1.bf16.msra.mxu0 0
        %1485 = vmatprep.subr.bf16.mxu0 0
        %1486 = vmatpush1.bf16.msra.mxu0 0
        %1487 = vmatprep.subr.bf16.mxu0 0
        %1488 = vmatpush1.bf16.msra.mxu0 0
        %1489 = vmatprep.subr.bf16.mxu0 0
        %1490 = vmatpush1.bf16.msra.mxu0 0
        %1491 = vmatprep.subr.bf16.mxu0 0
        %1492 = vmatpush1.bf16.msra.mxu0 0
        %1493 = vmatprep.subr.bf16.mxu0 0
        %1494 = vmatpush1.bf16.msra.mxu0 0
        %1495 = vmatprep.mubr.bf16.mxu0 0
        %1496 = vmatmul.mubr.bf16.gmra.mrb[0].mxu0 %v1461
        %v1497 = vpop.f32.mrb[0].mxu0
        %v1498 = vadd.f32 0.0, %v1497
        %v1499 = vpop.f32.mrb[0].mxu0
        %v1500 = vpop.f32.mrb[0].mxu0
        %v1501 = vadd.f32 0.0, %v1500
        %v1502 = vpop.f32.mrb[0].mxu0
        %1503 = vdwg.mxu0
        %v1505 = vsel %vm1187, %v1367, 0
        %1507 = vmatprep.subr.bf16.mxu0 0
        %1508 = vmatpush1.bf16.msra.mxu0 %v805
        %1509 = vmatprep.subr.bf16.mxu0 0
        %1510 = vmatpush1.bf16.msra.mxu0 0
        %1511 = vmatprep.subr.bf16.mxu0 0
        %1512 = vmatpush1.bf16.msra.mxu0 0
        %1513 = vmatprep.subr.bf16.mxu0 0
        %1514 = vmatpush1.bf16.msra.mxu0 0
        %1515 = vmatprep.subr.bf16.mxu0 0
        %1516 = vmatpush1.bf16.msra.mxu0 0
        %1517 = vmatprep.subr.bf16.mxu0 0
        %1518 = vmatpush1.bf16.msra.mxu0 0
        %1519 = vmatprep.subr.bf16.mxu0 0
        %1520 = vmatpush1.bf16.msra.mxu0 0
        %1521 = vmatprep.subr.bf16.mxu0 0
        %1522 = vmatpush1.bf16.msra.mxu0 0
        %1523 = vmatprep.subr.bf16.mxu0 0
        %1524 = vmatpush1.bf16.msra.mxu0 0
        %1525 = vmatprep.subr.bf16.mxu0 0
        %1526 = vmatpush1.bf16.msra.mxu0 0
        %1527 = vmatprep.subr.bf16.mxu0 0
        %1528 = vmatpush1.bf16.msra.mxu0 0
        %1529 = vmatprep.subr.bf16.mxu0 0
        %1530 = vmatpush1.bf16.msra.mxu0 0
        %1531 = vmatprep.subr.bf16.mxu0 0
        %1532 = vmatpush1.bf16.msra.mxu0 0
        %1533 = vmatprep.subr.bf16.mxu0 0
        %1534 = vmatpush1.bf16.msra.mxu0 0
        %1535 = vmatprep.subr.bf16.mxu0 0
        %1536 = vmatpush1.bf16.msra.mxu0 0
        %1537 = vmatprep.subr.bf16.mxu0 0
        %1538 = vmatpush1.bf16.msra.mxu0 0
        %1539 = vmatprep.mubr.bf16.mxu0 0
        %1540 = vmatmul.mubr.bf16.gmra.mrb[0].mxu0 %v1505
        %v1541 = vpop.f32.mrb[0].mxu0
        %v1542 = vadd.f32 0.0, %v1541
        %v1543 = vpop.f32.mrb[0].mxu0
        %v1544 = vpop.f32.mrb[0].mxu0
        %v1545 = vadd.f32 0.0, %v1544
        %v1546 = vpop.f32.mrb[0].mxu0
        %1547 = vdwg.mxu0
        %v1549 = vsel %vm1187, %v1368, 0
        %1551 = vmatprep.subr.bf16.mxu0 0
        %1552 = vmatpush1.bf16.msra.mxu0 %v761
        %1553 = vmatprep.subr.bf16.mxu0 0
        %1554 = vmatpush1.bf16.msra.mxu0 0
        %1555 = vmatprep.subr.bf16.mxu0 0
        %1556 = vmatpush1.bf16.msra.mxu0 0
        %1557 = vmatprep.subr.bf16.mxu0 0
        %1558 = vmatpush1.bf16.msra.mxu0 0
        %1559 = vmatprep.subr.bf16.mxu0 0
        %1560 = vmatpush1.bf16.msra.mxu0 0
        %1561 = vmatprep.subr.bf16.mxu0 0
        %1562 = vmatpush1.bf16.msra.mxu0 0
        %1563 = vmatprep.subr.bf16.mxu0 0
        %1564 = vmatpush1.bf16.msra.mxu0 0
        %1565 = vmatprep.subr.bf16.mxu0 0
        %1566 = vmatpush1.bf16.msra.mxu0 0
        %1567 = vmatprep.subr.bf16.mxu0 0
        %1568 = vmatpush1.bf16.msra.mxu0 0
        %1569 = vmatprep.subr.bf16.mxu0 0
        %1570 = vmatpush1.bf16.msra.mxu0 0
        %1571 = vmatprep.subr.bf16.mxu0 0
        %1572 = vmatpush1.bf16.msra.mxu0 0
        %1573 = vmatprep.subr.bf16.mxu0 0
        %1574 = vmatpush1.bf16.msra.mxu0 0
        %1575 = vmatprep.subr.bf16.mxu0 0
        %1576 = vmatpush1.bf16.msra.mxu0 0
        %1577 = vmatprep.subr.bf16.mxu0 0
        %1578 = vmatpush1.bf16.msra.mxu0 0
        %1579 = vmatprep.subr.bf16.mxu0 0
        %1580 = vmatpush1.bf16.msra.mxu0 0
        %1581 = vmatprep.subr.bf16.mxu0 0
        %1582 = vmatpush1.bf16.msra.mxu0 0
        %1583 = vmatprep.mubr.bf16.mxu0 0
        %1584 = vmatmul.mubr.bf16.gmra.mrb[0].mxu0 %v1549
        %v1585 = vpop.f32.mrb[0].mxu0
        %v1586 = vadd.f32 0.0, %v1585
        %v1587 = vpop.f32.mrb[0].mxu0
        %v1588 = vpop.f32.mrb[0].mxu0
        %v1589 = vadd.f32 0.0, %v1588
        %v1590 = vpop.f32.mrb[0].mxu0
        %1591 = vdwg.mxu0
        %v1593 = vsel %vm1187, %v1369, 0
        %1595 = vmatprep.subr.bf16.mxu0 0
        %1596 = vmatpush1.bf16.msra.mxu0 %v795
        %1597 = vmatprep.subr.bf16.mxu0 0
        %1598 = vmatpush1.bf16.msra.mxu0 0
        %1599 = vmatprep.subr.bf16.mxu0 0
        %1600 = vmatpush1.bf16.msra.mxu0 0
        %1601 = vmatprep.subr.bf16.mxu0 0
        %1602 = vmatpush1.bf16.msra.mxu0 0
        %1603 = vmatprep.subr.bf16.mxu0 0
        %1604 = vmatpush1.bf16.msra.mxu0 0
        %1605 = vmatprep.subr.bf16.mxu0 0
        %1606 = vmatpush1.bf16.msra.mxu0 0
        %1607 = vmatprep.subr.bf16.mxu0 0
        %1608 = vmatpush1.bf16.msra.mxu0 0
        %1609 = vmatprep.subr.bf16.mxu0 0
        %1610 = vmatpush1.bf16.msra.mxu0 0
        %1611 = vmatprep.subr.bf16.mxu0 0
        %1612 = vmatpush1.bf16.msra.mxu0 0
        %1613 = vmatprep.subr.bf16.mxu0 0
        %1614 = vmatpush1.bf16.msra.mxu0 0
        %1615 = vmatprep.subr.bf16.mxu0 0
        %1616 = vmatpush1.bf16.msra.mxu0 0
        %1617 = vmatprep.subr.bf16.mxu0 0
        %1618 = vmatpush1.bf16.msra.mxu0 0
        %1619 = vmatprep.subr.bf16.mxu0 0
        %1620 = vmatpush1.bf16.msra.mxu0 0
        %1621 = vmatprep.subr.bf16.mxu0 0
        %1622 = vmatpush1.bf16.msra.mxu0 0
        %1623 = vmatprep.subr.bf16.mxu0 0
        %1624 = vmatpush1.bf16.msra.mxu0 0
        %1625 = vmatprep.subr.bf16.mxu0 0
        %1626 = vmatpush1.bf16.msra.mxu0 0
        %1627 = vmatprep.mubr.bf16.mxu0 0
        %1628 = vmatmul.mubr.bf16.gmra.mrb[0].mxu0 %v1593
        %v1629 = vpop.f32.mrb[0].mxu0
        %v1630 = vadd.f32 0.0, %v1629
        %v1631 = vpop.f32.mrb[0].mxu0
        %v1632 = vpop.f32.mrb[0].mxu0
        %v1633 = vadd.f32 0.0, %v1632
        %v1634 = vpop.f32.mrb[0].mxu0
        %1635 = vdwg.mxu0
        %v1637 = vsel %vm1187, %v1370, 0
        %1639 = vmatprep.subr.bf16.mxu0 0
        %1640 = vmatpush1.bf16.msra.mxu0 %v801
        %1641 = vmatprep.subr.bf16.mxu0 0
        %1642 = vmatpush1.bf16.msra.mxu0 0
        %1643 = vmatprep.subr.bf16.mxu0 0
        %1644 = vmatpush1.bf16.msra.mxu0 0
        %1645 = vmatprep.subr.bf16.mxu0 0
        %1646 = vmatpush1.bf16.msra.mxu0 0
        %1647 = vmatprep.subr.bf16.mxu0 0
        %1648 = vmatpush1.bf16.msra.mxu0 0
        %1649 = vmatprep.subr.bf16.mxu0 0
        %1650 = vmatpush1.bf16.msra.mxu0 0
        %1651 = vmatprep.subr.bf16.mxu0 0
        %1652 = vmatpush1.bf16.msra.mxu0 0
        %1653 = vmatprep.subr.bf16.mxu0 0
        %1654 = vmatpush1.bf16.msra.mxu0 0
        %1655 = vmatprep.subr.bf16.mxu0 0
        %1656 = vmatpush1.bf16.msra.mxu0 0
        %1657 = vmatprep.subr.bf16.mxu0 0
        %1658 = vmatpush1.bf16.msra.mxu0 0
        %1659 = vmatprep.subr.bf16.mxu0 0
        %1660 = vmatpush1.bf16.msra.mxu0 0
        %1661 = vmatprep.subr.bf16.mxu0 0
        %1662 = vmatpush1.bf16.msra.mxu0 0
        %1663 = vmatprep.subr.bf16.mxu0 0
        %1664 = vmatpush1.bf16.msra.mxu0 0
        %1665 = vmatprep.subr.bf16.mxu0 0
        %1666 = vmatpush1.bf16.msra.mxu0 0
        %1667 = vmatprep.subr.bf16.mxu0 0
        %1668 = vmatpush1.bf16.msra.mxu0 0
        %1669 = vmatprep.subr.bf16.mxu0 0
        %1670 = vmatpush1.bf16.msra.mxu0 0
        %1671 = vmatprep.mubr.bf16.mxu0 0
        %1672 = vmatmul.mubr.bf16.gmra.mrb[0].mxu0 %v1637
        %v1673 = vpop.f32.mrb[0].mxu0
        %v1674 = vadd.f32 0.0, %v1673
        %v1675 = vpop.f32.mrb[0].mxu0
        %v1676 = vpop.f32.mrb[0].mxu0
        %v1677 = vadd.f32 0.0, %v1676
        %v1678 = vpop.f32.mrb[0].mxu0
        %1679 = vdwg.mxu0
        %v1681 = vsel %vm1187, %v1371, 0
        %1683 = vmatprep.subr.bf16.mxu0 0
        %1684 = vmatpush1.bf16.msra.mxu0 %v807
        %1685 = vmatprep.subr.bf16.mxu0 0
        %1686 = vmatpush1.bf16.msra.mxu0 0
        %1687 = vmatprep.subr.bf16.mxu0 0
        %1688 = vmatpush1.bf16.msra.mxu0 0
        %1689 = vmatprep.subr.bf16.mxu0 0
        %1690 = vmatpush1.bf16.msra.mxu0 0
        %1691 = vmatprep.subr.bf16.mxu0 0
        %1692 = vmatpush1.bf16.msra.mxu0 0
        %1693 = vmatprep.subr.bf16.mxu0 0
        %1694 = vmatpush1.bf16.msra.mxu0 0
        %1695 = vmatprep.subr.bf16.mxu0 0
        %1696 = vmatpush1.bf16.msra.mxu0 0
        %1697 = vmatprep.subr.bf16.mxu0 0
        %1698 = vmatpush1.bf16.msra.mxu0 0
        %1699 = vmatprep.subr.bf16.mxu0 0
        %1700 = vmatpush1.bf16.msra.mxu0 0
        %1701 = vmatprep.subr.bf16.mxu0 0
        %1702 = vmatpush1.bf16.msra.mxu0 0
        %1703 = vmatprep.subr.bf16.mxu0 0
        %1704 = vmatpush1.bf16.msra.mxu0 0
        %1705 = vmatprep.subr.bf16.mxu0 0
        %1706 = vmatpush1.bf16.msra.mxu0 0
        %1707 = vmatprep.subr.bf16.mxu0 0
        %1708 = vmatpush1.bf16.msra.mxu0 0
        %1709 = vmatprep.subr.bf16.mxu0 0
        %1710 = vmatpush1.bf16.msra.mxu0 0
        %1711 = vmatprep.subr.bf16.mxu0 0
        %1712 = vmatpush1.bf16.msra.mxu0 0
        %1713 = vmatprep.subr.bf16.mxu0 0
        %1714 = vmatpush1.bf16.msra.mxu0 0
        %1715 = vmatprep.mubr.bf16.mxu0 0
        %1716 = vmatmul.mubr.bf16.gmra.mrb[0].mxu0 %v1681
        %v1717 = vpop.f32.mrb[0].mxu0
        %v1718 = vadd.f32 0.0, %v1717
        %v1719 = vpop.f32.mrb[0].mxu0
        %v1720 = vpop.f32.mrb[0].mxu0
        %v1721 = vadd.f32 0.0, %v1720
        %v1722 = vpop.f32.mrb[0].mxu0
        %1723 = vdwg.mxu0
        %v1724 = vpack.c.bf16 %v1413, %v1410
        %v1725 = vpack.c.bf16 %v1457, %v1454
        %v1726 = vpack.c.bf16 %v1501, %v1498
        %v1727 = vpack.c.bf16 %v1545, %v1542
        %v1728 = vpack.c.bf16 %v1589, %v1586
        %v1729 = vpack.c.bf16 %v1633, %v1630
        %v1730 = vpack.c.bf16 %v1677, %v1674
        %v1731 = vpack.c.bf16 %v1721, %v1718
        %1734 = vrot.lane.b32.xlu0 %v1725, 32
        %v1735 = vpop.permute.xlu0 %1734
        %1736 = vrot.lane.b32.xlu0 %v1729, 32
        %v1737 = vpop.permute.xlu0 %1736
        %1740 = vrot.lane.b32.xlu0 %v1726, 64
        %v1741 = vpop.permute.xlu0 %1740
        %1742 = vrot.lane.b32.xlu0 %v1730, 64
        %v1743 = vpop.permute.xlu0 %1742
        %1746 = vrot.lane.b32.xlu0 %v1727, 96
        %v1747 = vpop.permute.xlu0 %1746
        %1748 = vrot.lane.b32.xlu0 %v1731, 96
        %v1749 = vpop.permute.xlu0 %1748
        %v1752 = vsel %vm810, %v1724, %v1735
        %v1755 = vsel %vm810, %v1728, %v1737
        %vm1756 = vcmask 523264
        %v1758 = vsel %vm1756, %v1752, %v1741
        %v1760 = vsel %vm1756, %v1755, %v1743
        %vm1761 = vcmask 785408
        %v1763 = vsel %vm1761, %v1758, %v1747
        %v1766 = vsel %vm1761, %v1760, %v1749
        %v1768 = vld [vmem:[#allocation7] sm:$0xf]
        %v1769 = vld [vmem:[#allocation7 + $0x4] sm:$0xf]
        %v1770 = vld [vmem:[#allocation7 + $0x8] sm:$0xf]
        %v1771 = vld [vmem:[#allocation7 + $0xc] sm:$0xf]
        %v1772 = vld [vmem:[#allocation7 + $0x10] sm:$0xf]
        %v1773 = vld [vmem:[#allocation7 + $0x14] sm:$0xf]
        %v1774 = vld [vmem:[#allocation7 + $0x18] sm:$0xf]
        %v1775 = vld [vmem:[#allocation7 + $0x1c] sm:$0xf]
        %v1776 = vld [vmem:[#allocation7 + $0x20] sm:$0xf]
        %v1777 = vld [vmem:[#allocation7 + $0x24] sm:$0xf]
        %v1778 = vld [vmem:[#allocation7 + $0x28] sm:$0xf]
        %v1779 = vld [vmem:[#allocation7 + $0x2c] sm:$0xf]
        %v1780 = vld [vmem:[#allocation7 + $0x30] sm:$0xf]
        %v1781 = vld [vmem:[#allocation7 + $0x34] sm:$0xf]
        %v1782 = vld [vmem:[#allocation7 + $0x38] sm:$0xf]
        %v1783 = vld [vmem:[#allocation7 + $0x3c] sm:$0xf]
        %v1784 = vld [vmem:[%s4] sm:$0x1]
        %v1786 = vlaneseq
        %v1787 = vshrl.u32 %v1786, 7
        %v1788 = vsub.s32 0, %v1787
        %v1789 = vrot.slane %v1784, %v1788
        %v1807 = vunpack.c.l.b16 %v1768
        %v1808 = vunpack.c.l.b16 %v1769
        %v1809 = vunpack.c.l.b16 %v1770
        %v1810 = vunpack.c.l.b16 %v1771
        %v1811 = vunpack.c.l.b16 %v1772
        %v1812 = vunpack.c.l.b16 %v1773
        %v1813 = vunpack.c.l.b16 %v1774
        %v1814 = vunpack.c.l.b16 %v1775
        %v1815 = vunpack.c.l.b16 %v1776
        %v1816 = vunpack.c.l.b16 %v1777
        %v1817 = vunpack.c.l.b16 %v1778
        %v1818 = vunpack.c.l.b16 %v1779
        %v1819 = vunpack.c.l.b16 %v1780
        %v1820 = vunpack.c.l.b16 %v1781
        %v1821 = vunpack.c.l.b16 %v1782
        %v1822 = vunpack.c.l.b16 %v1783
        %v1823 = vpack.c.b16 %v1808, %v1807
        %v1824 = vpack.c.b16 %v1810, %v1809
        %v1825 = vpack.c.b16 %v1812, %v1811
        %v1826 = vpack.c.b16 %v1814, %v1813
        %v1827 = vpack.c.b16 %v1816, %v1815
        %v1828 = vpack.c.b16 %v1818, %v1817
        %v1829 = vpack.c.b16 %v1820, %v1819
        %v1830 = vpack.c.b16 %v1822, %v1821
        %1839 = vmatprep.subr.bf16.mxu0 0
        %1840 = vmatpush1.bf16.msra.mxu0 %v1823
        %1841 = vmatprep.subr.bf16.mxu0 0
        %1842 = vmatpush1.bf16.msra.mxu0 %v1824
        %1843 = vmatprep.subr.bf16.mxu0 0
        %1844 = vmatpush1.bf16.msra.mxu0 %v1825
        %1845 = vmatprep.subr.bf16.mxu0 0
        %1846 = vmatpush1.bf16.msra.mxu0 %v1826
        %1847 = vmatprep.subr.bf16.mxu0 0
        %1848 = vmatpush1.bf16.msra.mxu0 %v1827
        %1849 = vmatprep.subr.bf16.mxu0 0
        %1850 = vmatpush1.bf16.msra.mxu0 %v1828
        %1851 = vmatprep.subr.bf16.mxu0 0
        %1852 = vmatpush1.bf16.msra.mxu0 %v1829
        %1853 = vmatprep.subr.bf16.mxu0 0
        %1854 = vmatpush1.bf16.msra.mxu0 %v1830
        %1855 = vmatprep.subr.bf16.mxu0 0
        %1856 = vmatpush1.bf16.msra.mxu0 0
        %1857 = vmatprep.subr.bf16.mxu0 0
        %1858 = vmatpush1.bf16.msra.mxu0 0
        %1859 = vmatprep.subr.bf16.mxu0 0
        %1860 = vmatpush1.bf16.msra.mxu0 0
        %1861 = vmatprep.subr.bf16.mxu0 0
        %1862 = vmatpush1.bf16.msra.mxu0 0
        %1863 = vmatprep.subr.bf16.mxu0 0
        %1864 = vmatpush1.bf16.msra.mxu0 0
        %1865 = vmatprep.subr.bf16.mxu0 0
        %1866 = vmatpush1.bf16.msra.mxu0 0
        %1867 = vmatprep.subr.bf16.mxu0 0
        %1868 = vmatpush1.bf16.msra.mxu0 0
        %1869 = vmatprep.subr.bf16.mxu0 0
        %1870 = vmatpush1.bf16.msra.mxu0 0
        %1871 = vmatprep.mubr.bf16.mxu0 0
        %1872 = vmatmul.mubr.bf16.gmra.mrb[0].mxu0 %v1763
        %v1873 = vpop.f32.mrb[0].mxu0
        %v1874 = vadd.f32 %v1789, %v1873
        %v1875 = vpop.f32.mrb[0].mxu0
        %v1876 = vpop.f32.mrb[0].mxu0
        %v1877 = vadd.f32 %v1789, %v1876
        %v1878 = vpop.f32.mrb[0].mxu0
        %1879 = vmatprep.mubr.bf16.mxu0 0
        %1880 = vmatmul.mubr.bf16.gmra.mrb[0].mxu0 %v1766
        %v1881 = vpop.f32.mrb[0].mxu0
        %v1882 = vadd.f32 %v1789, %v1881
        %v1883 = vpop.f32.mrb[0].mxu0
        %v1884 = vpop.f32.mrb[0].mxu0
        %v1885 = vadd.f32 %v1789, %v1884
        %v1886 = vpop.f32.mrb[0].mxu0
        %1887 = vdwg.mxu0
        %1888 = vadd.xlane.f32.xlu0 %v1874
        %v1889 = vpop.xlane.xlu0 %1888
        %1890 = vadd.xlane.f32.xlu0 %v1877
        %v1891 = vpop.xlane.xlu0 %1890
        %1892 = vadd.xlane.f32.xlu0 %v1882
        %v1893 = vpop.xlane.xlu0 %1892
        %1894 = vadd.xlane.f32.xlu0 %v1885
        %v1895 = vpop.xlane.xlu0 %1894
        %v1896 = vrcp.pop 128.0
        %v1897 = vmul.f32 %v1889, %v1896
        %v1898 = vmul.f32 %v1891, %v1896
        %v1899 = vmul.f32 %v1893, %v1896
        %v1900 = vmul.f32 %v1895, %v1896
        %v1901 = vsub.f32 %v1874, %v1897
        %v1902 = vsub.f32 %v1877, %v1898
        %v1903 = vsub.f32 %v1882, %v1899
        %v1904 = vsub.f32 %v1885, %v1900
        %v1905 = vmul.f32 %v1901, %v1901
        %v1906 = vmul.f32 %v1902, %v1902
        %v1907 = vmul.f32 %v1903, %v1903
        %v1908 = vmul.f32 %v1904, %v1904
        %1909 = vadd.xlane.f32.xlu0 %v1905
        %v1910 = vpop.xlane.xlu0 %1909
        %1911 = vadd.xlane.f32.xlu0 %v1906
        %v1912 = vpop.xlane.xlu0 %1911
        %1913 = vadd.xlane.f32.xlu0 %v1907
        %v1914 = vpop.xlane.xlu0 %1913
        %1915 = vadd.xlane.f32.xlu0 %v1908
        %v1916 = vpop.xlane.xlu0 %1915
        %v1917 = vmul.f32 %v1910, %v1896
        %v1918 = vmul.f32 %v1912, %v1896
        %v1919 = vmul.f32 %v1914, %v1896
        %v1920 = vmul.f32 %v1916, %v1896
        %v1921 = vadd.f32 %v1917, 1e-06
        %v1922 = vadd.f32 %v1918, 1e-06
        %v1923 = vadd.f32 %v1919, 1e-06
        %v1924 = vadd.f32 %v1920, 1e-06
        %v1925 = vrsqrt.pop %v1921
        %v1926 = vrsqrt.pop %v1922
        %v1927 = vrsqrt.pop %v1923
        %v1928 = vrsqrt.pop %v1924
        %v1929 = vmul.f32 %v1901, %v1925
        %v1930 = vmul.f32 %v1902, %v1926
        %v1931 = vmul.f32 %v1903, %v1927
        %v1932 = vmul.f32 %v1904, %v1928
        %v1933 = vld [vmem:[%s5] sm:$0x1]
        %v1935 = vlaneseq
        %v1936 = vshrl.u32 %v1935, 7
        %v1937 = vsub.s32 0, %v1936
        %v1938 = vrot.slane %v1933, %v1937
        %v1940 = vmul.f32 %v1929, %v1938
        %v1941 = vmul.f32 %v1930, %v1938
        %v1942 = vmul.f32 %v1931, %v1938
        %v1943 = vmul.f32 %v1932, %v1938
        %v1944 = vld [vmem:[%s6] sm:$0x1]
        %v1946 = vlaneseq
        %v1947 = vshrl.u32 %v1946, 7
        %v1948 = vsub.s32 0, %v1947
        %v1949 = vrot.slane %v1944, %v1948
        %v1951 = vadd.f32 %v1940, %v1949
        %v1952 = vadd.f32 %v1941, %v1949
        %v1953 = vadd.f32 %v1942, %v1949
        %v1954 = vadd.f32 %v1943, %v1949
        %v1955 = vpack.c.bf16 %v1952, %v1951
        %v1956 = vpack.c.bf16 %v1954, %v1953
        %v1957 = vld [vmem:[#allocation8] sm:$0xff]
        %v1958 = vld [vmem:[#allocation8 + $0x8] sm:$0xff]
        %v1959 = vld [vmem:[#allocation8 + $0x10] sm:$0xff]
        %v1960 = vld [vmem:[#allocation8 + $0x18] sm:$0xff]
        %v1961 = vld [vmem:[#allocation8 + $0x20] sm:$0xff]
        %v1962 = vld [vmem:[#allocation8 + $0x28] sm:$0xff]
        %v1963 = vld [vmem:[#allocation8 + $0x30] sm:$0xff]
        %v1964 = vld [vmem:[#allocation8 + $0x38] sm:$0xff]
        %v1965 = vld [vmem:[#allocation8 + $0x40] sm:$0xff]
        %v1966 = vld [vmem:[#allocation8 + $0x48] sm:$0xff]
        %v1967 = vld [vmem:[#allocation8 + $0x50] sm:$0xff]
        %v1968 = vld [vmem:[#allocation8 + $0x58] sm:$0xff]
        %v1969 = vld [vmem:[#allocation8 + $0x60] sm:$0xff]
        %v1970 = vld [vmem:[#allocation8 + $0x68] sm:$0xff]
        %v1971 = vld [vmem:[#allocation8 + $0x70] sm:$0xff]
        %v1972 = vld [vmem:[#allocation8 + $0x78] sm:$0xff]
        %v1973 = vld [vmem:[#allocation8 + $0x80] sm:$0xff]
        %v1974 = vld [vmem:[#allocation8 + $0x88] sm:$0xff]
        %v1975 = vld [vmem:[#allocation8 + $0x90] sm:$0xff]
        %v1976 = vld [vmem:[#allocation8 + $0x98] sm:$0xff]
        %v1977 = vld [vmem:[#allocation8 + $0xa0] sm:$0xff]
        %v1978 = vld [vmem:[#allocation8 + $0xa8] sm:$0xff]
        %v1979 = vld [vmem:[#allocation8 + $0xb0] sm:$0xff]
        %v1980 = vld [vmem:[#allocation8 + $0xb8] sm:$0xff]
        %v1981 = vld [vmem:[#allocation8 + $0xc0] sm:$0xff]
        %v1982 = vld [vmem:[#allocation8 + $0xc8] sm:$0xff]
        %v1983 = vld [vmem:[#allocation8 + $0xd0] sm:$0xff]
        %v1984 = vld [vmem:[#allocation8 + $0xd8] sm:$0xff]
        %v1985 = vld [vmem:[#allocation8 + $0xe0] sm:$0xff]
        %v1986 = vld [vmem:[#allocation8 + $0xe8] sm:$0xff]
        %v1987 = vld [vmem:[#allocation8 + $0xf0] sm:$0xff]
        %v1988 = vld [vmem:[#allocation8 + $0xf8] sm:$0xff]
        %v1989 = vld [vmem:[%s8] sm:$0xf]
        %v1991 = vlaneseq
        %v1992 = vshrl.u32 %v1991, 7
        %v1993 = vsub.s32 0, %v1992
        %v1994 = vrot.slane %v1989, %v1993
        %v1995 = vlaneseq
        %v1996 = vshrl.u32 %v1995, 7
        %v1997 = vsub.s32 1, %v1996
        %v1998 = vrot.slane %v1989, %v1997
        %v1999 = vlaneseq
        %v2000 = vshrl.u32 %v1999, 7
        %v2001 = vsub.s32 2, %v2000
        %v2002 = vrot.slane %v1989, %v2001
        %v2003 = vlaneseq
        %v2004 = vshrl.u32 %v2003, 7
        %v2005 = vsub.s32 3, %v2004
        %v2006 = vrot.slane %v1989, %v2005
        %v2043 = vunpack.c.l.b16 %v1957
        %v2044 = vunpack.c.h.b16 %v1957
        %v2045 = vunpack.c.l.b16 %v1958
        %v2046 = vunpack.c.h.b16 %v1958
        %v2047 = vunpack.c.l.b16 %v1959
        %v2048 = vunpack.c.h.b16 %v1959
        %v2049 = vunpack.c.l.b16 %v1960
        %v2050 = vunpack.c.h.b16 %v1960
        %v2051 = vunpack.c.l.b16 %v1961
        %v2052 = vunpack.c.h.b16 %v1961
        %v2053 = vunpack.c.l.b16 %v1962
        %v2054 = vunpack.c.h.b16 %v1962
        %v2055 = vunpack.c.l.b16 %v1963
        %v2056 = vunpack.c.h.b16 %v1963
        %v2057 = vunpack.c.l.b16 %v1964
        %v2058 = vunpack.c.h.b16 %v1964
        %v2059 = vunpack.c.l.b16 %v1965
        %v2060 = vunpack.c.h.b16 %v1965
        %v2061 = vunpack.c.l.b16 %v1966
        %v2062 = vunpack.c.h.b16 %v1966
        %v2063 = vunpack.c.l.b16 %v1967
        %v2064 = vunpack.c.h.b16 %v1967
        %v2065 = vunpack.c.l.b16 %v1968
        %v2066 = vunpack.c.h.b16 %v1968
        %v2067 = vunpack.c.l.b16 %v1969
        %v2068 = vunpack.c.h.b16 %v1969
        %v2069 = vunpack.c.l.b16 %v1970
        %v2070 = vunpack.c.h.b16 %v1970
        %v2071 = vunpack.c.l.b16 %v1971
        %v2072 = vunpack.c.h.b16 %v1971
        %v2073 = vunpack.c.l.b16 %v1972
        %v2074 = vunpack.c.h.b16 %v1972
        %v2075 = vunpack.c.l.b16 %v1973
        %v2076 = vunpack.c.h.b16 %v1973
        %v2077 = vunpack.c.l.b16 %v1974
        %v2078 = vunpack.c.h.b16 %v1974
        %v2079 = vunpack.c.l.b16 %v1975
        %v2080 = vunpack.c.h.b16 %v1975
        %v2081 = vunpack.c.l.b16 %v1976
        %v2082 = vunpack.c.h.b16 %v1976
        %v2083 = vunpack.c.l.b16 %v1977
        %v2084 = vunpack.c.h.b16 %v1977
        %v2085 = vunpack.c.l.b16 %v1978
        %v2086 = vunpack.c.h.b16 %v1978
        %v2087 = vunpack.c.l.b16 %v1979
        %v2088 = vunpack.c.h.b16 %v1979
        %v2089 = vunpack.c.l.b16 %v1980
        %v2090 = vunpack.c.h.b16 %v1980
        %v2091 = vunpack.c.l.b16 %v1981
        %v2092 = vunpack.c.h.b16 %v1981
        %v2093 = vunpack.c.l.b16 %v1982
        %v2094 = vunpack.c.h.b16 %v1982
        %v2095 = vunpack.c.l.b16 %v1983
        %v2096 = vunpack.c.h.b16 %v1983
        %v2097 = vunpack.c.l.b16 %v1984
        %v2098 = vunpack.c.h.b16 %v1984
        %v2099 = vunpack.c.l.b16 %v1985
        %v2100 = vunpack.c.h.b16 %v1985
        %v2101 = vunpack.c.l.b16 %v1986
        %v2102 = vunpack.c.h.b16 %v1986
        %v2103 = vunpack.c.l.b16 %v1987
        %v2104 = vunpack.c.h.b16 %v1987
        %v2105 = vunpack.c.l.b16 %v1988
        %v2106 = vunpack.c.h.b16 %v1988
        %v2107 = vpack.c.b16 %v2047, %v2043
        %v2108 = vpack.c.b16 %v2048, %v2044
        %v2109 = vpack.c.b16 %v2049, %v2045
        %v2110 = vpack.c.b16 %v2050, %v2046
        %v2111 = vpack.c.b16 %v2055, %v2051
        %v2112 = vpack.c.b16 %v2056, %v2052
        %v2113 = vpack.c.b16 %v2057, %v2053
        %v2114 = vpack.c.b16 %v2058, %v2054
        %v2115 = vpack.c.b16 %v2063, %v2059
        %v2116 = vpack.c.b16 %v2064, %v2060
        %v2117 = vpack.c.b16 %v2065, %v2061
        %v2118 = vpack.c.b16 %v2066, %v2062
        %v2119 = vpack.c.b16 %v2071, %v2067
        %v2120 = vpack.c.b16 %v2072, %v2068
        %v2121 = vpack.c.b16 %v2073, %v2069
        %v2122 = vpack.c.b16 %v2074, %v2070
        %v2123 = vpack.c.b16 %v2079, %v2075
        %v2124 = vpack.c.b16 %v2080, %v2076
        %v2125 = vpack.c.b16 %v2081, %v2077
        %v2126 = vpack.c.b16 %v2082, %v2078
        %v2127 = vpack.c.b16 %v2087, %v2083
        %v2128 = vpack.c.b16 %v2088, %v2084
        %v2129 = vpack.c.b16 %v2089, %v2085
        %v2130 = vpack.c.b16 %v2090, %v2086
        %v2131 = vpack.c.b16 %v2095, %v2091
        %v2132 = vpack.c.b16 %v2096, %v2092
        %v2133 = vpack.c.b16 %v2097, %v2093
        %v2134 = vpack.c.b16 %v2098, %v2094
        %v2135 = vpack.c.b16 %v2103, %v2099
        %v2136 = vpack.c.b16 %v2104, %v2100
        %v2137 = vpack.c.b16 %v2105, %v2101
        %v2138 = vpack.c.b16 %v2106, %v2102
        %2171 = vmatprep.subr.bf16.mxu0 %v2108
        %2172 = vmatpush1.bf16.msra.mxu0 %v2107
        %2173 = vmatprep.subr.bf16.mxu0 %v2112
        %2174 = vmatpush1.bf16.msra.mxu0 %v2111
        %2175 = vmatprep.subr.bf16.mxu0 %v2116
        %2176 = vmatpush1.bf16.msra.mxu0 %v2115
        %2177 = vmatprep.subr.bf16.mxu0 %v2120
        %2178 = vmatpush1.bf16.msra.mxu0 %v2119
        %2179 = vmatprep.subr.bf16.mxu0 %v2124
        %2180 = vmatpush1.bf16.msra.mxu0 %v2123
        %2181 = vmatprep.subr.bf16.mxu0 %v2128
        %2182 = vmatpush1.bf16.msra.mxu0 %v2127
        %2183 = vmatprep.subr.bf16.mxu0 %v2132
        %2184 = vmatpush1.bf16.msra.mxu0 %v2131
        %2185 = vmatprep.subr.bf16.mxu0 %v2136
        %2186 = vmatpush1.bf16.msra.mxu0 %v2135
        %2187 = vmatprep.subr.bf16.mxu0 0
        %2188 = vmatpush1.bf16.msra.mxu0 0
        %2189 = vmatprep.subr.bf16.mxu0 0
        %2190 = vmatpush1.bf16.msra.mxu0 0
        %2191 = vmatprep.subr.bf16.mxu0 0
        %2192 = vmatpush1.bf16.msra.mxu0 0
        %2193 = vmatprep.subr.bf16.mxu0 0
        %2194 = vmatpush1.bf16.msra.mxu0 0
        %2195 = vmatprep.subr.bf16.mxu0 0
        %2196 = vmatpush1.bf16.msra.mxu0 0
        %2197 = vmatprep.subr.bf16.mxu0 0
        %2198 = vmatpush1.bf16.msra.mxu0 0
        %2199 = vmatprep.subr.bf16.mxu0 0
        %2200 = vmatpush1.bf16.msra.mxu0 0
        %2201 = vmatprep.subr.bf16.mxu0 0
        %2202 = vmatpush1.bf16.msra.mxu0 0
        %2203 = vmatprep.mubr.bf16.mxu0 0
        %2204 = vmatmul.mubr.bf16.gmra.mrb[0].mxu0 %v1955
        %v2205 = vpop.f32.mrb[0].mxu0
        %v2206 = vadd.f32 %v1994, %v2205
        %v2207 = vpop.f32.mrb[0].mxu0
        %v2208 = vadd.f32 %v1998, %v2207
        %v2209 = vpop.f32.mrb[0].mxu0
        %v2210 = vadd.f32 %v1994, %v2209
        %v2211 = vpop.f32.mrb[0].mxu0
        %v2212 = vadd.f32 %v1998, %v2211
        %2213 = vmatprep.mubr.bf16.mxu0 0
        %2214 = vmatmul.mubr.bf16.gmra.mrb[0].mxu0 %v1956
        %v2215 = vpop.f32.mrb[0].mxu0
        %v2216 = vadd.f32 %v1994, %v2215
        %v2217 = vpop.f32.mrb[0].mxu0
        %v2218 = vadd.f32 %v1998, %v2217
        %v2219 = vpop.f32.mrb[0].mxu0
        %v2220 = vadd.f32 %v1994, %v2219
        %v2221 = vpop.f32.mrb[0].mxu0
        %v2222 = vadd.f32 %v1998, %v2221
        %2223 = vdwg.mxu0
        %2224 = vmatprep.subr.bf16.mxu0 %v2110
        %2225 = vmatpush1.bf16.msra.mxu0 %v2109
        %2226 = vmatprep.subr.bf16.mxu0 %v2114
        %2227 = vmatpush1.bf16.msra.mxu0 %v2113
        %2228 = vmatprep.subr.bf16.mxu0 %v2118
        %2229 = vmatpush1.bf16.msra.mxu0 %v2117
        %2230 = vmatprep.subr.bf16.mxu0 %v2122
        %2231 = vmatpush1.bf16.msra.mxu0 %v2121
        %2232 = vmatprep.subr.bf16.mxu0 %v2126
        %2233 = vmatpush1.bf16.msra.mxu0 %v2125
        %2234 = vmatprep.subr.bf16.mxu0 %v2130
        %2235 = vmatpush1.bf16.msra.mxu0 %v2129
        %2236 = vmatprep.subr.bf16.mxu0 %v2134
        %2237 = vmatpush1.bf16.msra.mxu0 %v2133
        %2238 = vmatprep.subr.bf16.mxu0 %v2138
        %2239 = vmatpush1.bf16.msra.mxu0 %v2137
        %2240 = vmatprep.subr.bf16.mxu0 0
        %2241 = vmatpush1.bf16.msra.mxu0 0
        %2242 = vmatprep.subr.bf16.mxu0 0
        %2243 = vmatpush1.bf16.msra.mxu0 0
        %2244 = vmatprep.subr.bf16.mxu0 0
        %2245 = vmatpush1.bf16.msra.mxu0 0
        %2246 = vmatprep.subr.bf16.mxu0 0
        %2247 = vmatpush1.bf16.msra.mxu0 0
        %2248 = vmatprep.subr.bf16.mxu0 0
        %2249 = vmatpush1.bf16.msra.mxu0 0
        %2250 = vmatprep.subr.bf16.mxu0 0
        %2251 = vmatpush1.bf16.msra.mxu0 0
        %2252 = vmatprep.subr.bf16.mxu0 0
        %2253 = vmatpush1.bf16.msra.mxu0 0
        %2254 = vmatprep.subr.bf16.mxu0 0
        %2255 = vmatpush1.bf16.msra.mxu0 0
        %2256 = vmatprep.mubr.bf16.mxu0 0
        %2257 = vmatmul.mubr.bf16.gmra.mrb[0].mxu0 %v1955
        %v2258 = vpop.f32.mrb[0].mxu0
        %v2259 = vadd.f32 %v2002, %v2258
        %v2260 = vpop.f32.mrb[0].mxu0
        %v2261 = vadd.f32 %v2006, %v2260
        %v2262 = vpop.f32.mrb[0].mxu0
        %v2263 = vadd.f32 %v2002, %v2262
        %v2264 = vpop.f32.mrb[0].mxu0
        %v2265 = vadd.f32 %v2006, %v2264
        %2266 = vmatprep.mubr.bf16.mxu0 0
        %2267 = vmatmul.mubr.bf16.gmra.mrb[0].mxu0 %v1956
        %v2268 = vpop.f32.mrb[0].mxu0
        %v2269 = vadd.f32 %v2002, %v2268
        %v2270 = vpop.f32.mrb[0].mxu0
        %v2271 = vadd.f32 %v2006, %v2270
        %v2272 = vpop.f32.mrb[0].mxu0
        %v2273 = vadd.f32 %v2002, %v2272
        %v2274 = vpop.f32.mrb[0].mxu0
        %v2275 = vadd.f32 %v2006, %v2274
        %2276 = vdwg.mxu0
        %v2277 = vmul.f32 %v2206, %v2206
        %v2278 = vmul.f32 %v2208, %v2208
        %v2279 = vmul.f32 %v2259, %v2259
        %v2280 = vmul.f32 %v2261, %v2261
        %v2281 = vmul.f32 %v2210, %v2210
        %v2282 = vmul.f32 %v2212, %v2212
        %v2283 = vmul.f32 %v2263, %v2263
        %v2284 = vmul.f32 %v2265, %v2265
        %v2285 = vmul.f32 %v2216, %v2216
        %v2286 = vmul.f32 %v2218, %v2218
        %v2287 = vmul.f32 %v2269, %v2269
        %v2288 = vmul.f32 %v2271, %v2271
        %v2289 = vmul.f32 %v2220, %v2220
        %v2290 = vmul.f32 %v2222, %v2222
        %v2291 = vmul.f32 %v2273, %v2273
        %v2292 = vmul.f32 %v2275, %v2275
        %v2293 = vmul.f32 %v2206, %v2277
        %v2294 = vmul.f32 %v2208, %v2278
        %v2295 = vmul.f32 %v2259, %v2279
        %v2296 = vmul.f32 %v2261, %v2280
        %v2297 = vmul.f32 %v2210, %v2281
        %v2298 = vmul.f32 %v2212, %v2282
        %v2299 = vmul.f32 %v2263, %v2283
        %v2300 = vmul.f32 %v2265, %v2284
        %v2301 = vmul.f32 %v2216, %v2285
        %v2302 = vmul.f32 %v2218, %v2286
        %v2303 = vmul.f32 %v2269, %v2287
        %v2304 = vmul.f32 %v2271, %v2288
        %v2305 = vmul.f32 %v2220, %v2289
        %v2306 = vmul.f32 %v2222, %v2290
        %v2307 = vmul.f32 %v2273, %v2291
        %v2308 = vmul.f32 %v2275, %v2292
        %v2309 = vmul.f32 %v2293, 0.044715
        %v2310 = vmul.f32 %v2294, 0.044715
        %v2311 = vmul.f32 %v2295, 0.044715
        %v2312 = vmul.f32 %v2296, 0.044715
        %v2313 = vmul.f32 %v2297, 0.044715
        %v2314 = vmul.f32 %v2298, 0.044715
        %v2315 = vmul.f32 %v2299, 0.044715
        %v2316 = vmul.f32 %v2300, 0.044715
        %v2317 = vmul.f32 %v2301, 0.044715
        %v2318 = vmul.f32 %v2302, 0.044715
        %v2319 = vmul.f32 %v2303, 0.044715
        %v2320 = vmul.f32 %v2304, 0.044715
        %v2321 = vmul.f32 %v2305, 0.044715
        %v2322 = vmul.f32 %v2306, 0.044715
        %v2323 = vmul.f32 %v2307, 0.044715
        %v2324 = vmul.f32 %v2308, 0.044715
        %v2325 = vadd.f32 %v2206, %v2309
        %v2326 = vadd.f32 %v2208, %v2310
        %v2327 = vadd.f32 %v2259, %v2311
        %v2328 = vadd.f32 %v2261, %v2312
        %v2329 = vadd.f32 %v2210, %v2313
        %v2330 = vadd.f32 %v2212, %v2314
        %v2331 = vadd.f32 %v2263, %v2315
        %v2332 = vadd.f32 %v2265, %v2316
        %v2333 = vadd.f32 %v2216, %v2317
        %v2334 = vadd.f32 %v2218, %v2318
        %v2335 = vadd.f32 %v2269, %v2319
        %v2336 = vadd.f32 %v2271, %v2320
        %v2337 = vadd.f32 %v2220, %v2321
        %v2338 = vadd.f32 %v2222, %v2322
        %v2339 = vadd.f32 %v2273, %v2323
        %v2340 = vadd.f32 %v2275, %v2324
        %v2341 = vmul.f32 %v2325, 0.7978846
        %v2342 = vmul.f32 %v2326, 0.7978846
        %v2343 = vmul.f32 %v2327, 0.7978846
        %v2344 = vmul.f32 %v2328, 0.7978846
        %v2345 = vmul.f32 %v2329, 0.7978846
        %v2346 = vmul.f32 %v2330, 0.7978846
        %v2347 = vmul.f32 %v2331, 0.7978846
        %v2348 = vmul.f32 %v2332, 0.7978846
        %v2349 = vmul.f32 %v2333, 0.7978846
        %v2350 = vmul.f32 %v2334, 0.7978846
        %v2351 = vmul.f32 %v2335, 0.7978846
        %v2352 = vmul.f32 %v2336, 0.7978846
        %v2353 = vmul.f32 %v2337, 0.7978846
        %v2354 = vmul.f32 %v2338, 0.7978846
        %v2355 = vmul.f32 %v2339, 0.7978846
        %v2356 = vmul.f32 %v2340, 0.7978846
        %v2357 = vtanh.pop %v2341
        %v2358 = vtanh.pop %v2342
        %v2359 = vtanh.pop %v2343
        %v2360 = vtanh.pop %v2344
        %v2361 = vtanh.pop %v2345
        %v2362 = vtanh.pop %v2346
        %v2363 = vtanh.pop %v2347
        %v2364 = vtanh.pop %v2348
        %v2365 = vtanh.pop %v2349
        %v2366 = vtanh.pop %v2350
        %v2367 = vtanh.pop %v2351
        %v2368 = vtanh.pop %v2352
        %v2369 = vtanh.pop %v2353
        %v2370 = vtanh.pop %v2354
        %v2371 = vtanh.pop %v2355
        %v2372 = vtanh.pop %v2356
        %v2373 = vadd.f32 %v2357, 1.0
        %v2374 = vadd.f32 %v2358, 1.0
        %v2375 = vadd.f32 %v2359, 1.0
        %v2376 = vadd.f32 %v2360, 1.0
        %v2377 = vadd.f32 %v2361, 1.0
        %v2378 = vadd.f32 %v2362, 1.0
        %v2379 = vadd.f32 %v2363, 1.0
        %v2380 = vadd.f32 %v2364, 1.0
        %v2381 = vadd.f32 %v2365, 1.0
        %v2382 = vadd.f32 %v2366, 1.0
        %v2383 = vadd.f32 %v2367, 1.0
        %v2384 = vadd.f32 %v2368, 1.0
        %v2385 = vadd.f32 %v2369, 1.0
        %v2386 = vadd.f32 %v2370, 1.0
        %v2387 = vadd.f32 %v2371, 1.0
        %v2388 = vadd.f32 %v2372, 1.0
        %v2389 = vmul.f32 %v2373, 0.5
        %v2390 = vmul.f32 %v2374, 0.5
        %v2391 = vmul.f32 %v2375, 0.5
        %v2392 = vmul.f32 %v2376, 0.5
        %v2393 = vmul.f32 %v2377, 0.5
        %v2394 = vmul.f32 %v2378, 0.5
        %v2395 = vmul.f32 %v2379, 0.5
        %v2396 = vmul.f32 %v2380, 0.5
        %v2397 = vmul.f32 %v2381, 0.5
        %v2398 = vmul.f32 %v2382, 0.5
        %v2399 = vmul.f32 %v2383, 0.5
        %v2400 = vmul.f32 %v2384, 0.5
        %v2401 = vmul.f32 %v2385, 0.5
        %v2402 = vmul.f32 %v2386, 0.5
        %v2403 = vmul.f32 %v2387, 0.5
        %v2404 = vmul.f32 %v2388, 0.5
        %v2405 = vmul.f32 %v2206, %v2389
        %v2406 = vmul.f32 %v2208, %v2390
        %v2407 = vmul.f32 %v2259, %v2391
        %v2408 = vmul.f32 %v2261, %v2392
        %v2409 = vmul.f32 %v2210, %v2393
        %v2410 = vmul.f32 %v2212, %v2394
        %v2411 = vmul.f32 %v2263, %v2395
        %v2412 = vmul.f32 %v2265, %v2396
        %v2413 = vmul.f32 %v2216, %v2397
        %v2414 = vmul.f32 %v2218, %v2398
        %v2415 = vmul.f32 %v2269, %v2399
        %v2416 = vmul.f32 %v2271, %v2400
        %v2417 = vmul.f32 %v2220, %v2401
        %v2418 = vmul.f32 %v2222, %v2402
        %v2419 = vmul.f32 %v2273, %v2403
        %v2420 = vmul.f32 %v2275, %v2404
        %v2421 = vpack.c.bf16 %v2409, %v2405
        %v2422 = vpack.c.bf16 %v2410, %v2406
        %v2423 = vpack.c.bf16 %v2411, %v2407
        %v2424 = vpack.c.bf16 %v2412, %v2408
        %v2425 = vpack.c.bf16 %v2417, %v2413
        %v2426 = vpack.c.bf16 %v2418, %v2414
        %v2427 = vpack.c.bf16 %v2419, %v2415
        %v2428 = vpack.c.bf16 %v2420, %v2416
        %v2429 = vld [vmem:[#allocation10] sm:$0xf]
        %v2430 = vld [vmem:[#allocation10 + $0x4] sm:$0xf]
        %v2431 = vld [vmem:[#allocation10 + $0x8] sm:$0xf]
        %v2432 = vld [vmem:[#allocation10 + $0xc] sm:$0xf]
        %v2433 = vld [vmem:[#allocation10 + $0x10] sm:$0xf]
        %v2434 = vld [vmem:[#allocation10 + $0x14] sm:$0xf]
        %v2435 = vld [vmem:[#allocation10 + $0x18] sm:$0xf]
        %v2436 = vld [vmem:[#allocation10 + $0x1c] sm:$0xf]
        %v2437 = vld [vmem:[#allocation10 + $0x20] sm:$0xf]
        %v2438 = vld [vmem:[#allocation10 + $0x24] sm:$0xf]
        %v2439 = vld [vmem:[#allocation10 + $0x28] sm:$0xf]
        %v2440 = vld [vmem:[#allocation10 + $0x2c] sm:$0xf]
        %v2441 = vld [vmem:[#allocation10 + $0x30] sm:$0xf]
        %v2442 = vld [vmem:[#allocation10 + $0x34] sm:$0xf]
        %v2443 = vld [vmem:[#allocation10 + $0x38] sm:$0xf]
        %v2444 = vld [vmem:[#allocation10 + $0x3c] sm:$0xf]
        %v2445 = vld [vmem:[#allocation10 + $0x40] sm:$0xf]
        %v2446 = vld [vmem:[#allocation10 + $0x44] sm:$0xf]
        %v2447 = vld [vmem:[#allocation10 + $0x48] sm:$0xf]
        %v2448 = vld [vmem:[#allocation10 + $0x4c] sm:$0xf]
        %v2449 = vld [vmem:[#allocation10 + $0x50] sm:$0xf]
        %v2450 = vld [vmem:[#allocation10 + $0x54] sm:$0xf]
        %v2451 = vld [vmem:[#allocation10 + $0x58] sm:$0xf]
        %v2452 = vld [vmem:[#allocation10 + $0x5c] sm:$0xf]
        %v2453 = vld [vmem:[#allocation10 + $0x60] sm:$0xf]
        %v2454 = vld [vmem:[#allocation10 + $0x64] sm:$0xf]
        %v2455 = vld [vmem:[#allocation10 + $0x68] sm:$0xf]
        %v2456 = vld [vmem:[#allocation10 + $0x6c] sm:$0xf]
        %v2457 = vld [vmem:[#allocation10 + $0x70] sm:$0xf]
        %v2458 = vld [vmem:[#allocation10 + $0x74] sm:$0xf]
        %v2459 = vld [vmem:[#allocation10 + $0x78] sm:$0xf]
        %v2460 = vld [vmem:[#allocation10 + $0x7c] sm:$0xf]
        %v2461 = vld [vmem:[#allocation10 + $0x80] sm:$0xf]
        %v2462 = vld [vmem:[#allocation10 + $0x84] sm:$0xf]
        %v2463 = vld [vmem:[#allocation10 + $0x88] sm:$0xf]
        %v2464 = vld [vmem:[#allocation10 + $0x8c] sm:$0xf]
        %v2465 = vld [vmem:[#allocation10 + $0x90] sm:$0xf]
        %v2466 = vld [vmem:[#allocation10 + $0x94] sm:$0xf]
        %v2467 = vld [vmem:[#allocation10 + $0x98] sm:$0xf]
        %v2468 = vld [vmem:[#allocation10 + $0x9c] sm:$0xf]
        %v2469 = vld [vmem:[#allocation10 + $0xa0] sm:$0xf]
        %v2470 = vld [vmem:[#allocation10 + $0xa4] sm:$0xf]
        %v2471 = vld [vmem:[#allocation10 + $0xa8] sm:$0xf]
        %v2472 = vld [vmem:[#allocation10 + $0xac] sm:$0xf]
        %v2473 = vld [vmem:[#allocation10 + $0xb0] sm:$0xf]
        %v2474 = vld [vmem:[#allocation10 + $0xb4] sm:$0xf]
        %v2475 = vld [vmem:[#allocation10 + $0xb8] sm:$0xf]
        %v2476 = vld [vmem:[#allocation10 + $0xbc] sm:$0xf]
        %v2477 = vld [vmem:[#allocation10 + $0xc0] sm:$0xf]
        %v2478 = vld [vmem:[#allocation10 + $0xc4] sm:$0xf]
        %v2479 = vld [vmem:[#allocation10 + $0xc8] sm:$0xf]
        %v2480 = vld [vmem:[#allocation10 + $0xcc] sm:$0xf]
        %v2481 = vld [vmem:[#allocation10 + $0xd0] sm:$0xf]
        %v2482 = vld [vmem:[#allocation10 + $0xd4] sm:$0xf]
        %v2483 = vld [vmem:[#allocation10 + $0xd8] sm:$0xf]
        %v2484 = vld [vmem:[#allocation10 + $0xdc] sm:$0xf]
        %v2485 = vld [vmem:[#allocation10 + $0xe0] sm:$0xf]
        %v2486 = vld [vmem:[#allocation10 + $0xe4] sm:$0xf]
        %v2487 = vld [vmem:[#allocation10 + $0xe8] sm:$0xf]
        %v2488 = vld [vmem:[#allocation10 + $0xec] sm:$0xf]
        %v2489 = vld [vmem:[#allocation10 + $0xf0] sm:$0xf]
        %v2490 = vld [vmem:[#allocation10 + $0xf4] sm:$0xf]
        %v2491 = vld [vmem:[#allocation10 + $0xf8] sm:$0xf]
        %v2492 = vld [vmem:[#allocation10 + $0xfc] sm:$0xf]
        %v2493 = vld [vmem:[%s10] sm:$0x1]
        %v2495 = vlaneseq
        %v2496 = vshrl.u32 %v2495, 7
        %v2497 = vsub.s32 0, %v2496
        %v2498 = vrot.slane %v2493, %v2497
        %v2564 = vunpack.c.l.b16 %v2429
        %v2565 = vunpack.c.l.b16 %v2430
        %v2566 = vunpack.c.l.b16 %v2431
        %v2567 = vunpack.c.l.b16 %v2432
        %v2568 = vunpack.c.l.b16 %v2433
        %v2569 = vunpack.c.l.b16 %v2434
        %v2570 = vunpack.c.l.b16 %v2435
        %v2571 = vunpack.c.l.b16 %v2436
        %v2572 = vunpack.c.l.b16 %v2437
        %v2573 = vunpack.c.l.b16 %v2438
        %v2574 = vunpack.c.l.b16 %v2439
        %v2575 = vunpack.c.l.b16 %v2440
        %v2576 = vunpack.c.l.b16 %v2441
        %v2577 = vunpack.c.l.b16 %v2442
        %v2578 = vunpack.c.l.b16 %v2443
        %v2579 = vunpack.c.l.b16 %v2444
        %v2580 = vunpack.c.l.b16 %v2445
        %v2581 = vunpack.c.l.b16 %v2446
        %v2582 = vunpack.c.l.b16 %v2447
        %v2583 = vunpack.c.l.b16 %v2448
        %v2584 = vunpack.c.l.b16 %v2449
        %v2585 = vunpack.c.l.b16 %v2450
        %v2586 = vunpack.c.l.b16 %v2451
        %v2587 = vunpack.c.l.b16 %v2452
        %v2588 = vunpack.c.l.b16 %v2453
        %v2589 = vunpack.c.l.b16 %v2454
        %v2590 = vunpack.c.l.b16 %v2455
        %v2591 = vunpack.c.l.b16 %v2456
        %v2592 = vunpack.c.l.b16 %v2457
        %v2593 = vunpack.c.l.b16 %v2458
        %v2594 = vunpack.c.l.b16 %v2459
        %v2595 = vunpack.c.l.b16 %v2460
        %v2596 = vunpack.c.l.b16 %v2461
        %v2597 = vunpack.c.l.b16 %v2462
        %v2598 = vunpack.c.l.b16 %v2463
        %v2599 = vunpack.c.l.b16 %v2464
        %v2600 = vunpack.c.l.b16 %v2465
        %v2601 = vunpack.c.l.b16 %v2466
        %v2602 = vunpack.c.l.b16 %v2467
        %v2603 = vunpack.c.l.b16 %v2468
        %v2604 = vunpack.c.l.b16 %v2469
        %v2605 = vunpack.c.l.b16 %v2470
        %v2606 = vunpack.c.l.b16 %v2471
        %v2607 = vunpack.c.l.b16 %v2472
        %v2608 = vunpack.c.l.b16 %v2473
        %v2609 = vunpack.c.l.b16 %v2474
        %v2610 = vunpack.c.l.b16 %v2475
        %v2611 = vunpack.c.l.b16 %v2476
        %v2612 = vunpack.c.l.b16 %v2477
        %v2613 = vunpack.c.l.b16 %v2478
        %v2614 = vunpack.c.l.b16 %v2479
        %v2615 = vunpack.c.l.b16 %v2480
        %v2616 = vunpack.c.l.b16 %v2481
        %v2617 = vunpack.c.l.b16 %v2482
        %v2618 = vunpack.c.l.b16 %v2483
        %v2619 = vunpack.c.l.b16 %v2484
        %v2620 = vunpack.c.l.b16 %v2485
        %v2621 = vunpack.c.l.b16 %v2486
        %v2622 = vunpack.c.l.b16 %v2487
        %v2623 = vunpack.c.l.b16 %v2488
        %v2624 = vunpack.c.l.b16 %v2489
        %v2625 = vunpack.c.l.b16 %v2490
        %v2626 = vunpack.c.l.b16 %v2491
        %v2627 = vunpack.c.l.b16 %v2492
        %v2628 = vpack.c.b16 %v2565, %v2564
        %v2629 = vpack.c.b16 %v2567, %v2566
        %v2630 = vpack.c.b16 %v2569, %v2568
        %v2631 = vpack.c.b16 %v2571, %v2570
        %v2632 = vpack.c.b16 %v2573, %v2572
        %v2633 = vpack.c.b16 %v2575, %v2574
        %v2634 = vpack.c.b16 %v2577, %v2576
        %v2635 = vpack.c.b16 %v2579, %v2578
        %v2636 = vpack.c.b16 %v2581, %v2580
        %v2637 = vpack.c.b16 %v2583, %v2582
        %v2638 = vpack.c.b16 %v2585, %v2584
        %v2639 = vpack.c.b16 %v2587, %v2586
        %v2640 = vpack.c.b16 %v2589, %v2588
        %v2641 = vpack.c.b16 %v2591, %v2590
        %v2642 = vpack.c.b16 %v2593, %v2592
        %v2643 = vpack.c.b16 %v2595, %v2594
        %v2644 = vpack.c.b16 %v2597, %v2596
        %v2645 = vpack.c.b16 %v2599, %v2598
        %v2646 = vpack.c.b16 %v2601, %v2600
        %v2647 = vpack.c.b16 %v2603, %v2602
        %v2648 = vpack.c.b16 %v2605, %v2604
        %v2649 = vpack.c.b16 %v2607, %v2606
        %v2650 = vpack.c.b16 %v2609, %v2608
        %v2651 = vpack.c.b16 %v2611, %v2610
        %v2652 = vpack.c.b16 %v2613, %v2612
        %v2653 = vpack.c.b16 %v2615, %v2614
        %v2654 = vpack.c.b16 %v2617, %v2616
        %v2655 = vpack.c.b16 %v2619, %v2618
        %v2656 = vpack.c.b16 %v2621, %v2620
        %v2657 = vpack.c.b16 %v2623, %v2622
        %v2658 = vpack.c.b16 %v2625, %v2624
        %v2659 = vpack.c.b16 %v2627, %v2626
        %2692 = vmatprep.subr.bf16.mxu0 0
        %2693 = vmatpush1.bf16.msra.mxu0 %v2628
        %2694 = vmatprep.subr.bf16.mxu0 0
        %2695 = vmatpush1.bf16.msra.mxu0 %v2629
        %2696 = vmatprep.subr.bf16.mxu0 0
        %2697 = vmatpush1.bf16.msra.mxu0 %v2630
        %2698 = vmatprep.subr.bf16.mxu0 0
        %2699 = vmatpush1.bf16.msra.mxu0 %v2631
        %2700 = vmatprep.subr.bf16.mxu0 0
        %2701 = vmatpush1.bf16.msra.mxu0 %v2632
        %2702 = vmatprep.subr.bf16.mxu0 0
        %2703 = vmatpush1.bf16.msra.mxu0 %v2633
        %2704 = vmatprep.subr.bf16.mxu0 0
        %2705 = vmatpush1.bf16.msra.mxu0 %v2634
        %2706 = vmatprep.subr.bf16.mxu0 0
        %2707 = vmatpush1.bf16.msra.mxu0 %v2635
        %2708 = vmatprep.subr.bf16.mxu0 0
        %2709 = vmatpush1.bf16.msra.mxu0 %v2636
        %2710 = vmatprep.subr.bf16.mxu0 0
        %2711 = vmatpush1.bf16.msra.mxu0 %v2637
        %2712 = vmatprep.subr.bf16.mxu0 0
        %2713 = vmatpush1.bf16.msra.mxu0 %v2638
        %2714 = vmatprep.subr.bf16.mxu0 0
        %2715 = vmatpush1.bf16.msra.mxu0 %v2639
        %2716 = vmatprep.subr.bf16.mxu0 0
        %2717 = vmatpush1.bf16.msra.mxu0 %v2640
        %2718 = vmatprep.subr.bf16.mxu0 0
        %2719 = vmatpush1.bf16.msra.mxu0 %v2641
        %2720 = vmatprep.subr.bf16.mxu0 0
        %2721 = vmatpush1.bf16.msra.mxu0 %v2642
        %2722 = vmatprep.subr.bf16.mxu0 0
        %2723 = vmatpush1.bf16.msra.mxu0 %v2643
        %2724 = vmatprep.mubr.bf16.mxu0 %v2422
        %2725 = vmatmul.mubr.bf16.gmra.mrb[0].mxu0 %v2421
        %v2726 = vpop.f32.mrb[0].mxu0
        %v2727 = vadd.f32 %v2498, %v2726
        %v2728 = vpop.f32.mrb[0].mxu0
        %v2729 = vpop.f32.mrb[0].mxu0
        %v2730 = vadd.f32 %v2498, %v2729
        %v2731 = vpop.f32.mrb[0].mxu0
        %2732 = vmatprep.mubr.bf16.mxu0 %v2426
        %2733 = vmatmul.mubr.bf16.gmra.mrb[0].mxu0 %v2425
        %v2734 = vpop.f32.mrb[0].mxu0
        %v2735 = vadd.f32 %v2498, %v2734
        %v2736 = vpop.f32.mrb[0].mxu0
        %v2737 = vpop.f32.mrb[0].mxu0
        %v2738 = vadd.f32 %v2498, %v2737
        %v2739 = vpop.f32.mrb[0].mxu0
        %2740 = vdwg.mxu0
        %2741 = vmatprep.subr.bf16.mxu0 0
        %2742 = vmatpush1.bf16.msra.mxu0 %v2644
        %2743 = vmatprep.subr.bf16.mxu0 0
        %2744 = vmatpush1.bf16.msra.mxu0 %v2645
        %2745 = vmatprep.subr.bf16.mxu0 0
        %2746 = vmatpush1.bf16.msra.mxu0 %v2646
        %2747 = vmatprep.subr.bf16.mxu0 0
        %2748 = vmatpush1.bf16.msra.mxu0 %v2647
        %2749 = vmatprep.subr.bf16.mxu0 0
        %2750 = vmatpush1.bf16.msra.mxu0 %v2648
        %2751 = vmatprep.subr.bf16.mxu0 0
        %2752 = vmatpush1.bf16.msra.mxu0 %v2649
        %2753 = vmatprep.subr.bf16.mxu0 0
        %2754 = vmatpush1.bf16.msra.mxu0 %v2650
        %2755 = vmatprep.subr.bf16.mxu0 0
        %2756 = vmatpush1.bf16.msra.mxu0 %v2651
        %2757 = vmatprep.subr.bf16.mxu0 0
        %2758 = vmatpush1.bf16.msra.mxu0 %v2652
        %2759 = vmatprep.subr.bf16.mxu0 0
        %2760 = vmatpush1.bf16.msra.mxu0 %v2653
        %2761 = vmatprep.subr.bf16.mxu0 0
        %2762 = vmatpush1.bf16.msra.mxu0 %v2654
        %2763 = vmatprep.subr.bf16.mxu0 0
        %2764 = vmatpush1.bf16.msra.mxu0 %v2655
        %2765 = vmatprep.subr.bf16.mxu0 0
        %2766 = vmatpush1.bf16.msra.mxu0 %v2656
        %2767 = vmatprep.subr.bf16.mxu0 0
        %2768 = vmatpush1.bf16.msra.mxu0 %v2657
        %2769 = vmatprep.subr.bf16.mxu0 0
        %2770 = vmatpush1.bf16.msra.mxu0 %v2658
        %2771 = vmatprep.subr.bf16.mxu0 0
        %2772 = vmatpush1.bf16.msra.mxu0 %v2659
        %2773 = vmatprep.mubr.bf16.mxu0 %v2424
        %2774 = vmatmul.mubr.bf16.gmra.mrb[0].mxu0 %v2423
        %v2775 = vpop.f32.mrb[0].mxu0
        %v2776 = vadd.f32 %v2727, %v2775
        %v2777 = vpop.f32.mrb[0].mxu0
        %v2778 = vpop.f32.mrb[0].mxu0
        %v2779 = vadd.f32 %v2730, %v2778
        %v2780 = vpop.f32.mrb[0].mxu0
        %2781 = vmatprep.mubr.bf16.mxu0 %v2428
        %2782 = vmatmul.mubr.bf16.gmra.mrb[0].mxu0 %v2427
        %v2783 = vpop.f32.mrb[0].mxu0
        %v2784 = vadd.f32 %v2735, %v2783
        %v2785 = vpop.f32.mrb[0].mxu0
        %v2786 = vpop.f32.mrb[0].mxu0
        %v2787 = vadd.f32 %v2738, %v2786
        %v2788 = vpop.f32.mrb[0].mxu0
        %2789 = vdwg.mxu0
        %2790 = vst [vmem:[%s463] sm:$0xff] %v2776
        %2791 = vst [vmem:[%s463 + $0x8] sm:$0xff] %v2779
        %2792 = vst [vmem:[%s463 + $0x10] sm:$0xff] %v2784
        %2793 = vst [vmem:[%s463 + $0x18] sm:$0xff] %v2787
        %s2794 = sand.u32 %s274, 1
        %s2795 = scalar_lea.sflag [#allocation4], %s2794
        %s2796 = sand.u32 %s274, 1
        %s2797 = smul.addr %s2796, 32
        %s2798 = scalar_lea.vmem [#allocation11], %s2797
        // Predicated region
        $region85: #{tpu_custom_call.1} parent=63 // pred_check
          %p2799 = pneg %p284
        $region86: #{tpu_custom_call.1} parent=63 // pred_check_branch
          %2801 = sbr.rel (%p2799) target = $region88
        $region87: #{tpu_custom_call.1} parent=63 // pred_region
          %s2802 = smul.u32 2, %s30
          %s2804 = ssub.s32 512, 512
          %2805 = vsyncadd %s2795, %s2804
          %s2806 = smul.addr %s2802, 2
          %s2807 = smul.addr %s2806, 128
          %s2808 = scalar_lea.hbm %s11, %s2807
          %s2809 = sshll.u32 %s2798, 4
          %s2810 = int_to_ptr.vmem [resolvable:$true] %s2809
          %2815 = dma.vmem_to_hbm [thread:$0]  %s2810, 512, %s2808, %s2795, 128, 128, 8
        $region88: #{tpu_custom_call.1} parent=63 // pred_fallthru
          _
      $region64: #{tpu_custom_call.1} parent=5 // pred_fallthru
        _
      %p2816 = scmp.le.s32.totalorder 2, %s25
      // Predicated region
      $region89: #{tpu_custom_call.1} parent=5 // pred_check
        %p2817 = pneg %p2816
      $region90: #{tpu_custom_call.1} parent=5 // pred_check_branch
        %2819 = sbr.rel (%p2817) target = $region92
      $region91: #{tpu_custom_call.1} parent=5 // pred_region
        %s2820 = ssub.s32 %s25, 2
        // Predicated region
        $region93: #{tpu_custom_call.1} parent=91 // pred_check
          %p2821 = pneg %p290
        $region94: #{tpu_custom_call.1} parent=91 // pred_check_branch
          %2823 = sbr.rel (%p2821) target = $region96
        $region95: #{tpu_custom_call.1} parent=91 // pred_region
          %s2824 = sand.u32 %s275, 1
          %s2825 = scalar_lea.sflag [#allocation4], %s2824
          %s2826 = sand.u32 %s275, 1
          %s2827 = smul.addr %s2826, 32
          %s2828 = scalar_lea.vmem [#allocation11], %s2827
          %2829 = dma.done %s2825, 512
        $region96: #{tpu_custom_call.1} parent=91 // pred_fallthru
          _
      $region92: #{tpu_custom_call.1} parent=5 // pred_fallthru
        _
    $region6: #{tpu_custom_call.1} parent=1 // loop_footer
      %s29 = sadd.s32 1, %s25
    $region7: #{tpu_custom_call.1} parent=1 // loop_footer_branch
      %24 = sbr.rel target = $region3
    $region8: #{tpu_custom_call.1} parent=1 // loop_exit
      _
    %2830 = vsyncpa [#allocation3], 1
    %s2831 = scalar_lea.sflag [#allocation3], 1
    %2832 = vsyncpa %s2831, 1
    %2833 = vsyncpa [#allocation6], 1
    %2834 = vsyncpa [#allocation9], 1
    %2835 = vsyncpa [#allocation4], 1
    %s2836 = scalar_lea.sflag [#allocation4], 1
    %2837 = vsyncpa %s2836, 1

// kernel: tpu_custom_call.1
$region0: #{tpu_custom_call.1}
  #allocation0 [shape = 'u32[]', space=smem, size = 0x4, offset = 0x4, fixed_abs, tag = 'smem constant byte address 0x4 - core index']
  #allocation1 [shape = 'u32[144,128]{1,0:T(1,128)}', space=vmem, size = 0x12000, scoped, tag = 'internal scratch']
  %s0 = inlined_call_operand.hbm [shape: f32[4,16,128], index: 0, kind: input, shape index: {}]
  %s1 = inlined_call_operand.hbm [shape: bf16[128,384], index: 1, kind: input, shape index: {}]
  %s2 = inlined_call_operand.vmem [shape: f32[1,384], index: 2, kind: input, shape index: {}]
  %s3 = inlined_call_operand.hbm [shape: bf16[128,128], index: 3, kind: input, shape index: {}]
  %s4 = inlined_call_operand.vmem [shape: f32[1,128], index: 4, kind: input, shape index: {}]
  %s5 = inlined_call_operand.vmem [shape: f32[1,128], index: 5, kind: input, shape index: {}]
  %s6 = inlined_call_operand.vmem [shape: f32[1,128], index: 6, kind: input, shape index: {}]
  %s7 = inlined_call_operand.hbm [shape: bf16[128,512], index: 7, kind: input, shape index: {}]
  %s8 = inlined_call_operand.vmem [shape: f32[1,512], index: 8, kind: input, shape index: {}]
  %s9 = inlined_call_operand.hbm [shape: bf16[512,128], index: 9, kind: input, shape index: {}]
  %s10 = inlined_call_operand.vmem [shape: f32[1,128], index: 10, kind: input, shape index: {}]
  %s11 = inlined_call_operand.hbm [shape: f32[4,16,128], index: 11, kind: output, shape index: {}]
  %s12 = sld [smem:[#allocation0]]
  $region97: #{tpu_custom_call.1} parent=0
    _
  %s14 = ssub.s32 1, %s12
  %s15 = scalar_select 0, %s14, %s12
  $region1: #{tpu_custom_call.1} parent=0
    #allocation2 [shape = 'u8[32768]{0}', space=vmem, size = 0x8000, scoped, tag = 'input window, operand 0']
    #allocation3 [shape = 's32[2]{0}', space=sflag, size = 0x8, scoped, tag = 'scoped memory for tpu_custom_call.1']
    #allocation4 [shape = 's32[2]{0}', space=sflag, size = 0x8, scoped, tag = 'scoped memory for tpu_custom_call.1']
    #allocation5 [shape = 'u8[98304]{0}', space=vmem, size = 0x18000, scoped, tag = 'input window, operand 1, single buffered']
    #allocation6 [shape = 's32[1]{0}', space=sflag, size = 0x4, scoped, tag = 'scoped memory for tpu_custom_call.1']
    #allocation7 [shape = 'u8[32768]{0}', space=vmem, size = 0x8000, scoped, tag = 'input window, operand 3, single buffered']
    #allocation8 [shape = 'u8[131072]{0}', space=vmem, size = 0x20000, scoped, tag = 'input window, operand 7, single buffered']
    #allocation9 [shape = 's32[1]{0}', space=sflag, size = 0x4, scoped, tag = 'scoped memory for tpu_custom_call.1']
    #allocation10 [shape = 'u8[131072]{0}', space=vmem, size = 0x20000, scoped, tag = 'input window, operand 9, single buffered']
    #allocation11 [shape = 'u8[32768]{0}', space=vmem, size = 0x8000, scoped, tag = 'output window, operand 0']
    %16 = vsyncpa [#allocation3], 0
    %s17 = scalar_lea.sflag [#allocation3], 1
    %18 = vsyncpa %s17, 0
    %19 = vsyncpa [#allocation6], 0
    %20 = vsyncpa [#allocation9], 0
    %21 = vsyncpa [#allocation4], 0
    %s22 = scalar_lea.sflag [#allocation4], 1
    %23 = vsyncpa %s22, 0
    loop: start=0, step=1, limit=4
    $region2: #{tpu_custom_call.1} parent=1 // loop_pre_header
      _
    $region3: #{tpu_custom_call.1} parent=1 // loop_header
      %s25 = sphi 0, %s29
      %p26 = scmp.ge.s32.totalorder %s25, 4
      %s35 = sphi 0, %s37
      %s38 = sphi 0, %s35
      %s39 = sphi 0, %s38
      %s55 = sphi 0, %s39
      %s59 = sphi 0, %s59
      %s61 = sphi 0, %s59
      %s62 = sphi 0, %s61
      %s76 = sphi 0, %s62
      %s80 = sphi 0, %s80
      %s82 = sphi 0, %s80
      %s83 = sphi 0, %s82
      %s97 = sphi 0, %s83
      %s101 = sphi 0, %s101
      %s103 = sphi 0, %s101
      %s104 = sphi 0, %s103
      %s118 = sphi 0, %s104
      %s122 = sphi 0, %s122
      %s124 = sphi 0, %s122
      %s125 = sphi 0, %s124
      %s139 = sphi 0, %s125
      %s143 = sphi 0, %s143
      %s145 = sphi 0, %s143
      %s146 = sphi 0, %s145
      %s160 = sphi 0, %s146
      %s164 = sphi 0, %s164
      %s166 = sphi 0, %s164
      %s167 = sphi 0, %s166
      %s181 = sphi 0, %s167
      %s185 = sphi 0, %s185
      %s187 = sphi 0, %s185
      %s188 = sphi 0, %s187
      %s202 = sphi 0, %s188
      %s206 = sphi 0, %s206
      %s208 = sphi 0, %s206
      %s209 = sphi 0, %s208
      %s223 = sphi 0, %s209
      %s227 = sphi 0, %s227
      %s229 = sphi 0, %s227
      %s230 = sphi 0, %s229
      %s244 = sphi 0, %s230
      %s248 = sphi 0, %s248
      %s250 = sphi 0, %s248
      %s251 = sphi 0, %s250
      %s265 = sphi 0, %s251
      %s271 = sphi 0, %s273
      %s274 = sphi 0, %s271
      %s275 = sphi 0, %s274
      %s291 = sphi 0, %s275
    $region4: #{tpu_custom_call.1} parent=1 // loop_header_branch
      %28 = sbr.rel (%p26) target = $region8
    $region5: #{tpu_custom_call.1} parent=1 // loop_body
      %s30 = ssub.s32 %s25, 1
      %s31 = ssub.s32 %s25, 2
      %s32 = sadd.s32 %s25, 1
      %s33 = ssub.s32 %s25, %s32
      %p34 = scmp.eq.s32.totalorder %s33, 0
      %s36 = sadd.s32 %s35, 1
      %s37 = scalar_select %p34, %s35, %s36
      %p40 = pneg %p34
      %p41 = scmp.eq.s32.totalorder %s25, 1
      %p42 = por %p40, %p41
      %p43 = scmp.ne.s32.totalorder %s35, %s38
      %p44 = scmp.eq.s32.totalorder %s25, 0
      %p45 = por %p43, %p44
      %p46 = scmp.ne.s32.totalorder %s35, %s38
      %p47 = scmp.eq.s32.totalorder %s30, 1
      %p48 = por %p46, %p47
      %p49 = scmp.ne.s32.totalorder %s38, %s39
      %p50 = scmp.eq.s32.totalorder %s30, 0
      %p51 = por %p49, %p50
      %p52 = scmp.ne.s32.totalorder %s38, %s39
      %p53 = scmp.eq.s32.totalorder %s31, 1
      %p54 = por %p52, %p53
      %p56 = scmp.ne.s32.totalorder %s39, %s55
      %p57 = scmp.eq.s32.totalorder %s31, 0
      %p58 = por %p56, %p57
      %s60 = sadd.s32 %s59, 1
      %p63 = scmp.eq.s32.totalorder %s25, 1
      %p64 = scmp.ne.s32.totalorder %s59, %s61
      %p65 = scmp.eq.s32.totalorder %s25, 0
      %p66 = por %p64, %p65
      %p67 = scmp.ne.s32.totalorder %s59, %s61
      %p68 = scmp.eq.s32.totalorder %s30, 1
      %p69 = por %p67, %p68
      %p70 = scmp.ne.s32.totalorder %s61, %s62
      %p71 = scmp.eq.s32.totalorder %s30, 0
      %p72 = por %p70, %p71
      %p73 = scmp.ne.s32.totalorder %s61, %s62
      %p74 = scmp.eq.s32.totalorder %s31, 1
      %p75 = por %p73, %p74
      %p77 = scmp.ne.s32.totalorder %s62, %s76
      %p78 = scmp.eq.s32.totalorder %s31, 0
      %p79 = por %p77, %p78
      %s81 = sadd.s32 %s80, 1
      %p84 = scmp.eq.s32.totalorder %s25, 1
      %p85 = scmp.ne.s32.totalorder %s80, %s82
      %p86 = scmp.eq.s32.totalorder %s25, 0
      %p87 = por %p85, %p86
      %p88 = scmp.ne.s32.totalorder %s80, %s82
      %p89 = scmp.eq.s32.totalorder %s30, 1
      %p90 = por %p88, %p89
      %p91 = scmp.ne.s32.totalorder %s82, %s83
      %p92 = scmp.eq.s32.totalorder %s30, 0
      %p93 = por %p91, %p92
      %p94 = scmp.ne.s32.totalorder %s82, %s83
      %p95 = scmp.eq.s32.totalorder %s31, 1
      %p96 = por %p94, %p95
      %p98 = scmp.ne.s32.totalorder %s83, %s97
      %p99 = scmp.eq.s32.totalorder %s31, 0
      %p100 = por %p98, %p99
      %s102 = sadd.s32 %s101, 1
      %p105 = scmp.eq.s32.totalorder %s25, 1
      %p106 = scmp.ne.s32.totalorder %s101, %s103
      %p107 = scmp.eq.s32.totalorder %s25, 0
      %p108 = por %p106, %p107
      %p109 = scmp.ne.s32.totalorder %s101, %s103
      %p110 = scmp.eq.s32.totalorder %s30, 1
      %p111 = por %p109, %p110
      %p112 = scmp.ne.s32.totalorder %s103, %s104
      %p113 = scmp.eq.s32.totalorder %s30, 0
      %p114 = por %p112, %p113
      %p115 = scmp.ne.s32.totalorder %s103, %s104
      %p116 = scmp.eq.s32.totalorder %s31, 1
      %p117 = por %p115, %p116
      %p119 = scmp.ne.s32.totalorder %s104, %s118
      %p120 = scmp.eq.s32.totalorder %s31, 0
      %p121 = por %p119, %p120
      %s123 = sadd.s32 %s122, 1
      %p126 = scmp.eq.s32.totalorder %s25, 1
      %p127 = scmp.ne.s32.totalorder %s122, %s124
      %p128 = scmp.eq.s32.totalorder %s25, 0
      %p129 = por %p127, %p128
      %p130 = scmp.ne.s32.totalorder %s122, %s124
      %p131 = scmp.eq.s32.totalorder %s30, 1
      %p132 = por %p130, %p131
      %p133 = scmp.ne.s32.totalorder %s124, %s125
      %p134 = scmp.eq.s32.totalorder %s30, 0
      %p135 = por %p133, %p134
      %p136 = scmp.ne.s32.totalorder %s124, %s125
      %p137 = scmp.eq.s32.totalorder %s31, 1
      %p138 = por %p136, %p137
      %p140 = scmp.ne.s32.totalorder %s125, %s139
      %p141 = scmp.eq.s32.totalorder %s31, 0
      %p142 = por %p140, %p141
      %s144 = sadd.s32 %s143, 1
      %p147 = scmp.eq.s32.totalorder %s25, 1
      %p148 = scmp.ne.s32.totalorder %s143, %s145
      %p149 = scmp.eq.s32.totalorder %s25, 0
      %p150 = por %p148, %p149
      %p151 = scmp.ne.s32.totalorder %s143, %s145
      %p152 = scmp.eq.s32.totalorder %s30, 1
      %p153 = por %p151, %p152
      %p154 = scmp.ne.s32.totalorder %s145, %s146
      %p155 = scmp.eq.s32.totalorder %s30, 0
      %p156 = por %p154, %p155
      %p157 = scmp.ne.s32.totalorder %s145, %s146
      %p158 = scmp.eq.s32.totalorder %s31, 1
      %p159 = por %p157, %p158
      %p161 = scmp.ne.s32.totalorder %s146, %s160
      %p162 = scmp.eq.s32.totalorder %s31, 0
      %p163 = por %p161, %p162
      %s165 = sadd.s32 %s164, 1
      %p168 = scmp.eq.s32.totalorder %s25, 1
      %p169 = scmp.ne.s32.totalorder %s164, %s166
      %p170 = scmp.eq.s32.totalorder %s25, 0
      %p171 = por %p169, %p170
      %p172 = scmp.ne.s32.totalorder %s164, %s166
      %p173 = scmp.eq.s32.totalorder %s30, 1
      %p174 = por %p172, %p173
      %p175 = scmp.ne.s32.totalorder %s166, %s167
      %p176 = scmp.eq.s32.totalorder %s30, 0
      %p177 = por %p175, %p176
      %p178 = scmp.ne.s32.totalorder %s166, %s167
      %p179 = scmp.eq.s32.totalorder %s31, 1
      %p180 = por %p178, %p179
      %p182 = scmp.ne.s32.totalorder %s167, %s181
      %p183 = scmp.eq.s32.totalorder %s31, 0
      %p184 = por %p182, %p183
      %s186 = sadd.s32 %s185, 1
      %p189 = scmp.eq.s32.totalorder %s25, 1
      %p190 = scmp.ne.s32.totalorder %s185, %s187
      %p191 = scmp.eq.s32.totalorder %s25, 0
      %p192 = por %p190, %p191
      %p193 = scmp.ne.s32.totalorder %s185, %s187
      %p194 = scmp.eq.s32.totalorder %s30, 1
      %p195 = por %p193, %p194
      %p196 = scmp.ne.s32.totalorder %s187, %s188
      %p197 = scmp.eq.s32.totalorder %s30, 0
      %p198 = por %p196, %p197
      %p199 = scmp.ne.s32.totalorder %s187, %s188
      %p200 = scmp.eq.s32.totalorder %s31, 1
      %p201 = por %p199, %p200
      %p203 = scmp.ne.s32.totalorder %s188, %s202
      %p204 = scmp.eq.s32.totalorder %s31, 0
      %p205 = por %p203, %p204
      %s207 = sadd.s32 %s206, 1
      %p210 = scmp.eq.s32.totalorder %s25, 1
      %p211 = scmp.ne.s32.totalorder %s206, %s208
      %p212 = scmp.eq.s32.totalorder %s25, 0
      %p213 = por %p211, %p212
      %p214 = scmp.ne.s32.totalorder %s206, %s208
      %p215 = scmp.eq.s32.totalorder %s30, 1
      %p216 = por %p214, %p215
      %p217 = scmp.ne.s32.totalorder %s208, %s209
      %p218 = scmp.eq.s32.totalorder %s30, 0
      %p219 = por %p217, %p218
      %p220 = scmp.ne.s32.totalorder %s208, %s209
      %p221 = scmp.eq.s32.totalorder %s31, 1
      %p222 = por %p220, %p221
      %p224 = scmp.ne.s32.totalorder %s209, %s223
      %p225 = scmp.eq.s32.totalorder %s31, 0
      %p226 = por %p224, %p225
      %s228 = sadd.s32 %s227, 1
      %p231 = scmp.eq.s32.totalorder %s25, 1
      %p232 = scmp.ne.s32.totalorder %s227, %s229
      %p233 = scmp.eq.s32.totalorder %s25, 0
      %p234 = por %p232, %p233
      %p235 = scmp.ne.s32.totalorder %s227, %s229
      %p236 = scmp.eq.s32.totalorder %s30, 1
      %p237 = por %p235, %p236
      %p238 = scmp.ne.s32.totalorder %s229, %s230
      %p239 = scmp.eq.s32.totalorder %s30, 0
      %p240 = por %p238, %p239
      %p241 = scmp.ne.s32.totalorder %s229, %s230
      %p242 = scmp.eq.s32.totalorder %s31, 1
      %p243 = por %p241, %p242
      %p245 = scmp.ne.s32.totalorder %s230, %s244
      %p246 = scmp.eq.s32.totalorder %s31, 0
      %p247 = por %p245, %p246
      %s249 = sadd.s32 %s248, 1
      %p252 = scmp.eq.s32.totalorder %s25, 1
      %p253 = scmp.ne.s32.totalorder %s248, %s250
      %p254 = scmp.eq.s32.totalorder %s25, 0
      %p255 = por %p253, %p254
      %p256 = scmp.ne.s32.totalorder %s248, %s250
      %p257 = scmp.eq.s32.totalorder %s30, 1
      %p258 = por %p256, %p257
      %p259 = scmp.ne.s32.totalorder %s250, %s251
      %p260 = scmp.eq.s32.totalorder %s30, 0
      %p261 = por %p259, %p260
      %p262 = scmp.ne.s32.totalorder %s250, %s251
      %p263 = scmp.eq.s32.totalorder %s31, 1
      %p264 = por %p262, %p263
      %p266 = scmp.ne.s32.totalorder %s251, %s265
      %p267 = scmp.eq.s32.totalorder %s31, 0
      %p268 = por %p266, %p267
      %s269 = ssub.s32 %s25, %s32
      %p270 = scmp.eq.s32.totalorder %s269, 0
      %s272 = sadd.s32 %s271, 1
      %s273 = scalar_select %p270, %s271, %s272
      %p276 = pneg %p270
      %p277 = scmp.eq.s32.totalorder %s25, 1
      %p278 = por %p276, %p277
      %p279 = scmp.ne.s32.totalorder %s271, %s274
      %p280 = scmp.eq.s32.totalorder %s25, 0
      %p281 = por %p279, %p280
      %p282 = scmp.ne.s32.totalorder %s271, %s274
      %p283 = scmp.eq.s32.totalorder %s30, 1
      %p284 = por %p282, %p283
      %p285 = scmp.ne.s32.totalorder %s274, %s275
      %p286 = scmp.eq.s32.totalorder %s30, 0
      %p287 = por %p285, %p286
      %p288 = scmp.ne.s32.totalorder %s274, %s275
      %p289 = scmp.eq.s32.totalorder %s31, 1
      %p290 = por %p288, %p289
      %p292 = scmp.ne.s32.totalorder %s275, %s291
      %p293 = scmp.eq.s32.totalorder %s31, 0
      %p294 = por %p292, %p293
      %p295 = scmp.le.s32.totalorder 1, %s25
      %p296 = scmp.lt.s32.totalorder %s25, 3
      %p297 = pnand %p295, %p296
      %p298 = pneg %p297
      // Predicated region
      $region9: #{tpu_custom_call.1} parent=5 // pred_check
        _
      $region10: #{tpu_custom_call.1} parent=5 // pred_check_branch
        %300 = sbr.rel (%p297) target = $region12
      $region11: #{tpu_custom_call.1} parent=5 // pred_region
        %s301 = ssub.s32 %s25, 1
        // Predicated region
        $region13: #{tpu_custom_call.1} parent=11 // pred_check
          %p302 = pneg %p72
        $region14: #{tpu_custom_call.1} parent=11 // pred_check_branch
          %304 = sbr.rel (%p302) target = $region16
        $region15: #{tpu_custom_call.1} parent=11 // pred_region
          %s306 = ssub.s32 3072, 3072
          %307 = vsyncadd [#allocation6], %s306
          %s308 = sshll.u32 [#allocation5], 4
          %s309 = int_to_ptr.vmem [resolvable:$true] %s308
          %314 = dma.hbm_to_vmem [thread:$0]  %s1, 3072, %s309, [#allocation6], 192, 192, 12
        $region16: #{tpu_custom_call.1} parent=11 // pred_fallthru
          _
        // Predicated region
        $region17: #{tpu_custom_call.1} parent=11 // pred_check
          %p315 = pneg %p93
        $region18: #{tpu_custom_call.1} parent=11 // pred_check_branch
          %317 = sbr.rel (%p315) target = $region20
        $region19: #{tpu_custom_call.1} parent=11 // pred_region
          _
        $region20: #{tpu_custom_call.1} parent=11 // pred_fallthru
          _
        // Predicated region
        $region21: #{tpu_custom_call.1} parent=11 // pred_check
          %p318 = pneg %p114
        $region22: #{tpu_custom_call.1} parent=11 // pred_check_branch
          %320 = sbr.rel (%p318) target = $region24
        $region23: #{tpu_custom_call.1} parent=11 // pred_region
          %s322 = ssub.s32 1024, 1024
          %323 = vsyncadd [#allocation6], %s322
          %s324 = sshll.u32 [#allocation7], 4
          %s325 = int_to_ptr.vmem [resolvable:$true] %s324
          %330 = dma.hbm_to_vmem [thread:$0]  %s3, 1024, %s325, [#allocation6], 64, 64, 4
        $region24: #{tpu_custom_call.1} parent=11 // pred_fallthru
          _
        // Predicated region
        $region25: #{tpu_custom_call.1} parent=11 // pred_check
          %p331 = pneg %p135
        $region26: #{tpu_custom_call.1} parent=11 // pred_check_branch
          %333 = sbr.rel (%p331) target = $region28
        $region27: #{tpu_custom_call.1} parent=11 // pred_region
          _
        $region28: #{tpu_custom_call.1} parent=11 // pred_fallthru
          _
        // Predicated region
        $region29: #{tpu_custom_call.1} parent=11 // pred_check
          %p334 = pneg %p156
        $region30: #{tpu_custom_call.1} parent=11 // pred_check_branch
          %336 = sbr.rel (%p334) target = $region32
        $region31: #{tpu_custom_call.1} parent=11 // pred_region
          _
        $region32: #{tpu_custom_call.1} parent=11 // pred_fallthru
          _
        // Predicated region
        $region33: #{tpu_custom_call.1} parent=11 // pred_check
          %p337 = pneg %p177
        $region34: #{tpu_custom_call.1} parent=11 // pred_check_branch
          %339 = sbr.rel (%p337) target = $region36
        $region35: #{tpu_custom_call.1} parent=11 // pred_region
          _
        $region36: #{tpu_custom_call.1} parent=11 // pred_fallthru
          _
        // Predicated region
        $region37: #{tpu_custom_call.1} parent=11 // pred_check
          %p340 = pneg %p198
        $region38: #{tpu_custom_call.1} parent=11 // pred_check_branch
          %342 = sbr.rel (%p340) target = $region40
        $region39: #{tpu_custom_call.1} parent=11 // pred_region
          %s344 = ssub.s32 4096, 4096
          %345 = vsyncadd [#allocation9], %s344
          %s346 = sshll.u32 [#allocation8], 4
          %s347 = int_to_ptr.vmem [resolvable:$true] %s346
          %352 = dma.hbm_to_vmem [thread:$0]  %s7, 4096, %s347, [#allocation9], 256, 256, 16
        $region40: #{tpu_custom_call.1} parent=11 // pred_fallthru
          _
        // Predicated region
        $region41: #{tpu_custom_call.1} parent=11 // pred_check
          %p353 = pneg %p219
        $region42: #{tpu_custom_call.1} parent=11 // pred_check_branch
          %355 = sbr.rel (%p353) target = $region44
        $region43: #{tpu_custom_call.1} parent=11 // pred_region
          _
        $region44: #{tpu_custom_call.1} parent=11 // pred_fallthru
          _
        // Predicated region
        $region45: #{tpu_custom_call.1} parent=11 // pred_check
          %p356 = pneg %p240
        $region46: #{tpu_custom_call.1} parent=11 // pred_check_branch
          %358 = sbr.rel (%p356) target = $region48
        $region47: #{tpu_custom_call.1} parent=11 // pred_region
          %s360 = ssub.s32 4096, 4096
          %361 = vsyncadd [#allocation9], %s360
          %s362 = sshll.u32 [#allocation10], 4
          %s363 = int_to_ptr.vmem [resolvable:$true] %s362
          %368 = dma.hbm_to_vmem [thread:$0]  %s9, 4096, %s363, [#allocation9], 64, 64, 4
        $region48: #{tpu_custom_call.1} parent=11 // pred_fallthru
          _
        // Predicated region
        $region49: #{tpu_custom_call.1} parent=11 // pred_check
          %p369 = pneg %p261
        $region50: #{tpu_custom_call.1} parent=11 // pred_check_branch
          %371 = sbr.rel (%p369) target = $region52
        $region51: #{tpu_custom_call.1} parent=11 // pred_region
          _
        $region52: #{tpu_custom_call.1} parent=11 // pred_fallthru
          _
      $region12: #{tpu_custom_call.1} parent=5 // pred_fallthru
        _
      %p372 = scmp.lt.s32.totalorder %s25, 2
      // Predicated region
      $region53: #{tpu_custom_call.1} parent=5 // pred_check
        %p373 = pneg %p372
      $region54: #{tpu_custom_call.1} parent=5 // pred_check_branch
        %375 = sbr.rel (%p373) target = $region56
      $region55: #{tpu_custom_call.1} parent=5 // pred_region
        // Predicated region
        $region57: #{tpu_custom_call.1} parent=55 // pred_check
          %p376 = pneg %p45
        $region58: #{tpu_custom_call.1} parent=55 // pred_check_branch
          %378 = sbr.rel (%p376) target = $region60
        $region59: #{tpu_custom_call.1} parent=55 // pred_region
          %s379 = sand.u32 %s35, 1
          %s380 = scalar_lea.sflag [#allocation3], %s379
          %s381 = sand.u32 %s35, 1
          %s382 = smul.addr %s381, 32
          %s383 = scalar_lea.vmem [#allocation2], %s382
          %s384 = smul.u32 2, %s25
          %s386 = ssub.s32 512, 512
          %387 = vsyncadd %s380, %s386
          %s388 = smul.addr %s384, 2
          %s389 = smul.addr %s388, 128
          %s390 = scalar_lea.hbm %s0, %s389
          %s391 = sshll.u32 %s383, 4
          %s392 = int_to_ptr.vmem [resolvable:$true] %s391
          %397 = dma.hbm_to_vmem [thread:$0]  %s390, 512, %s392, %s380, 128, 128, 8
        $region60: #{tpu_custom_call.1} parent=55 // pred_fallthru
          _
      $region56: #{tpu_custom_call.1} parent=5 // pred_fallthru
        _
      %p398 = scmp.le.s32.totalorder 1, %s25
      %p399 = scmp.lt.s32.totalorder %s25, 3
      %p400 = pnand %p398, %p399
      %p401 = pneg %p400
      // Predicated region
      $region61: #{tpu_custom_call.1} parent=5 // pred_check
        _
      $region62: #{tpu_custom_call.1} parent=5 // pred_check_branch
        %403 = sbr.rel (%p400) target = $region64
      $region63: #{tpu_custom_call.1} parent=5 // pred_region
        %s404 = ssub.s32 %s25, 1
        %s405 = sand.u32 %s38, 1
        %s406 = scalar_lea.sflag [#allocation3], %s405
        %s407 = sand.u32 %s38, 1
        %s408 = smul.addr %s407, 32
        %s409 = scalar_lea.vmem [#allocation2], %s408
        // Predicated region
        $region65: #{tpu_custom_call.1} parent=63 // pred_check
          %p410 = pneg %p51
        $region66: #{tpu_custom_call.1} parent=63 // pred_check_branch
          %412 = sbr.rel (%p410) target = $region68
        $region67: #{tpu_custom_call.1} parent=63 // pred_region
          %413 = dma.done %s406, 512
        $region68: #{tpu_custom_call.1} parent=63 // pred_fallthru
          _
        // Predicated region
        $region69: #{tpu_custom_call.1} parent=63 // pred_check
          %p414 = pneg %p72
        $region70: #{tpu_custom_call.1} parent=63 // pred_check_branch
          %416 = sbr.rel (%p414) target = $region72
        $region71: #{tpu_custom_call.1} parent=63 // pred_region
          %417 = dma.done [#allocation6], 3072
        $region72: #{tpu_custom_call.1} parent=63 // pred_fallthru
          _
        // Predicated region
        $region73: #{tpu_custom_call.1} parent=63 // pred_check
          %p418 = pneg %p114
        $region74: #{tpu_custom_call.1} parent=63 // pred_check_branch
          %420 = sbr.rel (%p418) target = $region76
        $region75: #{tpu_custom_call.1} parent=63 // pred_region
          %421 = dma.done [#allocation6], 1024
        $region76: #{tpu_custom_call.1} parent=63 // pred_fallthru
          _
        // Predicated region
        $region77: #{tpu_custom_call.1} parent=63 // pred_check
          %p422 = pneg %p198
        $region78: #{tpu_custom_call.1} parent=63 // pred_check_branch
          %424 = sbr.rel (%p422) target = $region80
        $region79: #{tpu_custom_call.1} parent=63 // pred_region
          %425 = dma.done [#allocation9], 4096
        $region80: #{tpu_custom_call.1} parent=63 // pred_fallthru
          _
        // Predicated region
        $region81: #{tpu_custom_call.1} parent=63 // pred_check
          %p426 = pneg %p240
        $region82: #{tpu_custom_call.1} parent=63 // pred_check_branch
          %428 = sbr.rel (%p426) target = $region84
        $region83: #{tpu_custom_call.1} parent=63 // pred_region
          %429 = dma.done [#allocation9], 4096
        $region84: #{tpu_custom_call.1} parent=63 // pred_fallthru
          _
        %s430 = sand.u32 %s38, 1
        %s431 = scalar_lea.sflag [#allocation3], %s430
        %s432 = sand.u32 %s38, 1
        %s433 = smul.addr %s432, 32
        %s434 = scalar_lea.vmem [#allocation2], %s433
        %p435 = pneg %p51
        %p436 = pneg %p48
        %p437 = pneg %p72
        %p438 = pneg %p69
        %p439 = pneg %p93
        %p440 = pneg %p90
        %p441 = pneg %p114
        %p442 = pneg %p111
        %p443 = pneg %p135
        %p444 = pneg %p132
        %p445 = pneg %p156
        %p446 = pneg %p153
        %p447 = pneg %p177
        %p448 = pneg %p174
        %p449 = pneg %p198
        %p450 = pneg %p195
        %p451 = pneg %p219
        %p452 = pneg %p216
        %p453 = pneg %p240
        %p454 = pneg %p237
        %p455 = pneg %p261
        %p456 = pneg %p258
        %p457 = pneg %p287
        %p458 = pneg %p284
        %s459 = sand.u32 %s274, 1
        %s460 = scalar_lea.sflag [#allocation4], %s459
        %s461 = sand.u32 %s274, 1
        %s462 = smul.addr %s461, 32
        %s463 = scalar_lea.vmem [#allocation11], %s462
        %s464 = smul.u32 2, %s30
        %s465 = smul.u32 2, %s30
        %v467 = vld [vmem:[%s409] sm:$0xff]
        %v468 = vld [vmem:[%s409 + $0x8] sm:$0xff]
        %v469 = vld [vmem:[%s409 + $0x10] sm:$0xff]
        %v470 = vld [vmem:[%s409 + $0x18] sm:$0xff]
        %v471 = vpack.c.bf16 %v468, %v467
        %v472 = vpack.c.bf16 %v470, %v469
        %v473 = vld [vmem:[#allocation5] sm:$0xff]
        %v474 = vld [vmem:[#allocation5 + $0x8] sm:$0xf]
        %v475 = vld [vmem:[#allocation5 + $0xc] sm:$0xff]
        %v476 = vld [vmem:[#allocation5 + $0x14] sm:$0xf]
        %v477 = vld [vmem:[#allocation5 + $0x18] sm:$0xff]
        %v478 = vld [vmem:[#allocation5 + $0x20] sm:$0xf]
        %v479 = vld [vmem:[#allocation5 + $0x24] sm:$0xff]
        %v480 = vld [vmem:[#allocation5 + $0x2c] sm:$0xf]
        %v481 = vld [vmem:[#allocation5 + $0x30] sm:$0xff]
        %v482 = vld [vmem:[#allocation5 + $0x38] sm:$0xf]
        %v483 = vld [vmem:[#allocation5 + $0x3c] sm:$0xff]
        %v484 = vld [vmem:[#allocation5 + $0x44] sm:$0xf]
        %v485 = vld [vmem:[#allocation5 + $0x48] sm:$0xff]
        %v486 = vld [vmem:[#allocation5 + $0x50] sm:$0xf]
        %v487 = vld [vmem:[#allocation5 + $0x54] sm:$0xff]
        %v488 = vld [vmem:[#allocation5 + $0x5c] sm:$0xf]
        %v489 = vld [vmem:[#allocation5 + $0x60] sm:$0xff]
        %v490 = vld [vmem:[#allocation5 + $0x68] sm:$0xf]
        %v491 = vld [vmem:[#allocation5 + $0x6c] sm:$0xff]
        %v492 = vld [vmem:[#allocation5 + $0x74] sm:$0xf]
        %v493 = vld [vmem:[#allocation5 + $0x78] sm:$0xff]
        %v494 = vld [vmem:[#allocation5 + $0x80] sm:$0xf]
        %v495 = vld [vmem:[#allocation5 + $0x84] sm:$0xff]
        %v496 = vld [vmem:[#allocation5 + $0x8c] sm:$0xf]
        %v497 = vld [vmem:[#allocation5 + $0x90] sm:$0xff]
        %v498 = vld [vmem:[#allocation5 + $0x98] sm:$0xf]
        %v499 = vld [vmem:[#allocation5 + $0x9c] sm:$0xff]
        %v500 = vld [vmem:[#allocation5 + $0xa4] sm:$0xf]
        %v501 = vld [vmem:[#allocation5 + $0xa8] sm:$0xff]
        %v502 = vld [vmem:[#allocation5 + $0xb0] sm:$0xf]
        %v503 = vld [vmem:[#allocation5 + $0xb4] sm:$0xff]
        %v504 = vld [vmem:[#allocation5 + $0xbc] sm:$0xf]
        %v505 = vld [vmem:[%s2] sm:$0x7]
        %v507 = vlaneseq
        %v508 = vshrl.u32 %v507, 7
        %v509 = vsub.s32 0, %v508
        %v510 = vrot.slane %v505, %v509
        %v511 = vlaneseq
        %v512 = vshrl.u32 %v511, 7
        %v513 = vsub.s32 1, %v512
        %v514 = vrot.slane %v505, %v513
        %v515 = vlaneseq
        %v516 = vshrl.u32 %v515, 7
        %v517 = vsub.s32 2, %v516
        %v518 = vrot.slane %v505, %v517
        %v554 = vunpack.c.l.b16 %v473
        %v555 = vunpack.c.h.b16 %v473
        %v556 = vunpack.c.l.b16 %v474
        %v557 = vunpack.c.l.b16 %v475
        %v558 = vunpack.c.h.b16 %v475
        %v559 = vunpack.c.l.b16 %v476
        %v560 = vunpack.c.l.b16 %v477
        %v561 = vunpack.c.h.b16 %v477
        %v562 = vunpack.c.l.b16 %v478
        %v563 = vunpack.c.l.b16 %v479
        %v564 = vunpack.c.h.b16 %v479
        %v565 = vunpack.c.l.b16 %v480
        %v566 = vunpack.c.l.b16 %v481
        %v567 = vunpack.c.h.b16 %v481
        %v568 = vunpack.c.l.b16 %v482
        %v569 = vunpack.c.l.b16 %v483
        %v570 = vunpack.c.h.b16 %v483
        %v571 = vunpack.c.l.b16 %v484
        %v572 = vunpack.c.l.b16 %v485
        %v573 = vunpack.c.h.b16 %v485
        %v574 = vunpack.c.l.b16 %v486
        %v575 = vunpack.c.l.b16 %v487
        %v576 = vunpack.c.h.b16 %v487
        %v577 = vunpack.c.l.b16 %v488
        %v578 = vunpack.c.l.b16 %v489
        %v579 = vunpack.c.h.b16 %v489
        %v580 = vunpack.c.l.b16 %v490
        %v581 = vunpack.c.l.b16 %v491
        %v582 = vunpack.c.h.b16 %v491
        %v583 = vunpack.c.l.b16 %v492
        %v584 = vunpack.c.l.b16 %v493
        %v585 = vunpack.c.h.b16 %v493
        %v586 = vunpack.c.l.b16 %v494
        %v587 = vunpack.c.l.b16 %v495
        %v588 = vunpack.c.h.b16 %v495
        %v589 = vunpack.c.l.b16 %v496
        %v590 = vunpack.c.l.b16 %v497
        %v591 = vunpack.c.h.b16 %v497
        %v592 = vunpack.c.l.b16 %v498
        %v593 = vunpack.c.l.b16 %v499
        %v594 = vunpack.c.h.b16 %v499
        %v595 = vunpack.c.l.b16 %v500
        %v596 = vunpack.c.l.b16 %v501
        %v597 = vunpack.c.h.b16 %v501
        %v598 = vunpack.c.l.b16 %v502
        %v599 = vunpack.c.l.b16 %v503
        %v600 = vunpack.c.h.b16 %v503
        %v601 = vunpack.c.l.b16 %v504
        %v602 = vpack.c.b16 %v557, %v554
        %v603 = vpack.c.b16 %v558, %v555
        %v604 = vpack.c.b16 %v559, %v556
        %v605 = vpack.c.b16 %v563, %v560
        %v606 = vpack.c.b16 %v564, %v561
        %v607 = vpack.c.b16 %v565, %v562
        %v608 = vpack.c.b16 %v569, %v566
        %v609 = vpack.c.b16 %v570, %v567
        %v610 = vpack.c.b16 %v571, %v568
        %v611 = vpack.c.b16 %v575, %v572
        %v612 = vpack.c.b16 %v576, %v573
        %v613 = vpack.c.b16 %v577, %v574
        %v614 = vpack.c.b16 %v581, %v578
        %v615 = vpack.c.b16 %v582, %v579
        %v616 = vpack.c.b16 %v583, %v580
        %v617 = vpack.c.b16 %v587, %v584
        %v618 = vpack.c.b16 %v588, %v585
        %v619 = vpack.c.b16 %v589, %v586
        %v620 = vpack.c.b16 %v593, %v590
        %v621 = vpack.c.b16 %v594, %v591
        %v622 = vpack.c.b16 %v595, %v592
        %v623 = vpack.c.b16 %v599, %v596
        %v624 = vpack.c.b16 %v600, %v597
        %v625 = vpack.c.b16 %v601, %v598
        %650 = vmatprep.subr.bf16.mxu0 %v603
        %651 = vmatpush1.bf16.msra.mxu0 %v602
        %652 = vmatprep.subr.bf16.mxu0 %v606
        %653 = vmatpush1.bf16.msra.mxu0 %v605
        %654 = vmatprep.subr.bf16.mxu0 %v609
        %655 = vmatpush1.bf16.msra.mxu0 %v608
        %656 = vmatprep.subr.bf16.mxu0 %v612
        %657 = vmatpush1.bf16.msra.mxu0 %v611
        %658 = vmatprep.subr.bf16.mxu0 %v615
        %659 = vmatpush1.bf16.msra.mxu0 %v614
        %660 = vmatprep.subr.bf16.mxu0 %v618
        %661 = vmatpush1.bf16.msra.mxu0 %v617
        %662 = vmatprep.subr.bf16.mxu0 %v621
        %663 = vmatpush1.bf16.msra.mxu0 %v620
        %664 = vmatprep.subr.bf16.mxu0 %v624
        %665 = vmatpush1.bf16.msra.mxu0 %v623
        %666 = vmatprep.subr.bf16.mxu0 0
        %667 = vmatpush1.bf16.msra.mxu0 0
        %668 = vmatprep.subr.bf16.mxu0 0
        %669 = vmatpush1.bf16.msra.mxu0 0
        %670 = vmatprep.subr.bf16.mxu0 0
        %671 = vmatpush1.bf16.msra.mxu0 0
        %672 = vmatprep.subr.bf16.mxu0 0
        %673 = vmatpush1.bf16.msra.mxu0 0
        %674 = vmatprep.subr.bf16.mxu0 0
        %675 = vmatpush1.bf16.msra.mxu0 0
        %676 = vmatprep.subr.bf16.mxu0 0
        %677 = vmatpush1.bf16.msra.mxu0 0
        %678 = vmatprep.subr.bf16.mxu0 0
        %679 = vmatpush1.bf16.msra.mxu0 0
        %680 = vmatprep.subr.bf16.mxu0 0
        %681 = vmatpush1.bf16.msra.mxu0 0
        %682 = vmatprep.mubr.bf16.mxu0 0
        %683 = vmatmul.mubr.bf16.gmra.mrb[0].mxu0 %v471
        %v684 = vpop.f32.mrb[0].mxu0
        %v685 = vadd.f32 %v510, %v684
        %v686 = vpop.f32.mrb[0].mxu0
        %v687 = vadd.f32 %v514, %v686
        %v688 = vpop.f32.mrb[0].mxu0
        %v689 = vadd.f32 %v510, %v688
        %v690 = vpop.f32.mrb[0].mxu0
        %v691 = vadd.f32 %v514, %v690
        %692 = vmatprep.mubr.bf16.mxu0 0
        %693 = vmatmul.mubr.bf16.gmra.mrb[0].mxu0 %v472
        %v694 = vpop.f32.mrb[0].mxu0
        %v695 = vadd.f32 %v510, %v694
        %v696 = vpop.f32.mrb[0].mxu0
        %v697 = vadd.f32 %v514, %v696
        %v698 = vpop.f32.mrb[0].mxu0
        %v699 = vadd.f32 %v510, %v698
        %v700 = vpop.f32.mrb[0].mxu0
        %v701 = vadd.f32 %v514, %v700
        %702 = vdwg.mxu0
        %703 = vmatprep.subr.bf16.mxu0 0
        %704 = vmatpush1.bf16.msra.mxu0 %v604
        %705 = vmatprep.subr.bf16.mxu0 0
        %706 = vmatpush1.bf16.msra.mxu0 %v607
        %707 = vmatprep.subr.bf16.mxu0 0
        %708 = vmatpush1.bf16.msra.mxu0 %v610
        %709 = vmatprep.subr.bf16.mxu0 0
        %710 = vmatpush1.bf16.msra.mxu0 %v613
        %711 = vmatprep.subr.bf16.mxu0 0
        %712 = vmatpush1.bf16.msra.mxu0 %v616
        %713 = vmatprep.subr.bf16.mxu0 0
        %714 = vmatpush1.bf16.msra.mxu0 %v619
        %715 = vmatprep.subr.bf16.mxu0 0
        %716 = vmatpush1.bf16.msra.mxu0 %v622
        %717 = vmatprep.subr.bf16.mxu0 0
        %718 = vmatpush1.bf16.msra.mxu0 %v625
        %719 = vmatprep.subr.bf16.mxu0 0
        %720 = vmatpush1.bf16.msra.mxu0 0
        %721 = vmatprep.subr.bf16.mxu0 0
        %722 = vmatpush1.bf16.msra.mxu0 0
        %723 = vmatprep.subr.bf16.mxu0 0
        %724 = vmatpush1.bf16.msra.mxu0 0
        %725 = vmatprep.subr.bf16.mxu0 0
        %726 = vmatpush1.bf16.msra.mxu0 0
        %727 = vmatprep.subr.bf16.mxu0 0
        %728 = vmatpush1.bf16.msra.mxu0 0
        %729 = vmatprep.subr.bf16.mxu0 0
        %730 = vmatpush1.bf16.msra.mxu0 0
        %731 = vmatprep.subr.bf16.mxu0 0
        %732 = vmatpush1.bf16.msra.mxu0 0
        %733 = vmatprep.subr.bf16.mxu0 0
        %734 = vmatpush1.bf16.msra.mxu0 0
        %735 = vmatprep.mubr.bf16.mxu0 0
        %736 = vmatmul.mubr.bf16.gmra.mrb[0].mxu0 %v471
        %v737 = vpop.f32.mrb[0].mxu0
        %v738 = vadd.f32 %v518, %v737
        %v739 = vpop.f32.mrb[0].mxu0
        %v740 = vpop.f32.mrb[0].mxu0
        %v741 = vadd.f32 %v518, %v740
        %v742 = vpop.f32.mrb[0].mxu0
        %743 = vmatprep.mubr.bf16.mxu0 0
        %744 = vmatmul.mubr.bf16.gmra.mrb[0].mxu0 %v472
        %v745 = vpop.f32.mrb[0].mxu0
        %v746 = vadd.f32 %v518, %v745
        %v747 = vpop.f32.mrb[0].mxu0
        %v748 = vpop.f32.mrb[0].mxu0
        %v749 = vadd.f32 %v518, %v748
        %v750 = vpop.f32.mrb[0].mxu0
        %751 = vdwg.mxu0
        %v752 = vmul.f32 %v685, 0.17677669
        %v753 = vmul.f32 %v689, 0.17677669
        %v754 = vmul.f32 %v695, 0.17677669
        %v755 = vmul.f32 %v699, 0.17677669
        %v756 = vpack.c.bf16 %v753, %v752
        %v757 = vpack.c.bf16 %v755, %v754
        %v758 = vpack.c.bf16 %v691, %v687
        %v759 = vpack.c.bf16 %v701, %v697
        %v760 = vpack.c.bf16 %v741, %v738
        %v761 = vpack.c.bf16 %v749, %v746
        %764 = vrot.lane.b32.xlu0 %v756, 96
        %v765 = vpop.permute.xlu0 %764
        %766 = vrot.lane.b32.xlu0 %v757, 96
        %v767 = vpop.permute.xlu0 %766
        %768 = vrot.lane.b32.xlu0 %v756, 64
        %v769 = vpop.permute.xlu0 %768
        %770 = vrot.lane.b32.xlu0 %v757, 64
        %v771 = vpop.permute.xlu0 %770
        %772 = vrot.lane.b32.xlu0 %v756, 32
        %v773 = vpop.permute.xlu0 %772
        %774 = vrot.lane.b32.xlu0 %v757, 32
        %v775 = vpop.permute.xlu0 %774
        %778 = vrot.lane.b32.xlu0 %v758, 96
        %v779 = vpop.permute.xlu0 %778
        %780 = vrot.lane.b32.xlu0 %v759, 96
        %v781 = vpop.permute.xlu0 %780
        %782 = vrot.lane.b32.xlu0 %v758, 64
        %v783 = vpop.permute.xlu0 %782
        %784 = vrot.lane.b32.xlu0 %v759, 64
        %v785 = vpop.permute.xlu0 %784
        %786 = vrot.lane.b32.xlu0 %v758, 32
        %v787 = vpop.permute.xlu0 %786
        %788 = vrot.lane.b32.xlu0 %v759, 32
        %v789 = vpop.permute.xlu0 %788
        %792 = vrot.lane.b32.xlu0 %v760, 96
        %v793 = vpop.permute.xlu0 %792
        %794 = vrot.lane.b32.xlu0 %v761, 96
        %v795 = vpop.permute.xlu0 %794
        %798 = vrot.lane.b32.xlu0 %v760, 64
        %v799 = vpop.permute.xlu0 %798
        %800 = vrot.lane.b32.xlu0 %v761, 64
        %v801 = vpop.permute.xlu0 %800
        %804 = vrot.lane.b32.xlu0 %v760, 32
        %v805 = vpop.permute.xlu0 %804
        %806 = vrot.lane.b32.xlu0 %v761, 32
        %v807 = vpop.permute.xlu0 %806
        %vm810 = vcmask 261120
        %v812 = vsel %vm810, %v756, 0
        %v815 = vsel %vm810, %v758, 0
        %817 = vmatprep.subr.bf16.mxu0 0
        %818 = vmatpush1.bf16.xpose.msra.mxu0 %v815
        %819 = vmatprep.subr.bf16.mxu0 0
        %820 = vmatpush1.bf16.xpose.msra.mxu0 0
        %821 = vmatprep.subr.bf16.mxu0 0
        %822 = vmatpush1.bf16.xpose.msra.mxu0 0
        %823 = vmatprep.subr.bf16.mxu0 0
        %824 = vmatpush1.bf16.xpose.msra.mxu0 0
        %825 = vmatprep.subr.bf16.mxu0 0
        %826 = vmatpush1.bf16.xpose.msra.mxu0 0
        %827 = vmatprep.subr.bf16.mxu0 0
        %828 = vmatpush1.bf16.xpose.msra.mxu0 0
        %829 = vmatprep.subr.bf16.mxu0 0
        %830 = vmatpush1.bf16.xpose.msra.mxu0 0
        %831 = vmatprep.subr.bf16.mxu0 0
        %832 = vmatpush1.bf16.xpose.msra.mxu0 0
        %833 = vmatprep.subr.bf16.mxu0 0
        %834 = vmatpush1.bf16.xpose.msra.mxu0 0
        %835 = vmatprep.subr.bf16.mxu0 0
        %836 = vmatpush1.bf16.xpose.msra.mxu0 0
        %837 = vmatprep.subr.bf16.mxu0 0
        %838 = vmatpush1.bf16.xpose.msra.mxu0 0
        %839 = vmatprep.subr.bf16.mxu0 0
        %840 = vmatpush1.bf16.xpose.msra.mxu0 0
        %841 = vmatprep.subr.bf16.mxu0 0
        %842 = vmatpush1.bf16.xpose.msra.mxu0 0
        %843 = vmatprep.subr.bf16.mxu0 0
        %844 = vmatpush1.bf16.xpose.msra.mxu0 0
        %845 = vmatprep.subr.bf16.mxu0 0
        %846 = vmatpush1.bf16.xpose.msra.mxu0 0
        %847 = vmatprep.subr.bf16.mxu0 0
        %848 = vmatpush1.bf16.xpose.msra.mxu0 0
        %849 = vmatprep.mubr.bf16.mxu0 0
        %850 = vmatmul.mubr.bf16.gmra.mrb[0].mxu0 %v812
        %v851 = vpop.f32.mrb[0].mxu0
        %v852 = vadd.f32 0.0, %v851
        %v853 = vpop.f32.mrb[0].mxu0
        %v854 = vpop.f32.mrb[0].mxu0
        %v855 = vadd.f32 0.0, %v854
        %v856 = vpop.f32.mrb[0].mxu0
        %857 = vdwg.mxu0
        %v859 = vsel %vm810, %v765, 0
        %v862 = vsel %vm810, %v779, 0
        %864 = vmatprep.subr.bf16.mxu0 0
        %865 = vmatpush1.bf16.xpose.msra.mxu0 %v862
        %866 = vmatprep.subr.bf16.mxu0 0
        %867 = vmatpush1.bf16.xpose.msra.mxu0 0
        %868 = vmatprep.subr.bf16.mxu0 0
        %869 = vmatpush1.bf16.xpose.msra.mxu0 0
        %870 = vmatprep.subr.bf16.mxu0 0
        %871 = vmatpush1.bf16.xpose.msra.mxu0 0
        %872 = vmatprep.subr.bf16.mxu0 0
        %873 = vmatpush1.bf16.xpose.msra.mxu0 0
        %874 = vmatprep.subr.bf16.mxu0 0
        %875 = vmatpush1.bf16.xpose.msra.mxu0 0
        %876 = vmatprep.subr.bf16.mxu0 0
        %877 = vmatpush1.bf16.xpose.msra.mxu0 0
        %878 = vmatprep.subr.bf16.mxu0 0
        %879 = vmatpush1.bf16.xpose.msra.mxu0 0
        %880 = vmatprep.subr.bf16.mxu0 0
        %881 = vmatpush1.bf16.xpose.msra.mxu0 0
        %882 = vmatprep.subr.bf16.mxu0 0
        %883 = vmatpush1.bf16.xpose.msra.mxu0 0
        %884 = vmatprep.subr.bf16.mxu0 0
        %885 = vmatpush1.bf16.xpose.msra.mxu0 0
        %886 = vmatprep.subr.bf16.mxu0 0
        %887 = vmatpush1.bf16.xpose.msra.mxu0 0
        %888 = vmatprep.subr.bf16.mxu0 0
        %889 = vmatpush1.bf16.xpose.msra.mxu0 0
        %890 = vmatprep.subr.bf16.mxu0 0
        %891 = vmatpush1.bf16.xpose.msra.mxu0 0
        %892 = vmatprep.subr.bf16.mxu0 0
        %893 = vmatpush1.bf16.xpose.msra.mxu0 0
        %894 = vmatprep.subr.bf16.mxu0 0
        %895 = vmatpush1.bf16.xpose.msra.mxu0 0
        %896 = vmatprep.mubr.bf16.mxu0 0
        %897 = vmatmul.mubr.bf16.gmra.mrb[0].mxu0 %v859
        %v898 = vpop.f32.mrb[0].mxu0
        %v899 = vadd.f32 0.0, %v898
        %v900 = vpop.f32.mrb[0].mxu0
        %v901 = vpop.f32.mrb[0].mxu0
        %v902 = vadd.f32 0.0, %v901
        %v903 = vpop.f32.mrb[0].mxu0
        %904 = vdwg.mxu0
        %v906 = vsel %vm810, %v769, 0
        %v909 = vsel %vm810, %v783, 0
        %911 = vmatprep.subr.bf16.mxu0 0
        %912 = vmatpush1.bf16.xpose.msra.mxu0 %v909
        %913 = vmatprep.subr.bf16.mxu0 0
        %914 = vmatpush1.bf16.xpose.msra.mxu0 0
        %915 = vmatprep.subr.bf16.mxu0 0
        %916 = vmatpush1.bf16.xpose.msra.mxu0 0
        %917 = vmatprep.subr.bf16.mxu0 0
        %918 = vmatpush1.bf16.xpose.msra.mxu0 0
        %919 = vmatprep.subr.bf16.mxu0 0
        %920 = vmatpush1.bf16.xpose.msra.mxu0 0
        %921 = vmatprep.subr.bf16.mxu0 0
        %922 = vmatpush1.bf16.xpose.msra.mxu0 0
        %923 = vmatprep.subr.bf16.mxu0 0
        %924 = vmatpush1.bf16.xpose.msra.mxu0 0
        %925 = vmatprep.subr.bf16.mxu0 0
        %926 = vmatpush1.bf16.xpose.msra.mxu0 0
        %927 = vmatprep.subr.bf16.mxu0 0
        %928 = vmatpush1.bf16.xpose.msra.mxu0 0
        %929 = vmatprep.subr.bf16.mxu0 0
        %930 = vmatpush1.bf16.xpose.msra.mxu0 0
        %931 = vmatprep.subr.bf16.mxu0 0
        %932 = vmatpush1.bf16.xpose.msra.mxu0 0
        %933 = vmatprep.subr.bf16.mxu0 0
        %934 = vmatpush1.bf16.xpose.msra.mxu0 0
        %935 = vmatprep.subr.bf16.mxu0 0
        %936 = vmatpush1.bf16.xpose.msra.mxu0 0
        %937 = vmatprep.subr.bf16.mxu0 0
        %938 = vmatpush1.bf16.xpose.msra.mxu0 0
        %939 = vmatprep.subr.bf16.mxu0 0
        %940 = vmatpush1.bf16.xpose.msra.mxu0 0
        %941 = vmatprep.subr.bf16.mxu0 0
        %942 = vmatpush1.bf16.xpose.msra.mxu0 0
        %943 = vmatprep.mubr.bf16.mxu0 0
        %944 = vmatmul.mubr.bf16.gmra.mrb[0].mxu0 %v906
        %v945 = vpop.f32.mrb[0].mxu0
        %v946 = vadd.f32 0.0, %v945
        %v947 = vpop.f32.mrb[0].mxu0
        %v948 = vpop.f32.mrb[0].mxu0
        %v949 = vadd.f32 0.0, %v948
        %v950 = vpop.f32.mrb[0].mxu0
        %951 = vdwg.mxu0
        %v953 = vsel %vm810, %v773, 0
        %v956 = vsel %vm810, %v787, 0
        %958 = vmatprep.subr.bf16.mxu0 0
        %959 = vmatpush1.bf16.xpose.msra.mxu0 %v956
        %960 = vmatprep.subr.bf16.mxu0 0
        %961 = vmatpush1.bf16.xpose.msra.mxu0 0
        %962 = vmatprep.subr.bf16.mxu0 0
        %963 = vmatpush1.bf16.xpose.msra.mxu0 0
        %964 = vmatprep.subr.bf16.mxu0 0
        %965 = vmatpush1.bf16.xpose.msra.mxu0 0
        %966 = vmatprep.subr.bf16.mxu0 0
        %967 = vmatpush1.bf16.xpose.msra.mxu0 0
        %968 = vmatprep.subr.bf16.mxu0 0
        %969 = vmatpush1.bf16.xpose.msra.mxu0 0
        %970 = vmatprep.subr.bf16.mxu0 0
        %971 = vmatpush1.bf16.xpose.msra.mxu0 0
        %972 = vmatprep.subr.bf16.mxu0 0
        %973 = vmatpush1.bf16.xpose.msra.mxu0 0
        %974 = vmatprep.subr.bf16.mxu0 0
        %975 = vmatpush1.bf16.xpose.msra.mxu0 0
        %976 = vmatprep.subr.bf16.mxu0 0
        %977 = vmatpush1.bf16.xpose.msra.mxu0 0
        %978 = vmatprep.subr.bf16.mxu0 0
        %979 = vmatpush1.bf16.xpose.msra.mxu0 0
        %980 = vmatprep.subr.bf16.mxu0 0
        %981 = vmatpush1.bf16.xpose.msra.mxu0 0
        %982 = vmatprep.subr.bf16.mxu0 0
        %983 = vmatpush1.bf16.xpose.msra.mxu0 0
        %984 = vmatprep.subr.bf16.mxu0 0
        %985 = vmatpush1.bf16.xpose.msra.mxu0 0
        %986 = vmatprep.subr.bf16.mxu0 0
        %987 = vmatpush1.bf16.xpose.msra.mxu0 0
        %988 = vmatprep.subr.bf16.mxu0 0
        %989 = vmatpush1.bf16.xpose.msra.mxu0 0
        %990 = vmatprep.mubr.bf16.mxu0 0
        %991 = vmatmul.mubr.bf16.gmra.mrb[0].mxu0 %v953
        %v992 = vpop.f32.mrb[0].mxu0
        %v993 = vadd.f32 0.0, %v992
        %v994 = vpop.f32.mrb[0].mxu0
        %v995 = vpop.f32.mrb[0].mxu0
        %v996 = vadd.f32 0.0, %v995
        %v997 = vpop.f32.mrb[0].mxu0
        %998 = vdwg.mxu0
        %v1000 = vsel %vm810, %v757, 0
        %v1003 = vsel %vm810, %v759, 0
        %1005 = vmatprep.subr.bf16.mxu0 0
        %1006 = vmatpush1.bf16.xpose.msra.mxu0 %v1003
        %1007 = vmatprep.subr.bf16.mxu0 0
        %1008 = vmatpush1.bf16.xpose.msra.mxu0 0
        %1009 = vmatprep.subr.bf16.mxu0 0
        %1010 = vmatpush1.bf16.xpose.msra.mxu0 0
        %1011 = vmatprep.subr.bf16.mxu0 0
        %1012 = vmatpush1.bf16.xpose.msra.mxu0 0
        %1013 = vmatprep.subr.bf16.mxu0 0
        %1014 = vmatpush1.bf16.xpose.msra.mxu0 0
        %1015 = vmatprep.subr.bf16.mxu0 0
        %1016 = vmatpush1.bf16.xpose.msra.mxu0 0
        %1017 = vmatprep.subr.bf16.mxu0 0
        %1018 = vmatpush1.bf16.xpose.msra.mxu0 0
        %1019 = vmatprep.subr.bf16.mxu0 0
        %1020 = vmatpush1.bf16.xpose.msra.mxu0 0
        %1021 = vmatprep.subr.bf16.mxu0 0
        %1022 = vmatpush1.bf16.xpose.msra.mxu0 0
        %1023 = vmatprep.subr.bf16.mxu0 0
        %1024 = vmatpush1.bf16.xpose.msra.mxu0 0
        %1025 = vmatprep.subr.bf16.mxu0 0
        %1026 = vmatpush1.bf16.xpose.msra.mxu0 0
        %1027 = vmatprep.subr.bf16.mxu0 0
        %1028 = vmatpush1.bf16.xpose.msra.mxu0 0
        %1029 = vmatprep.subr.bf16.mxu0 0
        %1030 = vmatpush1.bf16.xpose.msra.mxu0 0
        %1031 = vmatprep.subr.bf16.mxu0 0
        %1032 = vmatpush1.bf16.xpose.msra.mxu0 0
        %1033 = vmatprep.subr.bf16.mxu0 0
        %1034 = vmatpush1.bf16.xpose.msra.mxu0 0
        %1035 = vmatprep.subr.bf16.mxu0 0
        %1036 = vmatpush1.bf16.xpose.msra.mxu0 0
        %1037 = vmatprep.mubr.bf16.mxu0 0
        %1038 = vmatmul.mubr.bf16.gmra.mrb[0].mxu0 %v1000
        %v1039 = vpop.f32.mrb[0].mxu0
        %v1040 = vadd.f32 0.0, %v1039
        %v1041 = vpop.f32.mrb[0].mxu0
        %v1042 = vpop.f32.mrb[0].mxu0
        %v1043 = vadd.f32 0.0, %v1042
        %v1044 = vpop.f32.mrb[0].mxu0
        %1045 = vdwg.mxu0
        %v1047 = vsel %vm810, %v767, 0
        %v1050 = vsel %vm810, %v781, 0
        %1052 = vmatprep.subr.bf16.mxu0 0
        %1053 = vmatpush1.bf16.xpose.msra.mxu0 %v1050
        %1054 = vmatprep.subr.bf16.mxu0 0
        %1055 = vmatpush1.bf16.xpose.msra.mxu0 0
        %1056 = vmatprep.subr.bf16.mxu0 0
        %1057 = vmatpush1.bf16.xpose.msra.mxu0 0
        %1058 = vmatprep.subr.bf16.mxu0 0
        %1059 = vmatpush1.bf16.xpose.msra.mxu0 0
        %1060 = vmatprep.subr.bf16.mxu0 0
        %1061 = vmatpush1.bf16.xpose.msra.mxu0 0
        %1062 = vmatprep.subr.bf16.mxu0 0
        %1063 = vmatpush1.bf16.xpose.msra.mxu0 0
        %1064 = vmatprep.subr.bf16.mxu0 0
        %1065 = vmatpush1.bf16.xpose.msra.mxu0 0
        %1066 = vmatprep.subr.bf16.mxu0 0
        %1067 = vmatpush1.bf16.xpose.msra.mxu0 0
        %1068 = vmatprep.subr.bf16.mxu0 0
        %1069 = vmatpush1.bf16.xpose.msra.mxu0 0
        %1070 = vmatprep.subr.bf16.mxu0 0
        %1071 = vmatpush1.bf16.xpose.msra.mxu0 0
        %1072 = vmatprep.subr.bf16.mxu0 0
        %1073 = vmatpush1.bf16.xpose.msra.mxu0 0
        %1074 = vmatprep.subr.bf16.mxu0 0
        %1075 = vmatpush1.bf16.xpose.msra.mxu0 0
        %1076 = vmatprep.subr.bf16.mxu0 0
        %1077 = vmatpush1.bf16.xpose.msra.mxu0 0
        %1078 = vmatprep.subr.bf16.mxu0 0
        %1079 = vmatpush1.bf16.xpose.msra.mxu0 0
        %1080 = vmatprep.subr.bf16.mxu0 0
        %1081 = vmatpush1.bf16.xpose.msra.mxu0 0
        %1082 = vmatprep.subr.bf16.mxu0 0
        %1083 = vmatpush1.bf16.xpose.msra.mxu0 0
        %1084 = vmatprep.mubr.bf16.mxu0 0
        %1085 = vmatmul.mubr.bf16.gmra.mrb[0].mxu0 %v1047
        %v1086 = vpop.f32.mrb[0].mxu0
        %v1087 = vadd.f32 0.0, %v1086
        %v1088 = vpop.f32.mrb[0].mxu0
        %v1089 = vpop.f32.mrb[0].mxu0
        %v1090 = vadd.f32 0.0, %v1089
        %v1091 = vpop.f32.mrb[0].mxu0
        %1092 = vdwg.mxu0
        %v1094 = vsel %vm810, %v771, 0
        %v1097 = vsel %vm810, %v785, 0
        %1099 = vmatprep.subr.bf16.mxu0 0
        %1100 = vmatpush1.bf16.xpose.msra.mxu0 %v1097
        %1101 = vmatprep.subr.bf16.mxu0 0
        %1102 = vmatpush1.bf16.xpose.msra.mxu0 0
        %1103 = vmatprep.subr.bf16.mxu0 0
        %1104 = vmatpush1.bf16.xpose.msra.mxu0 0
        %1105 = vmatprep.subr.bf16.mxu0 0
        %1106 = vmatpush1.bf16.xpose.msra.mxu0 0
        %1107 = vmatprep.subr.bf16.mxu0 0
        %1108 = vmatpush1.bf16.xpose.msra.mxu0 0
        %1109 = vmatprep.subr.bf16.mxu0 0
        %1110 = vmatpush1.bf16.xpose.msra.mxu0 0
        %1111 = vmatprep.subr.bf16.mxu0 0
        %1112 = vmatpush1.bf16.xpose.msra.mxu0 0
        %1113 = vmatprep.subr.bf16.mxu0 0
        %1114 = vmatpush1.bf16.xpose.msra.mxu0 0
        %1115 = vmatprep.subr.bf16.mxu0 0
        %1116 = vmatpush1.bf16.xpose.msra.mxu0 0
        %1117 = vmatprep.subr.bf16.mxu0 0
        %1118 = vmatpush1.bf16.xpose.msra.mxu0 0
        %1119 = vmatprep.subr.bf16.mxu0 0
        %1120 = vmatpush1.bf16.xpose.msra.mxu0 0
        %1121 = vmatprep.subr.bf16.mxu0 0
        %1122 = vmatpush1.bf16.xpose.msra.mxu0 0
        %1123 = vmatprep.subr.bf16.mxu0 0
        %1124 = vmatpush1.bf16.xpose.msra.mxu0 0
        %1125 = vmatprep.subr.bf16.mxu0 0
        %1126 = vmatpush1.bf16.xpose.msra.mxu0 0
        %1127 = vmatprep.subr.bf16.mxu0 0
        %1128 = vmatpush1.bf16.xpose.msra.mxu0 0
        %1129 = vmatprep.subr.bf16.mxu0 0
        %1130 = vmatpush1.bf16.xpose.msra.mxu0 0
        %1131 = vmatprep.mubr.bf16.mxu0 0
        %1132 = vmatmul.mubr.bf16.gmra.mrb[0].mxu0 %v1094
        %v1133 = vpop.f32.mrb[0].mxu0
        %v1134 = vadd.f32 0.0, %v1133
        %v1135 = vpop.f32.mrb[0].mxu0
        %v1136 = vpop.f32.mrb[0].mxu0
        %v1137 = vadd.f32 0.0, %v1136
        %v1138 = vpop.f32.mrb[0].mxu0
        %1139 = vdwg.mxu0
        %v1141 = vsel %vm810, %v775, 0
        %v1144 = vsel %vm810, %v789, 0
        %1146 = vmatprep.subr.bf16.mxu0 0
        %1147 = vmatpush1.bf16.xpose.msra.mxu0 %v1144
        %1148 = vmatprep.subr.bf16.mxu0 0
        %1149 = vmatpush1.bf16.xpose.msra.mxu0 0
        %1150 = vmatprep.subr.bf16.mxu0 0
        %1151 = vmatpush1.bf16.xpose.msra.mxu0 0
        %1152 = vmatprep.subr.bf16.mxu0 0
        %1153 = vmatpush1.bf16.xpose.msra.mxu0 0
        %1154 = vmatprep.subr.bf16.mxu0 0
        %1155 = vmatpush1.bf16.xpose.msra.mxu0 0
        %1156 = vmatprep.subr.bf16.mxu0 0
        %1157 = vmatpush1.bf16.xpose.msra.mxu0 0
        %1158 = vmatprep.subr.bf16.mxu0 0
        %1159 = vmatpush1.bf16.xpose.msra.mxu0 0
        %1160 = vmatprep.subr.bf16.mxu0 0
        %1161 = vmatpush1.bf16.xpose.msra.mxu0 0
        %1162 = vmatprep.subr.bf16.mxu0 0
        %1163 = vmatpush1.bf16.xpose.msra.mxu0 0
        %1164 = vmatprep.subr.bf16.mxu0 0
        %1165 = vmatpush1.bf16.xpose.msra.mxu0 0
        %1166 = vmatprep.subr.bf16.mxu0 0
        %1167 = vmatpush1.bf16.xpose.msra.mxu0 0
        %1168 = vmatprep.subr.bf16.mxu0 0
        %1169 = vmatpush1.bf16.xpose.msra.mxu0 0
        %1170 = vmatprep.subr.bf16.mxu0 0
        %1171 = vmatpush1.bf16.xpose.msra.mxu0 0
        %1172 = vmatprep.subr.bf16.mxu0 0
        %1173 = vmatpush1.bf16.xpose.msra.mxu0 0
        %1174 = vmatprep.subr.bf16.mxu0 0
        %1175 = vmatpush1.bf16.xpose.msra.mxu0 0
        %1176 = vmatprep.subr.bf16.mxu0 0
        %1177 = vmatpush1.bf16.xpose.msra.mxu0 0
        %1178 = vmatprep.mubr.bf16.mxu0 0
        %1179 = vmatmul.mubr.bf16.gmra.mrb[0].mxu0 %v1141
        %v1180 = vpop.f32.mrb[0].mxu0
        %v1181 = vadd.f32 0.0, %v1180
        %v1182 = vpop.f32.mrb[0].mxu0
        %v1183 = vpop.f32.mrb[0].mxu0
        %v1184 = vadd.f32 0.0, %v1183
        %v1185 = vpop.f32.mrb[0].mxu0
        %1186 = vdwg.mxu0
        %vm1187 = vcmask 130048
        %v1188 = vsel %vm1187, %v852, -inf
        %1189 = vmax.xlane.f32.xlu0 %v1188
        %v1190 = vpop.xlane.xlu0 %1189
        %v1191 = vsel %vm1187, %v855, -inf
        %1192 = vmax.xlane.f32.xlu0 %v1191
        %v1193 = vpop.xlane.xlu0 %1192
        %v1194 = vsel %vm1187, %v899, -inf
        %1195 = vmax.xlane.f32.xlu0 %v1194
        %v1196 = vpop.xlane.xlu0 %1195
        %v1197 = vsel %vm1187, %v902, -inf
        %1198 = vmax.xlane.f32.xlu0 %v1197
        %v1199 = vpop.xlane.xlu0 %1198
        %v1200 = vsel %vm1187, %v946, -inf
        %1201 = vmax.xlane.f32.xlu0 %v1200
        %v1202 = vpop.xlane.xlu0 %1201
        %v1203 = vsel %vm1187, %v949, -inf
        %1204 = vmax.xlane.f32.xlu0 %v1203
        %v1205 = vpop.xlane.xlu0 %1204
        %v1206 = vsel %vm1187, %v993, -inf
        %1207 = vmax.xlane.f32.xlu0 %v1206
        %v1208 = vpop.xlane.xlu0 %1207
        %v1209 = vsel %vm1187, %v996, -inf
        %1210 = vmax.xlane.f32.xlu0 %v1209
        %v1211 = vpop.xlane.xlu0 %1210
        %v1212 = vsel %vm1187, %v1040, -inf
        %1213 = vmax.xlane.f32.xlu0 %v1212
        %v1214 = vpop.xlane.xlu0 %1213
        %v1215 = vsel %vm1187, %v1043, -inf
        %1216 = vmax.xlane.f32.xlu0 %v1215
        %v1217 = vpop.xlane.xlu0 %1216
        %v1218 = vsel %vm1187, %v1087, -inf
        %1219 = vmax.xlane.f32.xlu0 %v1218
        %v1220 = vpop.xlane.xlu0 %1219
        %v1221 = vsel %vm1187, %v1090, -inf
        %1222 = vmax.xlane.f32.xlu0 %v1221
        %v1223 = vpop.xlane.xlu0 %1222
        %v1224 = vsel %vm1187, %v1134, -inf
        %1225 = vmax.xlane.f32.xlu0 %v1224
        %v1226 = vpop.xlane.xlu0 %1225
        %v1227 = vsel %vm1187, %v1137, -inf
        %1228 = vmax.xlane.f32.xlu0 %v1227
        %v1229 = vpop.xlane.xlu0 %1228
        %v1230 = vsel %vm1187, %v1181, -inf
        %1231 = vmax.xlane.f32.xlu0 %v1230
        %v1232 = vpop.xlane.xlu0 %1231
        %v1233 = vsel %vm1187, %v1184, -inf
        %1234 = vmax.xlane.f32.xlu0 %v1233
        %v1235 = vpop.xlane.xlu0 %1234
        %v1236 = vsub.f32 %v852, %v1190
        %v1237 = vsub.f32 %v855, %v1193
        %v1238 = vsub.f32 %v899, %v1196
        %v1239 = vsub.f32 %v902, %v1199
        %v1240 = vsub.f32 %v946, %v1202
        %v1241 = vsub.f32 %v949, %v1205
        %v1242 = vsub.f32 %v993, %v1208
        %v1243 = vsub.f32 %v996, %v1211
        %v1244 = vsub.f32 %v1040, %v1214
        %v1245 = vsub.f32 %v1043, %v1217
        %v1246 = vsub.f32 %v1087, %v1220
        %v1247 = vsub.f32 %v1090, %v1223
        %v1248 = vsub.f32 %v1134, %v1226
        %v1249 = vsub.f32 %v1137, %v1229
        %v1250 = vsub.f32 %v1181, %v1232
        %v1251 = vsub.f32 %v1184, %v1235
        %v1252 = vmul.f32 %v1236, 1.442695
        %v1253 = vpow.pop %v1252
        %v1254 = vmul.f32 %v1237, 1.442695
        %v1255 = vpow.pop %v1254
        %v1256 = vmul.f32 %v1238, 1.442695
        %v1257 = vpow.pop %v1256
        %v1258 = vmul.f32 %v1239, 1.442695
        %v1259 = vpow.pop %v1258
        %v1260 = vmul.f32 %v1240, 1.442695
        %v1261 = vpow.pop %v1260
        %v1262 = vmul.f32 %v1241, 1.442695
        %v1263 = vpow.pop %v1262
        %v1264 = vmul.f32 %v1242, 1.442695
        %v1265 = vpow.pop %v1264
        %v1266 = vmul.f32 %v1243, 1.442695
        %v1267 = vpow.pop %v1266
        %v1268 = vmul.f32 %v1244, 1.442695
        %v1269 = vpow.pop %v1268
        %v1270 = vmul.f32 %v1245, 1.442695
        %v1271 = vpow.pop %v1270
        %v1272 = vmul.f32 %v1246, 1.442695
        %v1273 = vpow.pop %v1272
        %v1274 = vmul.f32 %v1247, 1.442695
        %v1275 = vpow.pop %v1274
        %v1276 = vmul.f32 %v1248, 1.442695
        %v1277 = vpow.pop %v1276
        %v1278 = vmul.f32 %v1249, 1.442695
        %v1279 = vpow.pop %v1278
        %v1280 = vmul.f32 %v1250, 1.442695
        %v1281 = vpow.pop %v1280
        %v1282 = vmul.f32 %v1251, 1.442695
        %v1283 = vpow.pop %v1282
        %v1284 = vsel %vm1187, %v1253, 0.0
        %1285 = vadd.xlane.f32.xlu0 %v1284
        %v1286 = vpop.xlane.xlu0 %1285
        %v1287 = vsel %vm1187, %v1255, 0.0
        %1288 = vadd.xlane.f32.xlu0 %v1287
        %v1289 = vpop.xlane.xlu0 %1288
        %v1290 = vsel %vm1187, %v1257, 0.0
        %1291 = vadd.xlane.f32.xlu0 %v1290
        %v1292 = vpop.xlane.xlu0 %1291
        %v1293 = vsel %vm1187, %v1259, 0.0
        %1294 = vadd.xlane.f32.xlu0 %v1293
        %v1295 = vpop.xlane.xlu0 %1294
        %v1296 = vsel %vm1187, %v1261, 0.0
        %1297 = vadd.xlane.f32.xlu0 %v1296
        %v1298 = vpop.xlane.xlu0 %1297
        %v1299 = vsel %vm1187, %v1263, 0.0
        %1300 = vadd.xlane.f32.xlu0 %v1299
        %v1301 = vpop.xlane.xlu0 %1300
        %v1302 = vsel %vm1187, %v1265, 0.0
        %1303 = vadd.xlane.f32.xlu0 %v1302
        %v1304 = vpop.xlane.xlu0 %1303
        %v1305 = vsel %vm1187, %v1267, 0.0
        %1306 = vadd.xlane.f32.xlu0 %v1305
        %v1307 = vpop.xlane.xlu0 %1306
        %v1308 = vsel %vm1187, %v1269, 0.0
        %1309 = vadd.xlane.f32.xlu0 %v1308
        %v1310 = vpop.xlane.xlu0 %1309
        %v1311 = vsel %vm1187, %v1271, 0.0
        %1312 = vadd.xlane.f32.xlu0 %v1311
        %v1313 = vpop.xlane.xlu0 %1312
        %v1314 = vsel %vm1187, %v1273, 0.0
        %1315 = vadd.xlane.f32.xlu0 %v1314
        %v1316 = vpop.xlane.xlu0 %1315
        %v1317 = vsel %vm1187, %v1275, 0.0
        %1318 = vadd.xlane.f32.xlu0 %v1317
        %v1319 = vpop.xlane.xlu0 %1318
        %v1320 = vsel %vm1187, %v1277, 0.0
        %1321 = vadd.xlane.f32.xlu0 %v1320
        %v1322 = vpop.xlane.xlu0 %1321
        %v1323 = vsel %vm1187, %v1279, 0.0
        %1324 = vadd.xlane.f32.xlu0 %v1323
        %v1325 = vpop.xlane.xlu0 %1324
        %v1326 = vsel %vm1187, %v1281, 0.0
        %1327 = vadd.xlane.f32.xlu0 %v1326
        %v1328 = vpop.xlane.xlu0 %1327
        %v1329 = vsel %vm1187, %v1283, 0.0
        %1330 = vadd.xlane.f32.xlu0 %v1329
        %v1331 = vpop.xlane.xlu0 %1330
        %v1332 = vrcp.pop %v1286
        %v1333 = vrcp.pop %v1289
        %v1334 = vrcp.pop %v1292
        %v1335 = vrcp.pop %v1295
        %v1336 = vrcp.pop %v1298
        %v1337 = vrcp.pop %v1301
        %v1338 = vrcp.pop %v1304
        %v1339 = vrcp.pop %v1307
        %v1340 = vrcp.pop %v1310
        %v1341 = vrcp.pop %v1313
        %v1342 = vrcp.pop %v1316
        %v1343 = vrcp.pop %v1319
        %v1344 = vrcp.pop %v1322
        %v1345 = vrcp.pop %v1325
        %v1346 = vrcp.pop %v1328
        %v1347 = vrcp.pop %v1331
        %v1348 = vmul.f32 %v1253, %v1332
        %v1349 = vmul.f32 %v1255, %v1333
        %v1350 = vmul.f32 %v1257, %v1334
        %v1351 = vmul.f32 %v1259, %v1335
        %v1352 = vmul.f32 %v1261, %v1336
        %v1353 = vmul.f32 %v1263, %v1337
        %v1354 = vmul.f32 %v1265, %v1338
        %v1355 = vmul.f32 %v1267, %v1339
        %v1356 = vmul.f32 %v1269, %v1340
        %v1357 = vmul.f32 %v1271, %v1341
        %v1358 = vmul.f32 %v1273, %v1342
        %v1359 = vmul.f32 %v1275, %v1343
        %v1360 = vmul.f32 %v1277, %v1344
        %v1361 = vmul.f32 %v1279, %v1345
        %v1362 = vmul.f32 %v1281, %v1346
        %v1363 = vmul.f32 %v1283, %v1347
        %v1364 = vpack.c.bf16 %v1349, %v1348
        %v1365 = vpack.c.bf16 %v1351, %v1350
        %v1366 = vpack.c.bf16 %v1353, %v1352
        %v1367 = vpack.c.bf16 %v1355, %v1354
        %v1368 = vpack.c.bf16 %v1357, %v1356
        %v1369 = vpack.c.bf16 %v1359, %v1358
        %v1370 = vpack.c.bf16 %v1361, %v1360
        %v1371 = vpack.c.bf16 %v1363, %v1362
        %v1373 = vsel %vm1187, %v1364, 0
        %1375 = vmatprep.subr.bf16.mxu0 0
        %1376 = vmatpush1.bf16.msra.mxu0 %v760
        %1377 = vmatprep.subr.bf16.mxu0 0
        %1378 = vmatpush1.bf16.msra.mxu0 0
        %1379 = vmatprep.subr.bf16.mxu0 0
        %1380 = vmatpush1.bf16.msra.mxu0 0
        %1381 = vmatprep.subr.bf16.mxu0 0
        %1382 = vmatpush1.bf16.msra.mxu0 0
        %1383 = vmatprep.subr.bf16.mxu0 0
        %1384 = vmatpush1.bf16.msra.mxu0 0
        %1385 = vmatprep.subr.bf16.mxu0 0
        %1386 = vmatpush1.bf16.msra.mxu0 0
        %1387 = vmatprep.subr.bf16.mxu0 0
        %1388 = vmatpush1.bf16.msra.mxu0 0
        %1389 = vmatprep.subr.bf16.mxu0 0
        %1390 = vmatpush1.bf16.msra.mxu0 0
        %1391 = vmatprep.subr.bf16.mxu0 0
        %1392 = vmatpush1.bf16.msra.mxu0 0
        %1393 = vmatprep.subr.bf16.mxu0 0
        %1394 = vmatpush1.bf16.msra.mxu0 0
        %1395 = vmatprep.subr.bf16.mxu0 0
        %1396 = vmatpush1.bf16.msra.mxu0 0
        %1397 = vmatprep.subr.bf16.mxu0 0
        %1398 = vmatpush1.bf16.msra.mxu0 0
        %1399 = vmatprep.subr.bf16.mxu0 0
        %1400 = vmatpush1.bf16.msra.mxu0 0
        %1401 = vmatprep.subr.bf16.mxu0 0
        %1402 = vmatpush1.bf16.msra.mxu0 0
        %1403 = vmatprep.subr.bf16.mxu0 0
        %1404 = vmatpush1.bf16.msra.mxu0 0
        %1405 = vmatprep.subr.bf16.mxu0 0
        %1406 = vmatpush1.bf16.msra.mxu0 0
        %1407 = vmatprep.mubr.bf16.mxu0 0
        %1408 = vmatmul.mubr.bf16.gmra.mrb[0].mxu0 %v1373
        %v1409 = vpop.f32.mrb[0].mxu0
        %v1410 = vadd.f32 0.0, %v1409
        %v1411 = vpop.f32.mrb[0].mxu0
        %v1412 = vpop.f32.mrb[0].mxu0
        %v1413 = vadd.f32 0.0, %v1412
        %v1414 = vpop.f32.mrb[0].mxu0
        %1415 = vdwg.mxu0
        %v1417 = vsel %vm1187, %v1365, 0
        %1419 = vmatprep.subr.bf16.mxu0 0
        %1420 = vmatpush1.bf16.msra.mxu0 %v793
        %1421 = vmatprep.subr.bf16.mxu0 0
        %1422 = vmatpush1.bf16.msra.mxu0 0
        %1423 = vmatprep.subr.bf16.mxu0 0
        %1424 = vmatpush1.bf16.msra.mxu0 0
        %1425 = vmatprep.subr.bf16.mxu0 0
        %1426 = vmatpush1.bf16.msra.mxu0 0
        %1427 = vmatprep.subr.bf16.mxu0 0
        %1428 = vmatpush1.bf16.msra.mxu0 0
        %1429 = vmatprep.subr.bf16.mxu0 0
        %1430 = vmatpush1.bf16.msra.mxu0 0
        %1431 = vmatprep.subr.bf16.mxu0 0
        %1432 = vmatpush1.bf16.msra.mxu0 0
        %1433 = vmatprep.subr.bf16.mxu0 0
        %1434 = vmatpush1.bf16.msra.mxu0 0
        %1435 = vmatprep.subr.bf16.mxu0 0
        %1436 = vmatpush1.bf16.msra.mxu0 0
        %1437 = vmatprep.subr.bf16.mxu0 0
        %1438 = vmatpush1.bf16.msra.mxu0 0
        %1439 = vmatprep.subr.bf16.mxu0 0
        %1440 = vmatpush1.bf16.msra.mxu0 0
        %1441 = vmatprep.subr.bf16.mxu0 0
        %1442 = vmatpush1.bf16.msra.mxu0 0
        %1443 = vmatprep.subr.bf16.mxu0 0
        %1444 = vmatpush1.bf16.msra.mxu0 0
        %1445 = vmatprep.subr.bf16.mxu0 0
        %1446 = vmatpush1.bf16.msra.mxu0 0
        %1447 = vmatprep.subr.bf16.mxu0 0
        %1448 = vmatpush1.bf16.msra.mxu0 0
        %1449 = vmatprep.subr.bf16.mxu0 0
        %1450 = vmatpush1.bf16.msra.mxu0 0
        %1451 = vmatprep.mubr.bf16.mxu0 0
        %1452 = vmatmul.mubr.bf16.gmra.mrb[0].mxu0 %v1417
        %v1453 = vpop.f32.mrb[0].mxu0
        %v1454 = vadd.f32 0.0, %v1453
        %v1455 = vpop.f32.mrb[0].mxu0
        %v1456 = vpop.f32.mrb[0].mxu0
        %v1457 = vadd.f32 0.0, %v1456
        %v1458 = vpop.f32.mrb[0].mxu0
        %1459 = vdwg.mxu0
        %v1461 = vsel %vm1187, %v1366, 0
        %1463 = vmatprep.subr.bf16.mxu0 0
        %1464 = vmatpush1.bf16.msra.mxu0 %v799
        %1465 = vmatprep.subr.bf16.mxu0 0
        %1466 = vmatpush1.bf16.msra.mxu0 0
        %1467 = vmatprep.subr.bf16.mxu0 0
        %1468 = vmatpush1.bf16.msra.mxu0 0
        %1469 = vmatprep.subr.bf16.mxu0 0
        %1470 = vmatpush1.bf16.msra.mxu0 0
        %1471 = vmatprep.subr.bf16.mxu0 0
        %1472 = vmatpush1.bf16.msra.mxu0 0
        %1473 = vmatprep.subr.bf16.mxu0 0
        %1474 = vmatpush1.bf16.msra.mxu0 0
        %1475 = vmatprep.subr.bf16.mxu0 0
        %1476 = vmatpush1.bf16.msra.mxu0 0
        %1477 = vmatprep.subr.bf16.mxu0 0
        %1478 = vmatpush1.bf16.msra.mxu0 0
        %1479 = vmatprep.subr.bf16.mxu0 0
        %1480 = vmatpush1.bf16.msra.mxu0 0
        %1481 = vmatprep.subr.bf16.mxu0 0
        %1482 = vmatpush1.bf16.msra.mxu0 0
        %1483 = vmatprep.subr.bf16.mxu0 0
        %1484 = vmatpush1.bf16.msra.mxu0 0
        %1485 = vmatprep.subr.bf16.mxu0 0
        %1486 = vmatpush1.bf16.msra.mxu0 0
        %1487 = vmatprep.subr.bf16.mxu0 0
        %1488 = vmatpush1.bf16.msra.mxu0 0
        %1489 = vmatprep.subr.bf16.mxu0 0
        %1490 = vmatpush1.bf16.msra.mxu0 0
        %1491 = vmatprep.subr.bf16.mxu0 0
        %1492 = vmatpush1.bf16.msra.mxu0 0
        %1493 = vmatprep.subr.bf16.mxu0 0
        %1494 = vmatpush1.bf16.msra.mxu0 0
        %1495 = vmatprep.mubr.bf16.mxu0 0
        %1496 = vmatmul.mubr.bf16.gmra.mrb[0].mxu0 %v1461
        %v1497 = vpop.f32.mrb[0].mxu0
        %v1498 = vadd.f32 0.0, %v1497
        %v1499 = vpop.f32.mrb[0].mxu0
        %v1500 = vpop.f32.mrb[0].mxu0
        %v1501 = vadd.f32 0.0, %v1500
        %v1502 = vpop.f32.mrb[0].mxu0
        %1503 = vdwg.mxu0
        %v1505 = vsel %vm1187, %v1367, 0
        %1507 = vmatprep.subr.bf16.mxu0 0
        %1508 = vmatpush1.bf16.msra.mxu0 %v805
        %1509 = vmatprep.subr.bf16.mxu0 0
        %1510 = vmatpush1.bf16.msra.mxu0 0
        %1511 = vmatprep.subr.bf16.mxu0 0
        %1512 = vmatpush1.bf16.msra.mxu0 0
        %1513 = vmatprep.subr.bf16.mxu0 0
        %1514 = vmatpush1.bf16.msra.mxu0 0
        %1515 = vmatprep.subr.bf16.mxu0 0
        %1516 = vmatpush1.bf16.msra.mxu0 0
        %1517 = vmatprep.subr.bf16.mxu0 0
        %1518 = vmatpush1.bf16.msra.mxu0 0
        %1519 = vmatprep.subr.bf16.mxu0 0
        %1520 = vmatpush1.bf16.msra.mxu0 0
        %1521 = vmatprep.subr.bf16.mxu0 0
        %1522 = vmatpush1.bf16.msra.mxu0 0
        %1523 = vmatprep.subr.bf16.mxu0 0
        %1524 = vmatpush1.bf16.msra.mxu0 0
        %1525 = vmatprep.subr.bf16.mxu0 0
        %1526 = vmatpush1.bf16.msra.mxu0 0
        %1527 = vmatprep.subr.bf16.mxu0 0
        %1528 = vmatpush1.bf16.msra.mxu0 0
        %1529 = vmatprep.subr.bf16.mxu0 0
        %1530 = vmatpush1.bf16.msra.mxu0 0
        %1531 = vmatprep.subr.bf16.mxu0 0
        %1532 = vmatpush1.bf16.msra.mxu0 0
        %1533 = vmatprep.subr.bf16.mxu0 0
        %1534 = vmatpush1.bf16.msra.mxu0 0
        %1535 = vmatprep.subr.bf16.mxu0 0
        %1536 = vmatpush1.bf16.msra.mxu0 0
        %1537 = vmatprep.subr.bf16.mxu0 0
        %1538 = vmatpush1.bf16.msra.mxu0 0
        %1539 = vmatprep.mubr.bf16.mxu0 0
        %1540 = vmatmul.mubr.bf16.gmra.mrb[0].mxu0 %v1505
        %v1541 = vpop.f32.mrb[0].mxu0
        %v1542 = vadd.f32 0.0, %v1541
        %v1543 = vpop.f32.mrb[0].mxu0
        %v1544 = vpop.f32.mrb[0].mxu0
        %v1545 = vadd.f32 0.0, %v1544
        %v1546 = vpop.f32.mrb[0].mxu0
        %1547 = vdwg.mxu0
        %v1549 = vsel %vm1187, %v1368, 0
        %1551 = vmatprep.subr.bf16.mxu0 0
        %1552 = vmatpush1.bf16.msra.mxu0 %v761
        %1553 = vmatprep.subr.bf16.mxu0 0
        %1554 = vmatpush1.bf16.msra.mxu0 0
        %1555 = vmatprep.subr.bf16.mxu0 0
        %1556 = vmatpush1.bf16.msra.mxu0 0
        %1557 = vmatprep.subr.bf16.mxu0 0
        %1558 = vmatpush1.bf16.msra.mxu0 0
        %1559 = vmatprep.subr.bf16.mxu0 0
        %1560 = vmatpush1.bf16.msra.mxu0 0
        %1561 = vmatprep.subr.bf16.mxu0 0
        %1562 = vmatpush1.bf16.msra.mxu0 0
        %1563 = vmatprep.subr.bf16.mxu0 0
        %1564 = vmatpush1.bf16.msra.mxu0 0
        %1565 = vmatprep.subr.bf16.mxu0 0
        %1566 = vmatpush1.bf16.msra.mxu0 0
        %1567 = vmatprep.subr.bf16.mxu0 0
        %1568 = vmatpush1.bf16.msra.mxu0 0
        %1569 = vmatprep.subr.bf16.mxu0 0
        %1570 = vmatpush1.bf16.msra.mxu0 0
        %1571 = vmatprep.subr.bf16.mxu0 0
        %1572 = vmatpush1.bf16.msra.mxu0 0
        %1573 = vmatprep.subr.bf16.mxu0 0
        %1574 = vmatpush1.bf16.msra.mxu0 0
        %1575 = vmatprep.subr.bf16.mxu0 0
        %1576 = vmatpush1.bf16.msra.mxu0 0
        %1577 = vmatprep.subr.bf16.mxu0 0
        %1578 = vmatpush1.bf16.msra.mxu0 0
        %1579 = vmatprep.subr.bf16.mxu0 0
        %1580 = vmatpush1.bf16.msra.mxu0 0
        %1581 = vmatprep.subr.bf16.mxu0 0
        %1582 = vmatpush1.bf16.msra.mxu0 0
        %1583 = vmatprep.mubr.bf16.mxu0 0
        %1584 = vmatmul.mubr.bf16.gmra.mrb[0].mxu0 %v1549
        %v1585 = vpop.f32.mrb[0].mxu0
        %v1586 = vadd.f32 0.0, %v1585
        %v1587 = vpop.f32.mrb[0].mxu0
        %v1588 = vpop.f32.mrb[0].mxu0
        %v1589 = vadd.f32 0.0, %v1588
        %v1590 = vpop.f32.mrb[0].mxu0
        %1591 = vdwg.mxu0
        %v1593 = vsel %vm1187, %v1369, 0
        %1595 = vmatprep.subr.bf16.mxu0 0
        %1596 = vmatpush1.bf16.msra.mxu0 %v795
        %1597 = vmatprep.subr.bf16.mxu0 0
        %1598 = vmatpush1.bf16.msra.mxu0 0
        %1599 = vmatprep.subr.bf16.mxu0 0
        %1600 = vmatpush1.bf16.msra.mxu0 0
        %1601 = vmatprep.subr.bf16.mxu0 0
        %1602 = vmatpush1.bf16.msra.mxu0 0
        %1603 = vmatprep.subr.bf16.mxu0 0
        %1604 = vmatpush1.bf16.msra.mxu0 0
        %1605 = vmatprep.subr.bf16.mxu0 0
        %1606 = vmatpush1.bf16.msra.mxu0 0
        %1607 = vmatprep.subr.bf16.mxu0 0
        %1608 = vmatpush1.bf16.msra.mxu0 0
        %1609 = vmatprep.subr.bf16.mxu0 0
        %1610 = vmatpush1.bf16.msra.mxu0 0
        %1611 = vmatprep.subr.bf16.mxu0 0
        %1612 = vmatpush1.bf16.msra.mxu0 0
        %1613 = vmatprep.subr.bf16.mxu0 0
        %1614 = vmatpush1.bf16.msra.mxu0 0
        %1615 = vmatprep.subr.bf16.mxu0 0
        %1616 = vmatpush1.bf16.msra.mxu0 0
        %1617 = vmatprep.subr.bf16.mxu0 0
        %1618 = vmatpush1.bf16.msra.mxu0 0
        %1619 = vmatprep.subr.bf16.mxu0 0
        %1620 = vmatpush1.bf16.msra.mxu0 0
        %1621 = vmatprep.subr.bf16.mxu0 0
        %1622 = vmatpush1.bf16.msra.mxu0 0
        %1623 = vmatprep.subr.bf16.mxu0 0
        %1624 = vmatpush1.bf16.msra.mxu0 0
        %1625 = vmatprep.subr.bf16.mxu0 0
        %1626 = vmatpush1.bf16.msra.mxu0 0
        %1627 = vmatprep.mubr.bf16.mxu0 0
        %1628 = vmatmul.mubr.bf16.gmra.mrb[0].mxu0 %v1593
        %v1629 = vpop.f32.mrb[0].mxu0
        %v1630 = vadd.f32 0.0, %v1629
        %v1631 = vpop.f32.mrb[0].mxu0
        %v1632 = vpop.f32.mrb[0].mxu0
        %v1633 = vadd.f32 0.0, %v1632
        %v1634 = vpop.f32.mrb[0].mxu0
        %1635 = vdwg.mxu0
        %v1637 = vsel %vm1187, %v1370, 0
        %1639 = vmatprep.subr.bf16.mxu0 0
        %1640 = vmatpush1.bf16.msra.mxu0 %v801
        %1641 = vmatprep.subr.bf16.mxu0 0
        %1642 = vmatpush1.bf16.msra.mxu0 0
        %1643 = vmatprep.subr.bf16.mxu0 0
        %1644 = vmatpush1.bf16.msra.mxu0 0
        %1645 = vmatprep.subr.bf16.mxu0 0
        %1646 = vmatpush1.bf16.msra.mxu0 0
        %1647 = vmatprep.subr.bf16.mxu0 0
        %1648 = vmatpush1.bf16.msra.mxu0 0
        %1649 = vmatprep.subr.bf16.mxu0 0
        %1650 = vmatpush1.bf16.msra.mxu0 0
        %1651 = vmatprep.subr.bf16.mxu0 0
        %1652 = vmatpush1.bf16.msra.mxu0 0
        %1653 = vmatprep.subr.bf16.mxu0 0
        %1654 = vmatpush1.bf16.msra.mxu0 0
        %1655 = vmatprep.subr.bf16.mxu0 0
        %1656 = vmatpush1.bf16.msra.mxu0 0
        %1657 = vmatprep.subr.bf16.mxu0 0
        %1658 = vmatpush1.bf16.msra.mxu0 0
        %1659 = vmatprep.subr.bf16.mxu0 0
        %1660 = vmatpush1.bf16.msra.mxu0 0
        %1661 = vmatprep.subr.bf16.mxu0 0
        %1662 = vmatpush1.bf16.msra.mxu0 0
        %1663 = vmatprep.subr.bf16.mxu0 0
        %1664 = vmatpush1.bf16.msra.mxu0 0
        %1665 = vmatprep.subr.bf16.mxu0 0
        %1666 = vmatpush1.bf16.msra.mxu0 0
        %1667 = vmatprep.subr.bf16.mxu0 0
        %1668 = vmatpush1.bf16.msra.mxu0 0
        %1669 = vmatprep.subr.bf16.mxu0 0
        %1670 = vmatpush1.bf16.msra.mxu0 0
        %1671 = vmatprep.mubr.bf16.mxu0 0
        %1672 = vmatmul.mubr.bf16.gmra.mrb[0].mxu0 %v1637
        %v1673 = vpop.f32.mrb[0].mxu0
        %v1674 = vadd.f32 0.0, %v1673
        %v1675 = vpop.f32.mrb[0].mxu0
        %v1676 = vpop.f32.mrb[0].mxu0
        %v1677 = vadd.f32 0.0, %v1676
        %v1678 = vpop.f32.mrb[0].mxu0
        %1679 = vdwg.mxu0
        %v1681 = vsel %vm1187, %v1371, 0
        %1683 = vmatprep.subr.bf16.mxu0 0
        %1684 = vmatpush1.bf16.msra.mxu0 %v807
        %1685 = vmatprep.subr.bf16.mxu0 0
        %1686 = vmatpush1.bf16.msra.mxu0 0
        %1687 = vmatprep.subr.bf16.mxu0 0
        %1688 = vmatpush1.bf16.msra.mxu0 0
        %1689 = vmatprep.subr.bf16.mxu0 0
        %1690 = vmatpush1.bf16.msra.mxu0 0
        %1691 = vmatprep.subr.bf16.mxu0 0
        %1692 = vmatpush1.bf16.msra.mxu0 0
        %1693 = vmatprep.subr.bf16.mxu0 0
        %1694 = vmatpush1.bf16.msra.mxu0 0
        %1695 = vmatprep.subr.bf16.mxu0 0
        %1696 = vmatpush1.bf16.msra.mxu0 0
        %1697 = vmatprep.subr.bf16.mxu0 0
        %1698 = vmatpush1.bf16.msra.mxu0 0
        %1699 = vmatprep.subr.bf16.mxu0 0
        %1700 = vmatpush1.bf16.msra.mxu0 0
        %1701 = vmatprep.subr.bf16.mxu0 0
        %1702 = vmatpush1.bf16.msra.mxu0 0
        %1703 = vmatprep.subr.bf16.mxu0 0
        %1704 = vmatpush1.bf16.msra.mxu0 0
        %1705 = vmatprep.subr.bf16.mxu0 0
        %1706 = vmatpush1.bf16.msra.mxu0 0
        %1707 = vmatprep.subr.bf16.mxu0 0
        %1708 = vmatpush1.bf16.msra.mxu0 0
        %1709 = vmatprep.subr.bf16.mxu0 0
        %1710 = vmatpush1.bf16.msra.mxu0 0
        %1711 = vmatprep.subr.bf16.mxu0 0
        %1712 = vmatpush1.bf16.msra.mxu0 0
        %1713 = vmatprep.subr.bf16.mxu0 0
        %1714 = vmatpush1.bf16.msra.mxu0 0
        %1715 = vmatprep.mubr.bf16.mxu0 0
        %1716 = vmatmul.mubr.bf16.gmra.mrb[0].mxu0 %v1681
        %v1717 = vpop.f32.mrb[0].mxu0
        %v1718 = vadd.f32 0.0, %v1717
        %v1719 = vpop.f32.mrb[0].mxu0
        %v1720 = vpop.f32.mrb[0].mxu0
        %v1721 = vadd.f32 0.0, %v1720
        %v1722 = vpop.f32.mrb[0].mxu0
        %1723 = vdwg.mxu0
        %v1724 = vpack.c.bf16 %v1413, %v1410
        %v1725 = vpack.c.bf16 %v1457, %v1454
        %v1726 = vpack.c.bf16 %v1501, %v1498
        %v1727 = vpack.c.bf16 %v1545, %v1542
        %v1728 = vpack.c.bf16 %v1589, %v1586
        %v1729 = vpack.c.bf16 %v1633, %v1630
        %v1730 = vpack.c.bf16 %v1677, %v1674
        %v1731 = vpack.c.bf16 %v1721, %v1718
        %1734 = vrot.lane.b32.xlu0 %v1725, 32
        %v1735 = vpop.permute.xlu0 %1734
        %1736 = vrot.lane.b32.xlu0 %v1729, 32
        %v1737 = vpop.permute.xlu0 %1736
        %1740 = vrot.lane.b32.xlu0 %v1726, 64
        %v1741 = vpop.permute.xlu0 %1740
        %1742 = vrot.lane.b32.xlu0 %v1730, 64
        %v1743 = vpop.permute.xlu0 %1742
        %1746 = vrot.lane.b32.xlu0 %v1727, 96
        %v1747 = vpop.permute.xlu0 %1746
        %1748 = vrot.lane.b32.xlu0 %v1731, 96
        %v1749 = vpop.permute.xlu0 %1748
        %v1752 = vsel %vm810, %v1724, %v1735
        %v1755 = vsel %vm810, %v1728, %v1737
        %vm1756 = vcmask 523264
        %v1758 = vsel %vm1756, %v1752, %v1741
        %v1760 = vsel %vm1756, %v1755, %v1743
        %vm1761 = vcmask 785408
        %v1763 = vsel %vm1761, %v1758, %v1747
        %v1766 = vsel %vm1761, %v1760, %v1749
        %v1768 = vld [vmem:[#allocation7] sm:$0xf]
        %v1769 = vld [vmem:[#allocation7 + $0x4] sm:$0xf]
        %v1770 = vld [vmem:[#allocation7 + $0x8] sm:$0xf]
        %v1771 = vld [vmem:[#allocation7 + $0xc] sm:$0xf]
        %v1772 = vld [vmem:[#allocation7 + $0x10] sm:$0xf]
        %v1773 = vld [vmem:[#allocation7 + $0x14] sm:$0xf]
        %v1774 = vld [vmem:[#allocation7 + $0x18] sm:$0xf]
        %v1775 = vld [vmem:[#allocation7 + $0x1c] sm:$0xf]
        %v1776 = vld [vmem:[#allocation7 + $0x20] sm:$0xf]
        %v1777 = vld [vmem:[#allocation7 + $0x24] sm:$0xf]
        %v1778 = vld [vmem:[#allocation7 + $0x28] sm:$0xf]
        %v1779 = vld [vmem:[#allocation7 + $0x2c] sm:$0xf]
        %v1780 = vld [vmem:[#allocation7 + $0x30] sm:$0xf]
        %v1781 = vld [vmem:[#allocation7 + $0x34] sm:$0xf]
        %v1782 = vld [vmem:[#allocation7 + $0x38] sm:$0xf]
        %v1783 = vld [vmem:[#allocation7 + $0x3c] sm:$0xf]
        %v1784 = vld [vmem:[%s4] sm:$0x1]
        %v1786 = vlaneseq
        %v1787 = vshrl.u32 %v1786, 7
        %v1788 = vsub.s32 0, %v1787
        %v1789 = vrot.slane %v1784, %v1788
        %v1807 = vunpack.c.l.b16 %v1768
        %v1808 = vunpack.c.l.b16 %v1769
        %v1809 = vunpack.c.l.b16 %v1770
        %v1810 = vunpack.c.l.b16 %v1771
        %v1811 = vunpack.c.l.b16 %v1772
        %v1812 = vunpack.c.l.b16 %v1773
        %v1813 = vunpack.c.l.b16 %v1774
        %v1814 = vunpack.c.l.b16 %v1775
        %v1815 = vunpack.c.l.b16 %v1776
        %v1816 = vunpack.c.l.b16 %v1777
        %v1817 = vunpack.c.l.b16 %v1778
        %v1818 = vunpack.c.l.b16 %v1779
        %v1819 = vunpack.c.l.b16 %v1780
        %v1820 = vunpack.c.l.b16 %v1781
        %v1821 = vunpack.c.l.b16 %v1782
        %v1822 = vunpack.c.l.b16 %v1783
        %v1823 = vpack.c.b16 %v1808, %v1807
        %v1824 = vpack.c.b16 %v1810, %v1809
        %v1825 = vpack.c.b16 %v1812, %v1811
        %v1826 = vpack.c.b16 %v1814, %v1813
        %v1827 = vpack.c.b16 %v1816, %v1815
        %v1828 = vpack.c.b16 %v1818, %v1817
        %v1829 = vpack.c.b16 %v1820, %v1819
        %v1830 = vpack.c.b16 %v1822, %v1821
        %1839 = vmatprep.subr.bf16.mxu0 0
        %1840 = vmatpush1.bf16.msra.mxu0 %v1823
        %1841 = vmatprep.subr.bf16.mxu0 0
        %1842 = vmatpush1.bf16.msra.mxu0 %v1824
        %1843 = vmatprep.subr.bf16.mxu0 0
        %1844 = vmatpush1.bf16.msra.mxu0 %v1825
        %1845 = vmatprep.subr.bf16.mxu0 0
        %1846 = vmatpush1.bf16.msra.mxu0 %v1826
        %1847 = vmatprep.subr.bf16.mxu0 0
        %1848 = vmatpush1.bf16.msra.mxu0 %v1827
        %1849 = vmatprep.subr.bf16.mxu0 0
        %1850 = vmatpush1.bf16.msra.mxu0 %v1828
        %1851 = vmatprep.subr.bf16.mxu0 0
        %1852 = vmatpush1.bf16.msra.mxu0 %v1829
        %1853 = vmatprep.subr.bf16.mxu0 0
        %1854 = vmatpush1.bf16.msra.mxu0 %v1830
        %1855 = vmatprep.subr.bf16.mxu0 0
        %1856 = vmatpush1.bf16.msra.mxu0 0
        %1857 = vmatprep.subr.bf16.mxu0 0
        %1858 = vmatpush1.bf16.msra.mxu0 0
        %1859 = vmatprep.subr.bf16.mxu0 0
        %1860 = vmatpush1.bf16.msra.mxu0 0
        %1861 = vmatprep.subr.bf16.mxu0 0
        %1862 = vmatpush1.bf16.msra.mxu0 0
        %1863 = vmatprep.subr.bf16.mxu0 0
        %1864 = vmatpush1.bf16.msra.mxu0 0
        %1865 = vmatprep.subr.bf16.mxu0 0
        %1866 = vmatpush1.bf16.msra.mxu0 0
        %1867 = vmatprep.subr.bf16.mxu0 0
        %1868 = vmatpush1.bf16.msra.mxu0 0
        %1869 = vmatprep.subr.bf16.mxu0 0
        %1870 = vmatpush1.bf16.msra.mxu0 0
        %1871 = vmatprep.mubr.bf16.mxu0 0
        %1872 = vmatmul.mubr.bf16.gmra.mrb[0].mxu0 %v1763
        %v1873 = vpop.f32.mrb[0].mxu0
        %v1874 = vadd.f32 %v1789, %v1873
        %v1875 = vpop.f32.mrb[0].mxu0
        %v1876 = vpop.f32.mrb[0].mxu0
        %v1877 = vadd.f32 %v1789, %v1876
        %v1878 = vpop.f32.mrb[0].mxu0
        %1879 = vmatprep.mubr.bf16.mxu0 0
        %1880 = vmatmul.mubr.bf16.gmra.mrb[0].mxu0 %v1766
        %v1881 = vpop.f32.mrb[0].mxu0
        %v1882 = vadd.f32 %v1789, %v1881
        %v1883 = vpop.f32.mrb[0].mxu0
        %v1884 = vpop.f32.mrb[0].mxu0
        %v1885 = vadd.f32 %v1789, %v1884
        %v1886 = vpop.f32.mrb[0].mxu0
        %1887 = vdwg.mxu0
        %1888 = vadd.xlane.f32.xlu0 %v1874
        %v1889 = vpop.xlane.xlu0 %1888
        %1890 = vadd.xlane.f32.xlu0 %v1877
        %v1891 = vpop.xlane.xlu0 %1890
        %1892 = vadd.xlane.f32.xlu0 %v1882
        %v1893 = vpop.xlane.xlu0 %1892
        %1894 = vadd.xlane.f32.xlu0 %v1885
        %v1895 = vpop.xlane.xlu0 %1894
        %v1896 = vrcp.pop 128.0
        %v1897 = vmul.f32 %v1889, %v1896
        %v1898 = vmul.f32 %v1891, %v1896
        %v1899 = vmul.f32 %v1893, %v1896
        %v1900 = vmul.f32 %v1895, %v1896
        %v1901 = vsub.f32 %v1874, %v1897
        %v1902 = vsub.f32 %v1877, %v1898
        %v1903 = vsub.f32 %v1882, %v1899
        %v1904 = vsub.f32 %v1885, %v1900
        %v1905 = vmul.f32 %v1901, %v1901
        %v1906 = vmul.f32 %v1902, %v1902
        %v1907 = vmul.f32 %v1903, %v1903
        %v1908 = vmul.f32 %v1904, %v1904
        %1909 = vadd.xlane.f32.xlu0 %v1905
        %v1910 = vpop.xlane.xlu0 %1909
        %1911 = vadd.xlane.f32.xlu0 %v1906
        %v1912 = vpop.xlane.xlu0 %1911
        %1913 = vadd.xlane.f32.xlu0 %v1907
        %v1914 = vpop.xlane.xlu0 %1913
        %1915 = vadd.xlane.f32.xlu0 %v1908
        %v1916 = vpop.xlane.xlu0 %1915
        %v1917 = vmul.f32 %v1910, %v1896
        %v1918 = vmul.f32 %v1912, %v1896
        %v1919 = vmul.f32 %v1914, %v1896
        %v1920 = vmul.f32 %v1916, %v1896
        %v1921 = vadd.f32 %v1917, 1e-06
        %v1922 = vadd.f32 %v1918, 1e-06
        %v1923 = vadd.f32 %v1919, 1e-06
        %v1924 = vadd.f32 %v1920, 1e-06
        %v1925 = vrsqrt.pop %v1921
        %v1926 = vrsqrt.pop %v1922
        %v1927 = vrsqrt.pop %v1923
        %v1928 = vrsqrt.pop %v1924
        %v1929 = vmul.f32 %v1901, %v1925
        %v1930 = vmul.f32 %v1902, %v1926
        %v1931 = vmul.f32 %v1903, %v1927
        %v1932 = vmul.f32 %v1904, %v1928
        %v1933 = vld [vmem:[%s5] sm:$0x1]
        %v1935 = vlaneseq
        %v1936 = vshrl.u32 %v1935, 7
        %v1937 = vsub.s32 0, %v1936
        %v1938 = vrot.slane %v1933, %v1937
        %v1940 = vmul.f32 %v1929, %v1938
        %v1941 = vmul.f32 %v1930, %v1938
        %v1942 = vmul.f32 %v1931, %v1938
        %v1943 = vmul.f32 %v1932, %v1938
        %v1944 = vld [vmem:[%s6] sm:$0x1]
        %v1946 = vlaneseq
        %v1947 = vshrl.u32 %v1946, 7
        %v1948 = vsub.s32 0, %v1947
        %v1949 = vrot.slane %v1944, %v1948
        %v1951 = vadd.f32 %v1940, %v1949
        %v1952 = vadd.f32 %v1941, %v1949
        %v1953 = vadd.f32 %v1942, %v1949
        %v1954 = vadd.f32 %v1943, %v1949
        %v1955 = vpack.c.bf16 %v1952, %v1951
        %v1956 = vpack.c.bf16 %v1954, %v1953
        %v1957 = vld [vmem:[#allocation8] sm:$0xff]
        %v1958 = vld [vmem:[#allocation8 + $0x8] sm:$0xff]
        %v1959 = vld [vmem:[#allocation8 + $0x10] sm:$0xff]
        %v1960 = vld [vmem:[#allocation8 + $0x18] sm:$0xff]
        %v1961 = vld [vmem:[#allocation8 + $0x20] sm:$0xff]
        %v1962 = vld [vmem:[#allocation8 + $0x28] sm:$0xff]
        %v1963 = vld [vmem:[#allocation8 + $0x30] sm:$0xff]
        %v1964 = vld [vmem:[#allocation8 + $0x38] sm:$0xff]
        %v1965 = vld [vmem:[#allocation8 + $0x40] sm:$0xff]
        %v1966 = vld [vmem:[#allocation8 + $0x48] sm:$0xff]
        %v1967 = vld [vmem:[#allocation8 + $0x50] sm:$0xff]
        %v1968 = vld [vmem:[#allocation8 + $0x58] sm:$0xff]
        %v1969 = vld [vmem:[#allocation8 + $0x60] sm:$0xff]
        %v1970 = vld [vmem:[#allocation8 + $0x68] sm:$0xff]
        %v1971 = vld [vmem:[#allocation8 + $0x70] sm:$0xff]
        %v1972 = vld [vmem:[#allocation8 + $0x78] sm:$0xff]
        %v1973 = vld [vmem:[#allocation8 + $0x80] sm:$0xff]
        %v1974 = vld [vmem:[#allocation8 + $0x88] sm:$0xff]
        %v1975 = vld [vmem:[#allocation8 + $0x90] sm:$0xff]
        %v1976 = vld [vmem:[#allocation8 + $0x98] sm:$0xff]
        %v1977 = vld [vmem:[#allocation8 + $0xa0] sm:$0xff]
        %v1978 = vld [vmem:[#allocation8 + $0xa8] sm:$0xff]
        %v1979 = vld [vmem:[#allocation8 + $0xb0] sm:$0xff]
        %v1980 = vld [vmem:[#allocation8 + $0xb8] sm:$0xff]
        %v1981 = vld [vmem:[#allocation8 + $0xc0] sm:$0xff]
        %v1982 = vld [vmem:[#allocation8 + $0xc8] sm:$0xff]
        %v1983 = vld [vmem:[#allocation8 + $0xd0] sm:$0xff]
        %v1984 = vld [vmem:[#allocation8 + $0xd8] sm:$0xff]
        %v1985 = vld [vmem:[#allocation8 + $0xe0] sm:$0xff]
        %v1986 = vld [vmem:[#allocation8 + $0xe8] sm:$0xff]
        %v1987 = vld [vmem:[#allocation8 + $0xf0] sm:$0xff]
        %v1988 = vld [vmem:[#allocation8 + $0xf8] sm:$0xff]
        %v1989 = vld [vmem:[%s8] sm:$0xf]
        %v1991 = vlaneseq
        %v1992 = vshrl.u32 %v1991, 7
        %v1993 = vsub.s32 0, %v1992
        %v1994 = vrot.slane %v1989, %v1993
        %v1995 = vlaneseq
        %v1996 = vshrl.u32 %v1995, 7
        %v1997 = vsub.s32 1, %v1996
        %v1998 = vrot.slane %v1989, %v1997
        %v1999 = vlaneseq
        %v2000 = vshrl.u32 %v1999, 7
        %v2001 = vsub.s32 2, %v2000
        %v2002 = vrot.slane %v1989, %v2001
        %v2003 = vlaneseq
        %v2004 = vshrl.u32 %v2003, 7
        %v2005 = vsub.s32 3, %v2004
        %v2006 = vrot.slane %v1989, %v2005
        %v2043 = vunpack.c.l.b16 %v1957
        %v2044 = vunpack.c.h.b16 %v1957
        %v2045 = vunpack.c.l.b16 %v1958
        %v2046 = vunpack.c.h.b16 %v1958
        %v2047 = vunpack.c.l.b16 %v1959
        %v2048 = vunpack.c.h.b16 %v1959
        %v2049 = vunpack.c.l.b16 %v1960
        %v2050 = vunpack.c.h.b16 %v1960
        %v2051 = vunpack.c.l.b16 %v1961
        %v2052 = vunpack.c.h.b16 %v1961
        %v2053 = vunpack.c.l.b16 %v1962
        %v2054 = vunpack.c.h.b16 %v1962
        %v2055 = vunpack.c.l.b16 %v1963
        %v2056 = vunpack.c.h.b16 %v1963
        %v2057 = vunpack.c.l.b16 %v1964
        %v2058 = vunpack.c.h.b16 %v1964
        %v2059 = vunpack.c.l.b16 %v1965
        %v2060 = vunpack.c.h.b16 %v1965
        %v2061 = vunpack.c.l.b16 %v1966
        %v2062 = vunpack.c.h.b16 %v1966
        %v2063 = vunpack.c.l.b16 %v1967
        %v2064 = vunpack.c.h.b16 %v1967
        %v2065 = vunpack.c.l.b16 %v1968
        %v2066 = vunpack.c.h.b16 %v1968
        %v2067 = vunpack.c.l.b16 %v1969
        %v2068 = vunpack.c.h.b16 %v1969
        %v2069 = vunpack.c.l.b16 %v1970
        %v2070 = vunpack.c.h.b16 %v1970
        %v2071 = vunpack.c.l.b16 %v1971
        %v2072 = vunpack.c.h.b16 %v1971
        %v2073 = vunpack.c.l.b16 %v1972
        %v2074 = vunpack.c.h.b16 %v1972
        %v2075 = vunpack.c.l.b16 %v1973
        %v2076 = vunpack.c.h.b16 %v1973
        %v2077 = vunpack.c.l.b16 %v1974
        %v2078 = vunpack.c.h.b16 %v1974
        %v2079 = vunpack.c.l.b16 %v1975
        %v2080 = vunpack.c.h.b16 %v1975
        %v2081 = vunpack.c.l.b16 %v1976
        %v2082 = vunpack.c.h.b16 %v1976
        %v2083 = vunpack.c.l.b16 %v1977
        %v2084 = vunpack.c.h.b16 %v1977
        %v2085 = vunpack.c.l.b16 %v1978
        %v2086 = vunpack.c.h.b16 %v1978
        %v2087 = vunpack.c.l.b16 %v1979
        %v2088 = vunpack.c.h.b16 %v1979
        %v2089 = vunpack.c.l.b16 %v1980
        %v2090 = vunpack.c.h.b16 %v1980
        %v2091 = vunpack.c.l.b16 %v1981
        %v2092 = vunpack.c.h.b16 %v1981
        %v2093 = vunpack.c.l.b16 %v1982
        %v2094 = vunpack.c.h.b16 %v1982
        %v2095 = vunpack.c.l.b16 %v1983
        %v2096 = vunpack.c.h.b16 %v1983
        %v2097 = vunpack.c.l.b16 %v1984
        %v2098 = vunpack.c.h.b16 %v1984
        %v2099 = vunpack.c.l.b16 %v1985
        %v2100 = vunpack.c.h.b16 %v1985
        %v2101 = vunpack.c.l.b16 %v1986
        %v2102 = vunpack.c.h.b16 %v1986
        %v2103 = vunpack.c.l.b16 %v1987
        %v2104 = vunpack.c.h.b16 %v1987
        %v2105 = vunpack.c.l.b16 %v1988
        %v2106 = vunpack.c.h.b16 %v1988
        %v2107 = vpack.c.b16 %v2047, %v2043
        %v2108 = vpack.c.b16 %v2048, %v2044
        %v2109 = vpack.c.b16 %v2049, %v2045
        %v2110 = vpack.c.b16 %v2050, %v2046
        %v2111 = vpack.c.b16 %v2055, %v2051
        %v2112 = vpack.c.b16 %v2056, %v2052
        %v2113 = vpack.c.b16 %v2057, %v2053
        %v2114 = vpack.c.b16 %v2058, %v2054
        %v2115 = vpack.c.b16 %v2063, %v2059
        %v2116 = vpack.c.b16 %v2064, %v2060
        %v2117 = vpack.c.b16 %v2065, %v2061
        %v2118 = vpack.c.b16 %v2066, %v2062
        %v2119 = vpack.c.b16 %v2071, %v2067
        %v2120 = vpack.c.b16 %v2072, %v2068
        %v2121 = vpack.c.b16 %v2073, %v2069
        %v2122 = vpack.c.b16 %v2074, %v2070
        %v2123 = vpack.c.b16 %v2079, %v2075
        %v2124 = vpack.c.b16 %v2080, %v2076
        %v2125 = vpack.c.b16 %v2081, %v2077
        %v2126 = vpack.c.b16 %v2082, %v2078
        %v2127 = vpack.c.b16 %v2087, %v2083
        %v2128 = vpack.c.b16 %v2088, %v2084
        %v2129 = vpack.c.b16 %v2089, %v2085
        %v2130 = vpack.c.b16 %v2090, %v2086
        %v2131 = vpack.c.b16 %v2095, %v2091
        %v2132 = vpack.c.b16 %v2096, %v2092
        %v2133 = vpack.c.b16 %v2097, %v2093
        %v2134 = vpack.c.b16 %v2098, %v2094
        %v2135 = vpack.c.b16 %v2103, %v2099
        %v2136 = vpack.c.b16 %v2104, %v2100
        %v2137 = vpack.c.b16 %v2105, %v2101
        %v2138 = vpack.c.b16 %v2106, %v2102
        %2171 = vmatprep.subr.bf16.mxu0 %v2108
        %2172 = vmatpush1.bf16.msra.mxu0 %v2107
        %2173 = vmatprep.subr.bf16.mxu0 %v2112
        %2174 = vmatpush1.bf16.msra.mxu0 %v2111
        %2175 = vmatprep.subr.bf16.mxu0 %v2116
        %2176 = vmatpush1.bf16.msra.mxu0 %v2115
        %2177 = vmatprep.subr.bf16.mxu0 %v2120
        %2178 = vmatpush1.bf16.msra.mxu0 %v2119
        %2179 = vmatprep.subr.bf16.mxu0 %v2124
        %2180 = vmatpush1.bf16.msra.mxu0 %v2123
        %2181 = vmatprep.subr.bf16.mxu0 %v2128
        %2182 = vmatpush1.bf16.msra.mxu0 %v2127
        %2183 = vmatprep.subr.bf16.mxu0 %v2132
        %2184 = vmatpush1.bf16.msra.mxu0 %v2131
        %2185 = vmatprep.subr.bf16.mxu0 %v2136
        %2186 = vmatpush1.bf16.msra.mxu0 %v2135
        %2187 = vmatprep.subr.bf16.mxu0 0
        %2188 = vmatpush1.bf16.msra.mxu0 0
        %2189 = vmatprep.subr.bf16.mxu0 0
        %2190 = vmatpush1.bf16.msra.mxu0 0
        %2191 = vmatprep.subr.bf16.mxu0 0
        %2192 = vmatpush1.bf16.msra.mxu0 0
        %2193 = vmatprep.subr.bf16.mxu0 0
        %2194 = vmatpush1.bf16.msra.mxu0 0
        %2195 = vmatprep.subr.bf16.mxu0 0
        %2196 = vmatpush1.bf16.msra.mxu0 0
        %2197 = vmatprep.subr.bf16.mxu0 0
        %2198 = vmatpush1.bf16.msra.mxu0 0
        %2199 = vmatprep.subr.bf16.mxu0 0
        %2200 = vmatpush1.bf16.msra.mxu0 0
        %2201 = vmatprep.subr.bf16.mxu0 0
        %2202 = vmatpush1.bf16.msra.mxu0 0
        %2203 = vmatprep.mubr.bf16.mxu0 0
        %2204 = vmatmul.mubr.bf16.gmra.mrb[0].mxu0 %v1955
        %v2205 = vpop.f32.mrb[0].mxu0
        %v2206 = vadd.f32 %v1994, %v2205
        %v2207 = vpop.f32.mrb[0].mxu0
        %v2208 = vadd.f32 %v1998, %v2207
        %v2209 = vpop.f32.mrb[0].mxu0
        %v2210 = vadd.f32 %v1994, %v2209
        %v2211 = vpop.f32.mrb[0].mxu0
        %v2212 = vadd.f32 %v1998, %v2211
        %2213 = vmatprep.mubr.bf16.mxu0 0
        %2214 = vmatmul.mubr.bf16.gmra.mrb[0].mxu0 %v1956
        %v2215 = vpop.f32.mrb[0].mxu0
        %v2216 = vadd.f32 %v1994, %v2215
        %v2217 = vpop.f32.mrb[0].mxu0
        %v2218 = vadd.f32 %v1998, %v2217
        %v2219 = vpop.f32.mrb[0].mxu0
        %v2220 = vadd.f32 %v1994, %v2219
        %v2221 = vpop.f32.mrb[0].mxu0
        %v2222 = vadd.f32 %v1998, %v2221
        %2223 = vdwg.mxu0
        %2224 = vmatprep.subr.bf16.mxu0 %v2110
        %2225 = vmatpush1.bf16.msra.mxu0 %v2109
        %2226 = vmatprep.subr.bf16.mxu0 %v2114
        %2227 = vmatpush1.bf16.msra.mxu0 %v2113
        %2228 = vmatprep.subr.bf16.mxu0 %v2118
        %2229 = vmatpush1.bf16.msra.mxu0 %v2117
        %2230 = vmatprep.subr.bf16.mxu0 %v2122
        %2231 = vmatpush1.bf16.msra.mxu0 %v2121
        %2232 = vmatprep.subr.bf16.mxu0 %v2126
        %2233 = vmatpush1.bf16.msra.mxu0 %v2125
        %2234 = vmatprep.subr.bf16.mxu0 %v2130
        %2235 = vmatpush1.bf16.msra.mxu0 %v2129
        %2236 = vmatprep.subr.bf16.mxu0 %v2134
        %2237 = vmatpush1.bf16.msra.mxu0 %v2133
        %2238 = vmatprep.subr.bf16.mxu0 %v2138
        %2239 = vmatpush1.bf16.msra.mxu0 %v2137
        %2240 = vmatprep.subr.bf16.mxu0 0
        %2241 = vmatpush1.bf16.msra.mxu0 0
        %2242 = vmatprep.subr.bf16.mxu0 0
        %2243 = vmatpush1.bf16.msra.mxu0 0
        %2244 = vmatprep.subr.bf16.mxu0 0
        %2245 = vmatpush1.bf16.msra.mxu0 0
        %2246 = vmatprep.subr.bf16.mxu0 0
        %2247 = vmatpush1.bf16.msra.mxu0 0
        %2248 = vmatprep.subr.bf16.mxu0 0
        %2249 = vmatpush1.bf16.msra.mxu0 0
        %2250 = vmatprep.subr.bf16.mxu0 0
        %2251 = vmatpush1.bf16.msra.mxu0 0
        %2252 = vmatprep.subr.bf16.mxu0 0
        %2253 = vmatpush1.bf16.msra.mxu0 0
        %2254 = vmatprep.subr.bf16.mxu0 0
        %2255 = vmatpush1.bf16.msra.mxu0 0
        %2256 = vmatprep.mubr.bf16.mxu0 0
        %2257 = vmatmul.mubr.bf16.gmra.mrb[0].mxu0 %v1955
        %v2258 = vpop.f32.mrb[0].mxu0
        %v2259 = vadd.f32 %v2002, %v2258
        %v2260 = vpop.f32.mrb[0].mxu0
        %v2261 = vadd.f32 %v2006, %v2260
        %v2262 = vpop.f32.mrb[0].mxu0
        %v2263 = vadd.f32 %v2002, %v2262
        %v2264 = vpop.f32.mrb[0].mxu0
        %v2265 = vadd.f32 %v2006, %v2264
        %2266 = vmatprep.mubr.bf16.mxu0 0
        %2267 = vmatmul.mubr.bf16.gmra.mrb[0].mxu0 %v1956
        %v2268 = vpop.f32.mrb[0].mxu0
        %v2269 = vadd.f32 %v2002, %v2268
        %v2270 = vpop.f32.mrb[0].mxu0
        %v2271 = vadd.f32 %v2006, %v2270
        %v2272 = vpop.f32.mrb[0].mxu0
        %v2273 = vadd.f32 %v2002, %v2272
        %v2274 = vpop.f32.mrb[0].mxu0
        %v2275 = vadd.f32 %v2006, %v2274
        %2276 = vdwg.mxu0
        %v2277 = vmul.f32 %v2206, %v2206
        %v2278 = vmul.f32 %v2208, %v2208
        %v2279 = vmul.f32 %v2259, %v2259
        %v2280 = vmul.f32 %v2261, %v2261
        %v2281 = vmul.f32 %v2210, %v2210
        %v2282 = vmul.f32 %v2212, %v2212
        %v2283 = vmul.f32 %v2263, %v2263
        %v2284 = vmul.f32 %v2265, %v2265
        %v2285 = vmul.f32 %v2216, %v2216
        %v2286 = vmul.f32 %v2218, %v2218
        %v2287 = vmul.f32 %v2269, %v2269
        %v2288 = vmul.f32 %v2271, %v2271
        %v2289 = vmul.f32 %v2220, %v2220
        %v2290 = vmul.f32 %v2222, %v2222
        %v2291 = vmul.f32 %v2273, %v2273
        %v2292 = vmul.f32 %v2275, %v2275
        %v2293 = vmul.f32 %v2206, %v2277
        %v2294 = vmul.f32 %v2208, %v2278
        %v2295 = vmul.f32 %v2259, %v2279
        %v2296 = vmul.f32 %v2261, %v2280
        %v2297 = vmul.f32 %v2210, %v2281
        %v2298 = vmul.f32 %v2212, %v2282
        %v2299 = vmul.f32 %v2263, %v2283
        %v2300 = vmul.f32 %v2265, %v2284
        %v2301 = vmul.f32 %v2216, %v2285
        %v2302 = vmul.f32 %v2218, %v2286
        %v2303 = vmul.f32 %v2269, %v2287
        %v2304 = vmul.f32 %v2271, %v2288
        %v2305 = vmul.f32 %v2220, %v2289
        %v2306 = vmul.f32 %v2222, %v2290
        %v2307 = vmul.f32 %v2273, %v2291
        %v2308 = vmul.f32 %v2275, %v2292
        %v2309 = vmul.f32 %v2293, 0.044715
        %v2310 = vmul.f32 %v2294, 0.044715
        %v2311 = vmul.f32 %v2295, 0.044715
        %v2312 = vmul.f32 %v2296, 0.044715
        %v2313 = vmul.f32 %v2297, 0.044715
        %v2314 = vmul.f32 %v2298, 0.044715
        %v2315 = vmul.f32 %v2299, 0.044715
        %v2316 = vmul.f32 %v2300, 0.044715
        %v2317 = vmul.f32 %v2301, 0.044715
        %v2318 = vmul.f32 %v2302, 0.044715
        %v2319 = vmul.f32 %v2303, 0.044715
        %v2320 = vmul.f32 %v2304, 0.044715
        %v2321 = vmul.f32 %v2305, 0.044715
        %v2322 = vmul.f32 %v2306, 0.044715
        %v2323 = vmul.f32 %v2307, 0.044715
        %v2324 = vmul.f32 %v2308, 0.044715
        %v2325 = vadd.f32 %v2206, %v2309
        %v2326 = vadd.f32 %v2208, %v2310
        %v2327 = vadd.f32 %v2259, %v2311
        %v2328 = vadd.f32 %v2261, %v2312
        %v2329 = vadd.f32 %v2210, %v2313
        %v2330 = vadd.f32 %v2212, %v2314
        %v2331 = vadd.f32 %v2263, %v2315
        %v2332 = vadd.f32 %v2265, %v2316
        %v2333 = vadd.f32 %v2216, %v2317
        %v2334 = vadd.f32 %v2218, %v2318
        %v2335 = vadd.f32 %v2269, %v2319
        %v2336 = vadd.f32 %v2271, %v2320
        %v2337 = vadd.f32 %v2220, %v2321
        %v2338 = vadd.f32 %v2222, %v2322
        %v2339 = vadd.f32 %v2273, %v2323
        %v2340 = vadd.f32 %v2275, %v2324
        %v2341 = vmul.f32 %v2325, 0.7978846
        %v2342 = vmul.f32 %v2326, 0.7978846
        %v2343 = vmul.f32 %v2327, 0.7978846
        %v2344 = vmul.f32 %v2328, 0.7978846
        %v2345 = vmul.f32 %v2329, 0.7978846
        %v2346 = vmul.f32 %v2330, 0.7978846
        %v2347 = vmul.f32 %v2331, 0.7978846
        %v2348 = vmul.f32 %v2332, 0.7978846
        %v2349 = vmul.f32 %v2333, 0.7978846
        %v2350 = vmul.f32 %v2334, 0.7978846
        %v2351 = vmul.f32 %v2335, 0.7978846
        %v2352 = vmul.f32 %v2336, 0.7978846
        %v2353 = vmul.f32 %v2337, 0.7978846
        %v2354 = vmul.f32 %v2338, 0.7978846
        %v2355 = vmul.f32 %v2339, 0.7978846
        %v2356 = vmul.f32 %v2340, 0.7978846
        %v2357 = vtanh.pop %v2341
        %v2358 = vtanh.pop %v2342
        %v2359 = vtanh.pop %v2343
        %v2360 = vtanh.pop %v2344
        %v2361 = vtanh.pop %v2345
        %v2362 = vtanh.pop %v2346
        %v2363 = vtanh.pop %v2347
        %v2364 = vtanh.pop %v2348
        %v2365 = vtanh.pop %v2349
        %v2366 = vtanh.pop %v2350
        %v2367 = vtanh.pop %v2351
        %v2368 = vtanh.pop %v2352
        %v2369 = vtanh.pop %v2353
        %v2370 = vtanh.pop %v2354
        %v2371 = vtanh.pop %v2355
        %v2372 = vtanh.pop %v2356
        %v2373 = vadd.f32 %v2357, 1.0
        %v2374 = vadd.f32 %v2358, 1.0
        %v2375 = vadd.f32 %v2359, 1.0
        %v2376 = vadd.f32 %v2360, 1.0
        %v2377 = vadd.f32 %v2361, 1.0
        %v2378 = vadd.f32 %v2362, 1.0
        %v2379 = vadd.f32 %v2363, 1.0
        %v2380 = vadd.f32 %v2364, 1.0
        %v2381 = vadd.f32 %v2365, 1.0
        %v2382 = vadd.f32 %v2366, 1.0
        %v2383 = vadd.f32 %v2367, 1.0
        %v2384 = vadd.f32 %v2368, 1.0
        %v2385 = vadd.f32 %v2369, 1.0
        %v2386 = vadd.f32 %v2370, 1.0
        %v2387 = vadd.f32 %v2371, 1.0
        %v2388 = vadd.f32 %v2372, 1.0
        %v2389 = vmul.f32 %v2373, 0.5
        %v2390 = vmul.f32 %v2374, 0.5
        %v2391 = vmul.f32 %v2375, 0.5
        %v2392 = vmul.f32 %v2376, 0.5
        %v2393 = vmul.f32 %v2377, 0.5
        %v2394 = vmul.f32 %v2378, 0.5
        %v2395 = vmul.f32 %v2379, 0.5
        %v2396 = vmul.f32 %v2380, 0.5
        %v2397 = vmul.f32 %v2381, 0.5
        %v2398 = vmul.f32 %v2382, 0.5
        %v2399 = vmul.f32 %v2383, 0.5
        %v2400 = vmul.f32 %v2384, 0.5
        %v2401 = vmul.f32 %v2385, 0.5
        %v2402 = vmul.f32 %v2386, 0.5
        %v2403 = vmul.f32 %v2387, 0.5
        %v2404 = vmul.f32 %v2388, 0.5
        %v2405 = vmul.f32 %v2206, %v2389
        %v2406 = vmul.f32 %v2208, %v2390
        %v2407 = vmul.f32 %v2259, %v2391
        %v2408 = vmul.f32 %v2261, %v2392
        %v2409 = vmul.f32 %v2210, %v2393
        %v2410 = vmul.f32 %v2212, %v2394
        %v2411 = vmul.f32 %v2263, %v2395
        %v2412 = vmul.f32 %v2265, %v2396
        %v2413 = vmul.f32 %v2216, %v2397
        %v2414 = vmul.f32 %v2218, %v2398
        %v2415 = vmul.f32 %v2269, %v2399
        %v2416 = vmul.f32 %v2271, %v2400
        %v2417 = vmul.f32 %v2220, %v2401
        %v2418 = vmul.f32 %v2222, %v2402
        %v2419 = vmul.f32 %v2273, %v2403
        %v2420 = vmul.f32 %v2275, %v2404
        %v2421 = vpack.c.bf16 %v2409, %v2405
        %v2422 = vpack.c.bf16 %v2410, %v2406
        %v2423 = vpack.c.bf16 %v2411, %v2407
        %v2424 = vpack.c.bf16 %v2412, %v2408
        %v2425 = vpack.c.bf16 %v2417, %v2413
        %v2426 = vpack.c.bf16 %v2418, %v2414
        %v2427 = vpack.c.bf16 %v2419, %v2415
        %v2428 = vpack.c.bf16 %v2420, %v2416
        %v2429 = vld [vmem:[#allocation10] sm:$0xf]
        %v2430 = vld [vmem:[#allocation10 + $0x4] sm:$0xf]
        %v2431 = vld [vmem:[#allocation10 + $0x8] sm:$0xf]
        %v2432 = vld [vmem:[#allocation10 + $0xc] sm:$0xf]
        %v2433 = vld [vmem:[#allocation10 + $0x10] sm:$0xf]
        %v2434 = vld [vmem:[#allocation10 + $0x14] sm:$0xf]
        %v2435 = vld [vmem:[#allocation10 + $0x18] sm:$0xf]
        %v2436 = vld [vmem:[#allocation10 + $0x1c] sm:$0xf]
        %v2437 = vld [vmem:[#allocation10 + $0x20] sm:$0xf]
        %v2438 = vld [vmem:[#allocation10 + $0x24] sm:$0xf]
        %v2439 = vld [vmem:[#allocation10 + $0x28] sm:$0xf]
        %v2440 = vld [vmem:[#allocation10 + $0x2c] sm:$0xf]
        %v2441 = vld [vmem:[#allocation10 + $0x30] sm:$0xf]
        %v2442 = vld [vmem:[#allocation10 + $0x34] sm:$0xf]
        %v2443 = vld [vmem:[#allocation10 + $0x38] sm:$0xf]
        %v2444 = vld [vmem:[#allocation10 + $0x3c] sm:$0xf]
        %v2445 = vld [vmem:[#allocation10 + $0x40] sm:$0xf]
        %v2446 = vld [vmem:[#allocation10 + $0x44] sm:$0xf]
        %v2447 = vld [vmem:[#allocation10 + $0x48] sm:$0xf]
        %v2448 = vld [vmem:[#allocation10 + $0x4c] sm:$0xf]
        %v2449 = vld [vmem:[#allocation10 + $0x50] sm:$0xf]
        %v2450 = vld [vmem:[#allocation10 + $0x54] sm:$0xf]
        %v2451 = vld [vmem:[#allocation10 + $0x58] sm:$0xf]
        %v2452 = vld [vmem:[#allocation10 + $0x5c] sm:$0xf]
        %v2453 = vld [vmem:[#allocation10 + $0x60] sm:$0xf]
        %v2454 = vld [vmem:[#allocation10 + $0x64] sm:$0xf]
        %v2455 = vld [vmem:[#allocation10 + $0x68] sm:$0xf]
        %v2456 = vld [vmem:[#allocation10 + $0x6c] sm:$0xf]
        %v2457 = vld [vmem:[#allocation10 + $0x70] sm:$0xf]
        %v2458 = vld [vmem:[#allocation10 + $0x74] sm:$0xf]
        %v2459 = vld [vmem:[#allocation10 + $0x78] sm:$0xf]
        %v2460 = vld [vmem:[#allocation10 + $0x7c] sm:$0xf]
        %v2461 = vld [vmem:[#allocation10 + $0x80] sm:$0xf]
        %v2462 = vld [vmem:[#allocation10 + $0x84] sm:$0xf]
        %v2463 = vld [vmem:[#allocation10 + $0x88] sm:$0xf]
        %v2464 = vld [vmem:[#allocation10 + $0x8c] sm:$0xf]
        %v2465 = vld [vmem:[#allocation10 + $0x90] sm:$0xf]
        %v2466 = vld [vmem:[#allocation10 + $0x94] sm:$0xf]
        %v2467 = vld [vmem:[#allocation10 + $0x98] sm:$0xf]
        %v2468 = vld [vmem:[#allocation10 + $0x9c] sm:$0xf]
        %v2469 = vld [vmem:[#allocation10 + $0xa0] sm:$0xf]
        %v2470 = vld [vmem:[#allocation10 + $0xa4] sm:$0xf]
        %v2471 = vld [vmem:[#allocation10 + $0xa8] sm:$0xf]
        %v2472 = vld [vmem:[#allocation10 + $0xac] sm:$0xf]
        %v2473 = vld [vmem:[#allocation10 + $0xb0] sm:$0xf]
        %v2474 = vld [vmem:[#allocation10 + $0xb4] sm:$0xf]
        %v2475 = vld [vmem:[#allocation10 + $0xb8] sm:$0xf]
        %v2476 = vld [vmem:[#allocation10 + $0xbc] sm:$0xf]
        %v2477 = vld [vmem:[#allocation10 + $0xc0] sm:$0xf]
        %v2478 = vld [vmem:[#allocation10 + $0xc4] sm:$0xf]
        %v2479 = vld [vmem:[#allocation10 + $0xc8] sm:$0xf]
        %v2480 = vld [vmem:[#allocation10 + $0xcc] sm:$0xf]
        %v2481 = vld [vmem:[#allocation10 + $0xd0] sm:$0xf]
        %v2482 = vld [vmem:[#allocation10 + $0xd4] sm:$0xf]
        %v2483 = vld [vmem:[#allocation10 + $0xd8] sm:$0xf]
        %v2484 = vld [vmem:[#allocation10 + $0xdc] sm:$0xf]
        %v2485 = vld [vmem:[#allocation10 + $0xe0] sm:$0xf]
        %v2486 = vld [vmem:[#allocation10 + $0xe4] sm:$0xf]
        %v2487 = vld [vmem:[#allocation10 + $0xe8] sm:$0xf]
        %v2488 = vld [vmem:[#allocation10 + $0xec] sm:$0xf]
        %v2489 = vld [vmem:[#allocation10 + $0xf0] sm:$0xf]
        %v2490 = vld [vmem:[#allocation10 + $0xf4] sm:$0xf]
        %v2491 = vld [vmem:[#allocation10 + $0xf8] sm:$0xf]
        %v2492 = vld [vmem:[#allocation10 + $0xfc] sm:$0xf]
        %v2493 = vld [vmem:[%s10] sm:$0x1]
        %v2495 = vlaneseq
        %v2496 = vshrl.u32 %v2495, 7
        %v2497 = vsub.s32 0, %v2496
        %v2498 = vrot.slane %v2493, %v2497
        %v2564 = vunpack.c.l.b16 %v2429
        %v2565 = vunpack.c.l.b16 %v2430
        %v2566 = vunpack.c.l.b16 %v2431
        %v2567 = vunpack.c.l.b16 %v2432
        %v2568 = vunpack.c.l.b16 %v2433
        %v2569 = vunpack.c.l.b16 %v2434
        %v2570 = vunpack.c.l.b16 %v2435
        %v2571 = vunpack.c.l.b16 %v2436
        %v2572 = vunpack.c.l.b16 %v2437
        %v2573 = vunpack.c.l.b16 %v2438
        %v2574 = vunpack.c.l.b16 %v2439
        %v2575 = vunpack.c.l.b16 %v2440
        %v2576 = vunpack.c.l.b16 %v2441
        %v2577 = vunpack.c.l.b16 %v2442
        %v2578 = vunpack.c.l.b16 %v2443
        %v2579 = vunpack.c.l.b16 %v2444
        %v2580 = vunpack.c.l.b16 %v2445
        %v2581 = vunpack.c.l.b16 %v2446
        %v2582 = vunpack.c.l.b16 %v2447
        %v2583 = vunpack.c.l.b16 %v2448
        %v2584 = vunpack.c.l.b16 %v2449
        %v2585 = vunpack.c.l.b16 %v2450
        %v2586 = vunpack.c.l.b16 %v2451
        %v2587 = vunpack.c.l.b16 %v2452
        %v2588 = vunpack.c.l.b16 %v2453
        %v2589 = vunpack.c.l.b16 %v2454
        %v2590 = vunpack.c.l.b16 %v2455
        %v2591 = vunpack.c.l.b16 %v2456
        %v2592 = vunpack.c.l.b16 %v2457
        %v2593 = vunpack.c.l.b16 %v2458
        %v2594 = vunpack.c.l.b16 %v2459
        %v2595 = vunpack.c.l.b16 %v2460
        %v2596 = vunpack.c.l.b16 %v2461
        %v2597 = vunpack.c.l.b16 %v2462
        %v2598 = vunpack.c.l.b16 %v2463
        %v2599 = vunpack.c.l.b16 %v2464
        %v2600 = vunpack.c.l.b16 %v2465
        %v2601 = vunpack.c.l.b16 %v2466
        %v2602 = vunpack.c.l.b16 %v2467
        %v2603 = vunpack.c.l.b16 %v2468
        %v2604 = vunpack.c.l.b16 %v2469
        %v2605 = vunpack.c.l.b16 %v2470
        %v2606 = vunpack.c.l.b16 %v2471
        %v2607 = vunpack.c.l.b16 %v2472
        %v2608 = vunpack.c.l.b16 %v2473
        %v2609 = vunpack.c.l.b16 %v2474
        %v2610 = vunpack.c.l.b16 %v2475
        %v2611 = vunpack.c.l.b16 %v2476
        %v2612 = vunpack.c.l.b16 %v2477
        %v2613 = vunpack.c.l.b16 %v2478
        %v2614 = vunpack.c.l.b16 %v2479
        %v2615 = vunpack.c.l.b16 %v2480
        %v2616 = vunpack.c.l.b16 %v2481
        %v2617 = vunpack.c.l.b16 %v2482
        %v2618 = vunpack.c.l.b16 %v2483
        %v2619 = vunpack.c.l.b16 %v2484
        %v2620 = vunpack.c.l.b16 %v2485
        %v2621 = vunpack.c.l.b16 %v2486
        %v2622 = vunpack.c.l.b16 %v2487
        %v2623 = vunpack.c.l.b16 %v2488
        %v2624 = vunpack.c.l.b16 %v2489
        %v2625 = vunpack.c.l.b16 %v2490
        %v2626 = vunpack.c.l.b16 %v2491
        %v2627 = vunpack.c.l.b16 %v2492
        %v2628 = vpack.c.b16 %v2565, %v2564
        %v2629 = vpack.c.b16 %v2567, %v2566
        %v2630 = vpack.c.b16 %v2569, %v2568
        %v2631 = vpack.c.b16 %v2571, %v2570
        %v2632 = vpack.c.b16 %v2573, %v2572
        %v2633 = vpack.c.b16 %v2575, %v2574
        %v2634 = vpack.c.b16 %v2577, %v2576
        %v2635 = vpack.c.b16 %v2579, %v2578
        %v2636 = vpack.c.b16 %v2581, %v2580
        %v2637 = vpack.c.b16 %v2583, %v2582
        %v2638 = vpack.c.b16 %v2585, %v2584
        %v2639 = vpack.c.b16 %v2587, %v2586
        %v2640 = vpack.c.b16 %v2589, %v2588
        %v2641 = vpack.c.b16 %v2591, %v2590
        %v2642 = vpack.c.b16 %v2593, %v2592
        %v2643 = vpack.c.b16 %v2595, %v2594
        %v2644 = vpack.c.b16 %v2597, %v2596
        %v2645 = vpack.c.b16 %v2599, %v2598
        %v2646 = vpack.c.b16 %v2601, %v2600
        %v2647 = vpack.c.b16 %v2603, %v2602
        %v2648 = vpack.c.b16 %v2605, %v2604
        %v2649 = vpack.c.b16 %v2607, %v2606
        %v2650 = vpack.c.b16 %v2609, %v2608
        %v2651 = vpack.c.b16 %v2611, %v2610
        %v2652 = vpack.c.b16 %v2613, %v2612
        %v2653 = vpack.c.b16 %v2615, %v2614
        %v2654 = vpack.c.b16 %v2617, %v2616
        %v2655 = vpack.c.b16 %v2619, %v2618
        %v2656 = vpack.c.b16 %v2621, %v2620
        %v2657 = vpack.c.b16 %v2623, %v2622
        %v2658 = vpack.c.b16 %v2625, %v2624
        %v2659 = vpack.c.b16 %v2627, %v2626
        %2692 = vmatprep.subr.bf16.mxu0 0
        %2693 = vmatpush1.bf16.msra.mxu0 %v2628
        %2694 = vmatprep.subr.bf16.mxu0 0
        %2695 = vmatpush1.bf16.msra.mxu0 %v2629
        %2696 = vmatprep.subr.bf16.mxu0 0
        %2697 = vmatpush1.bf16.msra.mxu0 %v2630
        %2698 = vmatprep.subr.bf16.mxu0 0
        %2699 = vmatpush1.bf16.msra.mxu0 %v2631
        %2700 = vmatprep.subr.bf16.mxu0 0
        %2701 = vmatpush1.bf16.msra.mxu0 %v2632
        %2702 = vmatprep.subr.bf16.mxu0 0
        %2703 = vmatpush1.bf16.msra.mxu0 %v2633
        %2704 = vmatprep.subr.bf16.mxu0 0
        %2705 = vmatpush1.bf16.msra.mxu0 %v2634
        %2706 = vmatprep.subr.bf16.mxu0 0
        %2707 = vmatpush1.bf16.msra.mxu0 %v2635
        %2708 = vmatprep.subr.bf16.mxu0 0
        %2709 = vmatpush1.bf16.msra.mxu0 %v2636
        %2710 = vmatprep.subr.bf16.mxu0 0
        %2711 = vmatpush1.bf16.msra.mxu0 %v2637
        %2712 = vmatprep.subr.bf16.mxu0 0
        %2713 = vmatpush1.bf16.msra.mxu0 %v2638
        %2714 = vmatprep.subr.bf16.mxu0 0
        %2715 = vmatpush1.bf16.msra.mxu0 %v2639
        %2716 = vmatprep.subr.bf16.mxu0 0
        %2717 = vmatpush1.bf16.msra.mxu0 %v2640
        %2718 = vmatprep.subr.bf16.mxu0 0
        %2719 = vmatpush1.bf16.msra.mxu0 %v2641
        %2720 = vmatprep.subr.bf16.mxu0 0
        %2721 = vmatpush1.bf16.msra.mxu0 %v2642
        %2722 = vmatprep.subr.bf16.mxu0 0
        %2723 = vmatpush1.bf16.msra.mxu0 %v2643
        %2724 = vmatprep.mubr.bf16.mxu0 %v2422
        %2725 = vmatmul.mubr.bf16.gmra.mrb[0].mxu0 %v2421
        %v2726 = vpop.f32.mrb[0].mxu0
        %v2727 = vadd.f32 %v2498, %v2726
        %v2728 = vpop.f32.mrb[0].mxu0
        %v2729 = vpop.f32.mrb[0].mxu0
        %v2730 = vadd.f32 %v2498, %v2729
        %v2731 = vpop.f32.mrb[0].mxu0
        %2732 = vmatprep.mubr.bf16.mxu0 %v2426
        %2733 = vmatmul.mubr.bf16.gmra.mrb[0].mxu0 %v2425
        %v2734 = vpop.f32.mrb[0].mxu0
        %v2735 = vadd.f32 %v2498, %v2734
        %v2736 = vpop.f32.mrb[0].mxu0
        %v2737 = vpop.f32.mrb[0].mxu0
        %v2738 = vadd.f32 %v2498, %v2737
        %v2739 = vpop.f32.mrb[0].mxu0
        %2740 = vdwg.mxu0
        %2741 = vmatprep.subr.bf16.mxu0 0
        %2742 = vmatpush1.bf16.msra.mxu0 %v2644
        %2743 = vmatprep.subr.bf16.mxu0 0
        %2744 = vmatpush1.bf16.msra.mxu0 %v2645
        %2745 = vmatprep.subr.bf16.mxu0 0
        %2746 = vmatpush1.bf16.msra.mxu0 %v2646
        %2747 = vmatprep.subr.bf16.mxu0 0
        %2748 = vmatpush1.bf16.msra.mxu0 %v2647
        %2749 = vmatprep.subr.bf16.mxu0 0
        %2750 = vmatpush1.bf16.msra.mxu0 %v2648
        %2751 = vmatprep.subr.bf16.mxu0 0
        %2752 = vmatpush1.bf16.msra.mxu0 %v2649
        %2753 = vmatprep.subr.bf16.mxu0 0
        %2754 = vmatpush1.bf16.msra.mxu0 %v2650
        %2755 = vmatprep.subr.bf16.mxu0 0
        %2756 = vmatpush1.bf16.msra.mxu0 %v2651
        %2757 = vmatprep.subr.bf16.mxu0 0
        %2758 = vmatpush1.bf16.msra.mxu0 %v2652
        %2759 = vmatprep.subr.bf16.mxu0 0
        %2760 = vmatpush1.bf16.msra.mxu0 %v2653
        %2761 = vmatprep.subr.bf16.mxu0 0
        %2762 = vmatpush1.bf16.msra.mxu0 %v2654
        %2763 = vmatprep.subr.bf16.mxu0 0
        %2764 = vmatpush1.bf16.msra.mxu0 %v2655
        %2765 = vmatprep.subr.bf16.mxu0 0
        %2766 = vmatpush1.bf16.msra.mxu0 %v2656
        %2767 = vmatprep.subr.bf16.mxu0 0
        %2768 = vmatpush1.bf16.msra.mxu0 %v2657
        %2769 = vmatprep.subr.bf16.mxu0 0
        %2770 = vmatpush1.bf16.msra.mxu0 %v2658
        %2771 = vmatprep.subr.bf16.mxu0 0
        %2772 = vmatpush1.bf16.msra.mxu0 %v2659
        %2773 = vmatprep.mubr.bf16.mxu0 %v2424
        %2774 = vmatmul.mubr.bf16.gmra.mrb[0].mxu0 %v2423
        %v2775 = vpop.f32.mrb[0].mxu0
        %v2776 = vadd.f32 %v2727, %v2775
        %v2777 = vpop.f32.mrb[0].mxu0
        %v2778 = vpop.f32.mrb[0].mxu0
        %v2779 = vadd.f32 %v2730, %v2778
        %v2780 = vpop.f32.mrb[0].mxu0
        %2781 = vmatprep.mubr.bf16.mxu0 %v2428
        %2782 = vmatmul.mubr.bf16.gmra.mrb[0].mxu0 %v2427
        %v2783 = vpop.f32.mrb[0].mxu0
        %v2784 = vadd.f32 %v2735, %v2783
        %v2785 = vpop.f32.mrb[0].mxu0
        %v2786 = vpop.f32.mrb[0].mxu0
        %v2787 = vadd.f32 %v2738, %v2786
        %v2788 = vpop.f32.mrb[0].mxu0
        %2789 = vdwg.mxu0
        %2790 = vst [vmem:[%s463] sm:$0xff] %v2776
        %2791 = vst [vmem:[%s463 + $0x8] sm:$0xff] %v2779
        %2792 = vst [vmem:[%s463 + $0x10] sm:$0xff] %v2784
        %2793 = vst [vmem:[%s463 + $0x18] sm:$0xff] %v2787
        %s2794 = sand.u32 %s274, 1
        %s2795 = scalar_lea.sflag [#allocation4], %s2794
        %s2796 = sand.u32 %s274, 1
        %s2797 = smul.addr %s2796, 32
        %s2798 = scalar_lea.vmem [#allocation11], %s2797
        // Predicated region
        $region85: #{tpu_custom_call.1} parent=63 // pred_check
          %p2799 = pneg %p284
        $region86: #{tpu_custom_call.1} parent=63 // pred_check_branch
          %2801 = sbr.rel (%p2799) target = $region88
        $region87: #{tpu_custom_call.1} parent=63 // pred_region
          %s2802 = smul.u32 2, %s30
          %s2804 = ssub.s32 512, 512
          %2805 = vsyncadd %s2795, %s2804
          %s2806 = smul.addr %s2802, 2
          %s2807 = smul.addr %s2806, 128
          %s2808 = scalar_lea.hbm %s11, %s2807
          %s2809 = sshll.u32 %s2798, 4
          %s2810 = int_to_ptr.vmem [resolvable:$true] %s2809
          %2815 = dma.vmem_to_hbm [thread:$0]  %s2810, 512, %s2808, %s2795, 128, 128, 8
        $region88: #{tpu_custom_call.1} parent=63 // pred_fallthru
          _
      $region64: #{tpu_custom_call.1} parent=5 // pred_fallthru
        _
      %p2816 = scmp.le.s32.totalorder 2, %s25
      // Predicated region
      $region89: #{tpu_custom_call.1} parent=5 // pred_check
        %p2817 = pneg %p2816
      $region90: #{tpu_custom_call.1} parent=5 // pred_check_branch
        %2819 = sbr.rel (%p2817) target = $region92
      $region91: #{tpu_custom_call.1} parent=5 // pred_region
        %s2820 = ssub.s32 %s25, 2
        // Predicated region
        $region93: #{tpu_custom_call.1} parent=91 // pred_check
          %p2821 = pneg %p290
        $region94: #{tpu_custom_call.1} parent=91 // pred_check_branch
          %2823 = sbr.rel (%p2821) target = $region96
        $region95: #{tpu_custom_call.1} parent=91 // pred_region
          %s2824 = sand.u32 %s275, 1
          %s2825 = scalar_lea.sflag [#allocation4], %s2824
          %s2826 = sand.u32 %s275, 1
          %s2827 = smul.addr %s2826, 32
          %s2828 = scalar_lea.vmem [#allocation11], %s2827
          %2829 = dma.done %s2825, 512
        $region96: #{tpu_custom_call.1} parent=91 // pred_fallthru
          _
      $region92: #{tpu_custom_call.1} parent=5 // pred_fallthru
        _
    $region6: #{tpu_custom_call.1} parent=1 // loop_footer
      %s29 = sadd.s32 1, %s25
    $region7: #{tpu_custom_call.1} parent=1 // loop_footer_branch
      %24 = sbr.rel target = $region3
    $region8: #{tpu_custom_call.1} parent=1 // loop_exit
      _
    %2830 = vsyncpa [#allocation3], 1
    %s2831 = scalar_lea.sflag [#allocation3], 1
    %2832 = vsyncpa %s2831, 1
    %2833 = vsyncpa [#allocation6], 1
    %2834 = vsyncpa [#allocation9], 1
    %2835 = vsyncpa [#allocation4], 1
    %s2836 = scalar_lea.sflag [#allocation4], 1
    %2837 = vsyncpa %s2836, 1

</llo_original>
